<compile_context>
chip_gen: v6e
topology: v6e:2x2x1
jax: 0.10.0
libtpu: 0.0.40
codegen_flags: <defaults>
</compile_context>

<pallas_src>
import numpy as np
import jax
import jax.numpy as jnp
from jax.experimental import pallas as pl
from jax.experimental.pallas import tpu as pltpu

NEG_MASK = np.float32(-10000000.0)   # matches the reference's -1e7 masking
TILE_B = 8                           # batch rows per grid step (sublane axis)


# ----------------------------------------------------------------------------
# Fused kernel: bidirectional LSTM (packed-seq semantics) + word & sentence
# attention + fc head.  One grid step == TILE_B batch rows.
# Row convention for flattened 2-D tensors: row = t * TILE_B + b.
# ----------------------------------------------------------------------------
def fused_rnn_attn_kernel(m1_ref, m2_ref, x_ref, agg_ref,
                          wih_ref, whhf_ref, whhb_ref, bg_ref,
                          whi_ref, bhi_ref,
                          waw_ref, baw_ref, we_ref, be_ref,
                          wus_ref, wfc_ref, bfc_ref,
                          out_ref, soft_ref,
                          hf_scr, hb_scr):
    T, TB, E = x_ref.shape
    H = whhf_ref.shape[0]
    H4 = 4 * H
    Ss = m2_ref.shape[0]

    m1 = m1_ref[...]                       # (T, TB, 1)  1.0 valid / -1e7 pad
    m2 = m2_ref[...]                       # (Ss, TB, 1)

    # ---- hoisted input projection: one (T*TB, E) @ (E, 8H) bf16 matmul -----
    x2 = x_ref[...].reshape(T * TB, E).astype(jnp.bfloat16)
    gx = (jnp.dot(x2, wih_ref[...], preferred_element_type=jnp.float32)
          + bg_ref[...])                   # (T*TB, 8H) f32, row = t*TB + b
    gx3 = gx.reshape(T, TB, 2 * H4)        # free split of the leading dim

    whh_f = whhf_ref[...]                  # (H, 4H) bf16
    whh_b = whhb_ref[...]                  # (H, 4H) bf16

    def lstm_update(g, c):                 # gate column order [i | f | o | g]
        sig = jax.nn.sigmoid(g[:, :3 * H])
        gin = jnp.tanh(g[:, 3 * H:])
        c_new = sig[:, H:2 * H] * c + sig[:, :H] * gin
        h_new = sig[:, 2 * H:] * jnp.tanh(c_new)
        return h_new, c_new

    hf = jnp.zeros((TB, H), jnp.float32)
    cf = jnp.zeros((TB, H), jnp.float32)
    hb = jnp.zeros((TB, H), jnp.float32)
    cb = jnp.zeros((TB, H), jnp.float32)

    # Fully unrolled: T is small & static.
    # TODO(synk): for T > ~16 switch to lax.fori_loop(..., unroll=4/8) with the
    # gate tensor kept in a VMEM scratch and pl.ds row indexing.
    for i in range(T):
        tb = T - 1 - i
        # split per-direction recurrent matmuls (no zero-padded block-diag)
        gf = gx3[i, :, :H4] + jnp.dot(hf.astype(jnp.bfloat16), whh_f,
                                      preferred_element_type=jnp.float32)
        gb = gx3[tb, :, H4:] + jnp.dot(hb.astype(jnp.bfloat16), whh_b,
                                       preferred_element_type=jnp.float32)
        hf_new, cf = lstm_update(gf, cf)
        hb_new, cb_new = lstm_update(gb, cb)

        vf = m1[i] > 0.0                   # (TB, 1) per-row valid flags
        vb = m1[tb] > 0.0
        # fwd: invalid steps only follow valid ones -> no state freeze needed
        hf = hf_new
        # bwd: invalid steps precede valid ones -> keep the zero initial state
        hb = jnp.where(vb, hb_new, hb)
        cb = jnp.where(vb, cb_new, cb)
        # pad_packed_sequence -> zero outputs at padded steps
        hf_scr[i] = jnp.where(vf, hf_new, 0.0)
        hb_scr[tb] = jnp.where(vb, hb_new, 0.0)

    hf_all = hf_scr[...].reshape(T * TB, H)
    hb_all = hb_scr[...].reshape(T * TB, H)
    h2 = jnp.concatenate([hf_all, hb_all], axis=-1)        # (T*TB, 2H)

    mask1 = m1.reshape(T * TB, 1)

    # bilstm_out = tanh(hi(out_rnn) * mask1)
    bil = jnp.tanh((jnp.dot(h2.astype(jnp.bfloat16), whi_ref[...],
                            preferred_element_type=jnp.float32)
                    + bhi_ref[...]) * mask1)               # (T*TB, 2H)

    # attn_weights: Linear(2H,1) as VPU multiply + lane reduce (no N=1 MXU)
    aw = jnp.sum(bil * waw_ref[...], axis=-1, keepdims=True) + baw_ref[...]
    aw = jnp.tanh(aw * mask1)

    # energy: Linear(1,1), masked; word-level soft attention, normalized
    energy = (aw * we_ref[...] + be_ref[...]) * mask1
    soft = jax.nn.sigmoid(energy)                          # (T*TB, 1)
    soft3 = soft.reshape(T, TB, 1)
    denom = jnp.sum(soft3, axis=0, keepdims=True)          # (1, TB, 1)
    # epsilon only protects all-padded batch rows (discarded by the wrapper)
    soft3 = soft3 / jnp.maximum(denom, jnp.float32(1e-20))
    soft = soft3.reshape(T * TB, 1)
    soft_ref[...] = soft.reshape(1, T * TB, 1)

    # sentence aggregation: one matmul against the per-tile block-diagonal
    # grouping matrix (built on host); zeros implement the original masking.
    word_attn = bil * soft                                 # (T*TB, 2H)
    hs = jnp.dot(agg_ref[0], word_attn,
                 preferred_element_type=jnp.float32)       # (Ss*TB, 2H)

    # attn_s = softmax(tanh(Us(h_s)) * mask2) over sentences (per batch row)
    us = jnp.sum(hs * wus_ref[...], axis=-1, keepdims=True)
    a_s = jnp.tanh(us) * m2.reshape(Ss * TB, 1)
    a_s3 = a_s.reshape(Ss, TB, 1)
    a_s3 = a_s3 - jnp.max(a_s3, axis=0, keepdims=True)
    e_s = jnp.exp(a_s3)
    a_s3 = e_s / jnp.sum(e_s, axis=0, keepdims=True)       # (Ss, TB, 1)

    # attn = bmm(h_s^T, attn_s) -> (TB, 2H); fc head
    hs3 = hs.reshape(Ss, TB, 2 * H)
    attn_vec = jnp.sum(hs3 * a_s3, axis=0)                 # (TB, 2H)
    out_ref[...] = (jnp.dot(attn_vec, wfc_ref[...],
                            preferred_element_type=jnp.float32)
                    + bfc_ref[...])


# ----------------------------------------------------------------------------
# Wrapper
# ----------------------------------------------------------------------------
def fused_forward(emb_tbe, agg_big, mask1, mask2, params):
    T, B_pad, E = emb_tbe.shape
    G = B_pad // TILE_B
    Ss = mask2.shape[0]
    C = params['wfc'].shape[1]
    H = params['whh_f'].shape[0]
    TT = T * TILE_B

    vmem = pl.BlockSpec(memory_space=pltpu.MemorySpace.VMEM)

    out, soft = pl.pallas_call(
        fused_rnn_attn_kernel,
        grid=(G,),
        in_specs=[
            pl.BlockSpec((T, TILE_B, 1), lambda g: (0, g, 0)),        # mask1
            pl.BlockSpec((Ss, TILE_B, 1), lambda g: (0, g, 0)),       # mask2
            pl.BlockSpec((T, TILE_B, E), lambda g: (0, g, 0)),        # embeds
            pl.BlockSpec((1, Ss * TILE_B, TT), lambda g: (g, 0, 0)),  # agg
            vmem, vmem, vmem, vmem,        # wih_cat, whh_f, whh_b, b_cat
            vmem, vmem,                    # whi, bhi
            vmem, vmem, vmem, vmem,        # waw_row, baw, we, be
            vmem, vmem, vmem,              # wus_row, wfc, bfc
        ],
        out_specs=(
            pl.BlockSpec((TILE_B, C), lambda g: (g, 0)),
            pl.BlockSpec((1, TT, 1), lambda g: (g, 0, 0)),
        ),
        out_shape=(jax.ShapeDtypeStruct((B_pad, C), jnp.float32),
                   jax.ShapeDtypeStruct((G, TT, 1), jnp.float32)),
        scratch_shapes=[pltpu.VMEM((T, TILE_B, H), jnp.float32),
                        pltpu.VMEM((T, TILE_B, H), jnp.float32)],
        compiler_params=pltpu.CompilerParams(
            dimension_semantics=("parallel",)),
    )(mask1, mask2, emb_tbe, agg_big,
      params['wih_cat'], params['whh_f'], params['whh_b'], params['b_cat'],
      params['whi'], params['bhi'],
      params['waw_row'], params['baw'], params['we'], params['be'],
      params['wus_row'], params['wfc'], params['bfc'])

    # undo the (t-major, b-minor) packing of soft in XLA (tiny output)
    soft = soft.reshape(G, T, TILE_B).transpose(0, 2, 1).reshape(B_pad, T)
    return out, soft


def build_masks(seq_lengths, leng_lengths, T, Ss, B_pad):
    """Valid-step masks (1.0 / -1e7), precomputed in XLA, padded to B_pad."""
    B = seq_lengths.shape[0]
    seq_p = jnp.zeros((B_pad,), jnp.int32).at[:B].set(
        seq_lengths.astype(jnp.int32))
    leng_p = jnp.zeros((B_pad,), jnp.int32).at[:B].set(
        leng_lengths.astype(jnp.int32))
    t = jnp.arange(T, dtype=jnp.int32)
    s = jnp.arange(Ss, dtype=jnp.int32)
    mask1 = jnp.where(t[:, None] < seq_p[None, :], 1.0,
                      NEG_MASK).astype(jnp.float32)[:, :, None]   # (T,B_pad,1)
    mask2 = jnp.where(s[:, None] < leng_p[None, :], 1.0,
                      NEG_MASK).astype(jnp.float32)[:, :, None]   # (Ss,B_pad,1)
    return mask1, mask2


def build_agg_big(leng_np, T, B_pad):
    """Vectorized (numpy) replacement for the reference's Python sentence
    grouping loop.  Produces a per-tile block-diagonal aggregation matrix
    agg_big[g, s*TILE_B+b, t*TILE_B+b] = 1 if word t belongs to sentence s of
    batch row g*TILE_B+b.  Build once per batch and cache.
    TODO(synk): vocab.itos string decode of `leng` has no JAX equivalent;
    `leng` is taken directly as integer sentence lengths (0 == '<pad>'/'<unk>')."""
    B, Ss = leng_np.shape
    L = leng_np.astype(np.int64)
    stop = np.cumsum(L == 0, axis=1) > 0              # at/after first zero
    Lv = np.where(stop, 0, L)
    # start_s = sum_{k<s} L_k + (s-1 words of gap for s>=1), as in the reference
    starts = (np.cumsum(Lv, axis=1) - Lv
              + np.maximum(np.arange(Ss)[None, :] - 1, 0))
    ends = starts + Lv
    t = np.arange(T)[None, None, :]
    agg = ((t >= starts[:, :, None]) & (t < ends[:, :, None])).astype(np.float32)

    G = B_pad // TILE_B
    aggp = np.zeros((B_pad, Ss, T), np.float32)
    aggp[:B] = agg
    aggp = aggp.reshape(G, TILE_B, Ss, T)
    big = np.zeros((G, Ss, TILE_B, T, TILE_B), np.float32)
    bidx = np.arange(TILE_B)
    big[:, :, bidx, :, bidx] = aggp.transpose(1, 0, 2, 3)
    return jnp.asarray(big.reshape(G, Ss * TILE_B, T * TILE_B))


def rnn_attn_forward(params, x_ids, seq_lengths, leng_np, leng_lengths):
    """Forward pass of RNN.forward_rnn_attn (bi-LSTM + 2-level attn + fc)."""
    B, T = x_ids.shape
    Ss = leng_np.shape[1]
    G = (B + TILE_B - 1) // TILE_B        # on v7x size B so that G >= 2
    B_pad = G * TILE_B

    # embedding lookup (padding_idx=0 row is zero) + dropout(p=0) == identity
    emb = params['embedding'][x_ids]                          # (B, T, E)
    emb = jnp.pad(emb, ((0, B_pad - B), (0, 0), (0, 0)))
    emb_tbe = jnp.transpose(emb, (1, 0, 2))                   # (T, B_pad, E)

    mask1, mask2 = build_masks(seq_lengths, leng_lengths, T, Ss, B_pad)
    agg_big = build_agg_big(np.asarray(leng_np), T, B_pad)

    out, soft = fused_forward(emb_tbe, agg_big, mask1, mask2, params)
    return out[:B], soft[:B]


# ----------------------------------------------------------------------------
# Parameter construction / packing
# ----------------------------------------------------------------------------
def init_params(key, V, E, H, C):
    ks = jax.random.split(key, 16)
    s = 0.1
    emb = jax.random.normal(ks[0], (V, E), jnp.float32) * s
    emb = emb.at[0].set(0.0)                     # padding_idx = 0

    # Per-direction LSTM weights, pre-transposed for x @ W, gate columns in
    # [i | f | o | g] order.
    # TODO(synk): a real torch.nn.LSTM checkpoint uses gate order [i,f,g,o]
    # and separate b_ih/b_hh; reorder the blocks and sum the biases on import.
    wih_f = jax.random.normal(ks[1], (E, 4 * H), jnp.float32) * s
    whh_f = jax.random.normal(ks[2], (H, 4 * H), jnp.float32) * s
    b_f = jax.random.normal(ks[3], (1, 4 * H), jnp.float32) * s
    wih_b = jax.random.normal(ks[4], (E, 4 * H), jnp.float32) * s
    whh_b = jax.random.normal(ks[5], (H, 4 * H), jnp.float32) * s
    b_b = jax.random.normal(ks[6], (1, 4 * H), jnp.float32) * s

    bf16 = jnp.bfloat16
    return {
        'embedding': emb,
        # MXU operands stored in bf16 (v6e/v7x native; f32 accumulation)
        'wih_cat': jnp.concatenate([wih_f, wih_b], axis=-1).astype(bf16),
        'whh_f': whh_f.astype(bf16),
        'whh_b': whh_b.astype(bf16),
        'b_cat': jnp.concatenate([b_f, b_b], axis=-1),            # (1, 8H) f32
        # hi: Linear(2H, 2H)
        'whi': (jax.random.normal(ks[7], (2 * H, 2 * H), jnp.float32) * s
                ).astype(bf16),
        'bhi': jax.random.normal(ks[8], (1, 2 * H), jnp.float32) * s,
        # attn_weights: Linear(2H, 1)   (weight kept as a (1, 2H) row)
        'waw_row': jax.random.normal(ks[9], (1, 2 * H), jnp.float32) * s,
        'baw': jax.random.normal(ks[10], (1, 1), jnp.float32) * s,
        # energy: Linear(1, 1)
        'we': jax.random.normal(ks[11], (1, 1), jnp.float32) * s,
        'be': jax.random.normal(ks[12], (1, 1), jnp.float32) * s,
        # Us: Linear(2H, 1, bias=False)
        'wus_row': jax.random.normal(ks[13], (1, 2 * H), jnp.float32) * s,
        # fc: Linear(2H, C)
        'wfc': jax.random.normal(ks[14], (2 * H, C), jnp.float32) * s,
        'bfc': jax.random.normal(ks[15], (1, C), jnp.float32) * s,
    }


if __name__ == "__main__":
    B, T, E, H, V, C, Ss = 2, 8, 16, 32, 50, 4, 4

    key = jax.random.PRNGKey(0)
    pkey, xkey = jax.random.split(key)
    params = init_params(pkey, V, E, H, C)

    # token ids (pad id 0 at padded tail positions), lengths sorted descending
    seq_lengths_np = np.array([8, 6], dtype=np.int32)
    x_rand = np.array(jax.random.randint(xkey, (B, T), 1, V), dtype=np.int32)
    valid = np.arange(T)[None, :] < seq_lengths_np[:, None]
    x_np = np.where(valid, x_rand, 0).astype(np.int32)

    x_ids = jnp.asarray(x_np)
    seq_lengths = jnp.asarray(seq_lengths_np)

    # sentence lengths per batch (integer form of `leng`) and #sentences
    leng_np = np.array([[3, 2, 2, 0],
                        [2, 2, 0, 0]], dtype=np.int32)        # (B, Ss)
    leng_lengths = jnp.asarray(np.array([3, 2], dtype=np.int32))

    out, soft_attn = rnn_attn_forward(params, x_ids, seq_lengths,
                                      leng_np, leng_lengths)
    out = jax.block_until_ready(out)
    soft_attn = jax.block_until_ready(soft_attn)

    assert out.shape == (B, C)
    assert soft_attn.shape == (B, T)
    assert bool(jnp.all(jnp.isfinite(out)))
    assert bool(jnp.all(jnp.isfinite(soft_attn)))
    print("KERNEL_OK")
</pallas_src>

<mosaic_0001>
module attributes {stable_mosaic.version = 11 : i64} {
  func.func @fused_rnn_attn_kernel(%arg0: i32, %arg1: memref<8x8x1xf32, #tpu.memory_space<vmem>>, %arg2: memref<4x8x1xf32, #tpu.memory_space<vmem>>, %arg3: memref<8x8x16xf32, #tpu.memory_space<vmem>>, %arg4: memref<1x32x64xf32, #tpu.memory_space<vmem>>, %arg5: memref<16x256xbf16, #tpu.memory_space<vmem>>, %arg6: memref<32x128xbf16, #tpu.memory_space<vmem>>, %arg7: memref<32x128xbf16, #tpu.memory_space<vmem>>, %arg8: memref<1x256xf32, #tpu.memory_space<vmem>>, %arg9: memref<64x64xbf16, #tpu.memory_space<vmem>>, %arg10: memref<1x64xf32, #tpu.memory_space<vmem>>, %arg11: memref<1x64xf32, #tpu.memory_space<vmem>>, %arg12: memref<1x1xf32, #tpu.memory_space<vmem>>, %arg13: memref<1x1xf32, #tpu.memory_space<vmem>>, %arg14: memref<1x1xf32, #tpu.memory_space<vmem>>, %arg15: memref<1x64xf32, #tpu.memory_space<vmem>>, %arg16: memref<64x4xf32, #tpu.memory_space<vmem>>, %arg17: memref<1x4xf32, #tpu.memory_space<vmem>>, %arg18: memref<8x4xf32, #tpu.memory_space<vmem>>, %arg19: memref<1x64x1xf32, #tpu.memory_space<vmem>>, %arg20: memref<8x8x32xf32, #tpu.memory_space<vmem>>, %arg21: memref<8x8x32xf32, #tpu.memory_space<vmem>>) attributes {dimension_semantics = [#tpu.dimension_semantics<parallel>], iteration_bounds = array<i64: 1>, scalar_prefetch = 0 : i64, scratch_operands = 2 : i64, tpu.core_type = #tpu.core_type<tc>, window_params = [{transform_indices = @transform_0, window_bounds = array<i64: 8, 8, 1>}, {transform_indices = @transform_1, window_bounds = array<i64: 4, 8, 1>}, {transform_indices = @transform_2, window_bounds = array<i64: 8, 8, 16>}, {transform_indices = @transform_3, window_bounds = array<i64: 1, 32, 64>}, {pipeline_mode = #tpu.pipeline_mode<synchronous>, transform_indices = @transform_4, window_bounds = array<i64: 16, 256>}, {pipeline_mode = #tpu.pipeline_mode<synchronous>, transform_indices = @transform_5, window_bounds = array<i64: 32, 128>}, {pipeline_mode = #tpu.pipeline_mode<synchronous>, transform_indices = @transform_6, window_bounds = array<i64: 32, 128>}, {pipeline_mode = #tpu.pipeline_mode<synchronous>, transform_indices = @transform_7, window_bounds = array<i64: 1, 256>}, {pipeline_mode = #tpu.pipeline_mode<synchronous>, transform_indices = @transform_8, window_bounds = array<i64: 64, 64>}, {pipeline_mode = #tpu.pipeline_mode<synchronous>, transform_indices = @transform_9, window_bounds = array<i64: 1, 64>}, {pipeline_mode = #tpu.pipeline_mode<synchronous>, transform_indices = @transform_10, window_bounds = array<i64: 1, 64>}, {pipeline_mode = #tpu.pipeline_mode<synchronous>, transform_indices = @transform_11, window_bounds = array<i64: 1, 1>}, {pipeline_mode = #tpu.pipeline_mode<synchronous>, transform_indices = @transform_12, window_bounds = array<i64: 1, 1>}, {pipeline_mode = #tpu.pipeline_mode<synchronous>, transform_indices = @transform_13, window_bounds = array<i64: 1, 1>}, {pipeline_mode = #tpu.pipeline_mode<synchronous>, transform_indices = @transform_14, window_bounds = array<i64: 1, 64>}, {pipeline_mode = #tpu.pipeline_mode<synchronous>, transform_indices = @transform_15, window_bounds = array<i64: 64, 4>}, {pipeline_mode = #tpu.pipeline_mode<synchronous>, transform_indices = @transform_16, window_bounds = array<i64: 1, 4>}, {transform_indices = @transform_17, window_bounds = array<i64: 8, 4>}, {transform_indices = @transform_18, window_bounds = array<i64: 1, 64, 1>}]} {
    %c0 = arith.constant 0 : index
    %c0_0 = arith.constant 0 : index
    %c0_1 = arith.constant 0 : index
    %0 = vector.load %arg1[%c0, %c0_0, %c0_1] : memref<8x8x1xf32, #tpu.memory_space<vmem>>, vector<8x8x1xf32>
    %c0_2 = arith.constant 0 : index
    %c0_3 = arith.constant 0 : index
    %c0_4 = arith.constant 0 : index
    %1 = vector.load %arg2[%c0_2, %c0_3, %c0_4] : memref<4x8x1xf32, #tpu.memory_space<vmem>>, vector<4x8x1xf32>
    %c0_5 = arith.constant 0 : index
    %c0_6 = arith.constant 0 : index
    %c0_7 = arith.constant 0 : index
    %2 = vector.load %arg3[%c0_5, %c0_6, %c0_7] : memref<8x8x16xf32, #tpu.memory_space<vmem>>, vector<8x8x16xf32>
    %3 = vector.shape_cast %2 : vector<8x8x16xf32> to vector<64x16xf32>
    %4 = arith.truncf %3 : vector<64x16xf32> to vector<64x16xbf16>
    %c0_8 = arith.constant 0 : index
    %c0_9 = arith.constant 0 : index
    %5 = vector.load %arg5[%c0_8, %c0_9] : memref<16x256xbf16, #tpu.memory_space<vmem>>, vector<16x256xbf16>
    %cst = arith.constant dense<0.000000e+00> : vector<64x256xf32>
    %6 = tpu.matmul %4, %5, %cst {dimension_numbers = #tpu.dot_dimension_numbers<[1], [0], [0], [1], [0, 0, 1, 1], [], []>} : vector<64x16xbf16>, vector<16x256xbf16>, vector<64x256xf32> -> vector<64x256xf32>
    %c0_10 = arith.constant 0 : index
    %c0_11 = arith.constant 0 : index
    %7 = vector.load %arg8[%c0_10, %c0_11] : memref<1x256xf32, #tpu.memory_space<vmem>>, vector<1x256xf32>
    %8 = vector.broadcast %7 : vector<1x256xf32> to vector<64x256xf32>
    %9 = arith.addf %6, %8 : vector<64x256xf32>
    %10 = vector.shape_cast %9 : vector<64x256xf32> to vector<8x8x256xf32>
    %c0_12 = arith.constant 0 : index
    %c0_13 = arith.constant 0 : index
    %11 = vector.load %arg6[%c0_12, %c0_13] : memref<32x128xbf16, #tpu.memory_space<vmem>>, vector<32x128xbf16>
    %c0_14 = arith.constant 0 : index
    %c0_15 = arith.constant 0 : index
    %12 = vector.load %arg7[%c0_14, %c0_15] : memref<32x128xbf16, #tpu.memory_space<vmem>>, vector<32x128xbf16>
    %cst_16 = arith.constant 0.000000e+00 : f32
    %13 = vector.broadcast %cst_16 : f32 to vector<8x32xf32>
    %cst_17 = arith.constant 0.000000e+00 : f32
    %14 = vector.broadcast %cst_17 : f32 to vector<8x32xf32>
    %cst_18 = arith.constant 0.000000e+00 : f32
    %15 = vector.broadcast %cst_18 : f32 to vector<8x32xf32>
    %cst_19 = arith.constant 0.000000e+00 : f32
    %16 = vector.broadcast %cst_19 : f32 to vector<8x32xf32>
    %17 = vector.extract_strided_slice %10 {offsets = [0, 0, 0], sizes = [1, 8, 128], strides = [1, 1, 1]} : vector<8x8x256xf32> to vector<1x8x128xf32>
    %18 = vector.shape_cast %17 : vector<1x8x128xf32> to vector<8x128xf32>
    %19 = arith.truncf %13 : vector<8x32xf32> to vector<8x32xbf16>
    %cst_20 = arith.constant dense<0.000000e+00> : vector<8x128xf32>
    %20 = tpu.matmul %19, %11, %cst_20 {dimension_numbers = #tpu.dot_dimension_numbers<[1], [0], [0], [1], [0, 0, 1, 1], [], []>} : vector<8x32xbf16>, vector<32x128xbf16>, vector<8x128xf32> -> vector<8x128xf32>
    %21 = arith.addf %18, %20 : vector<8x128xf32>
    %22 = vector.extract_strided_slice %10 {offsets = [7, 0, 128], sizes = [1, 8, 128], strides = [1, 1, 1]} : vector<8x8x256xf32> to vector<1x8x128xf32>
    %23 = vector.shape_cast %22 : vector<1x8x128xf32> to vector<8x128xf32>
    %24 = arith.truncf %15 : vector<8x32xf32> to vector<8x32xbf16>
    %cst_21 = arith.constant dense<0.000000e+00> : vector<8x128xf32>
    %25 = tpu.matmul %24, %12, %cst_21 {dimension_numbers = #tpu.dot_dimension_numbers<[1], [0], [0], [1], [0, 0, 1, 1], [], []>} : vector<8x32xbf16>, vector<32x128xbf16>, vector<8x128xf32> -> vector<8x128xf32>
    %26 = arith.addf %23, %25 : vector<8x128xf32>
    %27 = vector.extract_strided_slice %21 {offsets = [0, 0], sizes = [8, 96], strides = [1, 1]} : vector<8x128xf32> to vector<8x96xf32>
    %28 = arith.negf %27 : vector<8x96xf32>
    %29 = math.exp %28 : vector<8x96xf32>
    %cst_22 = arith.constant 1.000000e+00 : f32
    %30 = vector.broadcast %cst_22 : f32 to vector<8x96xf32>
    %31 = arith.addf %30, %29 : vector<8x96xf32>
    %32 = arith.divf %30, %31 : vector<8x96xf32>
    %33 = vector.extract_strided_slice %21 {offsets = [0, 96], sizes = [8, 32], strides = [1, 1]} : vector<8x128xf32> to vector<8x32xf32>
    %34 = math.tanh %33 : vector<8x32xf32>
    %35 = vector.extract_strided_slice %32 {offsets = [0, 32], sizes = [8, 32], strides = [1, 1]} : vector<8x96xf32> to vector<8x32xf32>
    %36 = arith.mulf %35, %14 : vector<8x32xf32>
    %37 = vector.extract_strided_slice %32 {offsets = [0, 0], sizes = [8, 32], strides = [1, 1]} : vector<8x96xf32> to vector<8x32xf32>
    %38 = arith.mulf %37, %34 : vector<8x32xf32>
    %39 = arith.addf %36, %38 : vector<8x32xf32>
    %40 = vector.extract_strided_slice %32 {offsets = [0, 64], sizes = [8, 32], strides = [1, 1]} : vector<8x96xf32> to vector<8x32xf32>
    %41 = math.tanh %39 : vector<8x32xf32>
    %42 = arith.mulf %40, %41 : vector<8x32xf32>
    %43 = vector.extract_strided_slice %26 {offsets = [0, 0], sizes = [8, 96], strides = [1, 1]} : vector<8x128xf32> to vector<8x96xf32>
    %44 = arith.negf %43 : vector<8x96xf32>
    %45 = math.exp %44 : vector<8x96xf32>
    %cst_23 = arith.constant 1.000000e+00 : f32
    %46 = vector.broadcast %cst_23 : f32 to vector<8x96xf32>
    %47 = arith.addf %46, %45 : vector<8x96xf32>
    %48 = arith.divf %46, %47 : vector<8x96xf32>
    %49 = vector.extract_strided_slice %26 {offsets = [0, 96], sizes = [8, 32], strides = [1, 1]} : vector<8x128xf32> to vector<8x32xf32>
    %50 = math.tanh %49 : vector<8x32xf32>
    %51 = vector.extract_strided_slice %48 {offsets = [0, 32], sizes = [8, 32], strides = [1, 1]} : vector<8x96xf32> to vector<8x32xf32>
    %52 = arith.mulf %51, %16 : vector<8x32xf32>
    %53 = vector.extract_strided_slice %48 {offsets = [0, 0], sizes = [8, 32], strides = [1, 1]} : vector<8x96xf32> to vector<8x32xf32>
    %54 = arith.mulf %53, %50 : vector<8x32xf32>
    %55 = arith.addf %52, %54 : vector<8x32xf32>
    %56 = vector.extract_strided_slice %48 {offsets = [0, 64], sizes = [8, 32], strides = [1, 1]} : vector<8x96xf32> to vector<8x32xf32>
    %57 = math.tanh %55 : vector<8x32xf32>
    %58 = arith.mulf %56, %57 : vector<8x32xf32>
    %59 = vector.extract_strided_slice %0 {offsets = [0, 0, 0], sizes = [1, 8, 1], strides = [1, 1, 1]} : vector<8x8x1xf32> to vector<1x8x1xf32>
    %60 = vector.shape_cast %59 : vector<1x8x1xf32> to vector<8x1xf32>
    %cst_24 = arith.constant 0.000000e+00 : f32
    %61 = vector.broadcast %cst_24 : f32 to vector<8x1xf32>
    %62 = arith.cmpf ogt, %60, %61 : vector<8x1xf32>
    %63 = vector.extract_strided_slice %0 {offsets = [7, 0, 0], sizes = [1, 8, 1], strides = [1, 1, 1]} : vector<8x8x1xf32> to vector<1x8x1xf32>
    %64 = vector.shape_cast %63 : vector<1x8x1xf32> to vector<8x1xf32>
    %cst_25 = arith.constant 0.000000e+00 : f32
    %65 = vector.broadcast %cst_25 : f32 to vector<8x1xf32>
    %66 = arith.cmpf ogt, %64, %65 : vector<8x1xf32>
    %67 = vector.shape_cast %66 : vector<8x1xi1> to vector<8x1xi1>
    %68 = vector.broadcast %67 : vector<8x1xi1> to vector<8x32xi1>
    %69 = arith.select %68, %58, %15 : vector<8x32xi1>, vector<8x32xf32>
    %70 = vector.shape_cast %66 : vector<8x1xi1> to vector<8x1xi1>
    %71 = vector.broadcast %70 : vector<8x1xi1> to vector<8x32xi1>
    %72 = arith.select %71, %55, %16 : vector<8x32xi1>, vector<8x32xf32>
    %cst_26 = arith.constant 0.000000e+00 : f32
    %73 = vector.shape_cast %62 : vector<8x1xi1> to vector<8x1xi1>
    %74 = vector.broadcast %73 : vector<8x1xi1> to vector<8x32xi1>
    %75 = vector.broadcast %cst_26 : f32 to vector<8x32xf32>
    %76 = arith.select %74, %42, %75 : vector<8x32xi1>, vector<8x32xf32>
    %c0_27 = arith.constant 0 : index
    %c0_28 = arith.constant 0 : index
    %c0_29 = arith.constant 0 : index
    %77 = vector.load %arg20[%c0_27, %c0_28, %c0_29] : memref<8x8x32xf32, #tpu.memory_space<vmem>>, vector<1x8x32xf32>
    %78 = vector.shape_cast %77 : vector<1x8x32xf32> to vector<8x32xf32>
    %79 = vector.shape_cast %76 : vector<8x32xf32> to vector<1x8x32xf32>
    tpu.vector_store %arg20[%c0_27, %c0_28, %c0_29], %79 {strides = array<i32>} : memref<8x8x32xf32, #tpu.memory_space<vmem>>, vector<1x8x32xf32>,
    %cst_30 = arith.constant 0.000000e+00 : f32
    %80 = vector.shape_cast %66 : vector<8x1xi1> to vector<8x1xi1>
    %81 = vector.broadcast %80 : vector<8x1xi1> to vector<8x32xi1>
    %82 = vector.broadcast %cst_30 : f32 to vector<8x32xf32>
    %83 = arith.select %81, %58, %82 : vector<8x32xi1>, vector<8x32xf32>
    %c7 = arith.constant 7 : index
    %c0_31 = arith.constant 0 : index
    %c0_32 = arith.constant 0 : index
    %84 = vector.load %arg21[%c7, %c0_31, %c0_32] : memref<8x8x32xf32, #tpu.memory_space<vmem>>, vector<1x8x32xf32>
    %85 = vector.shape_cast %84 : vector<1x8x32xf32> to vector<8x32xf32>
    %86 = vector.shape_cast %83 : vector<8x32xf32> to vector<1x8x32xf32>
    tpu.vector_store %arg21[%c7, %c0_31, %c0_32], %86 {strides = array<i32>} : memref<8x8x32xf32, #tpu.memory_space<vmem>>, vector<1x8x32xf32>,
    %87 = vector.extract_strided_slice %10 {offsets = [1, 0, 0], sizes = [1, 8, 128], strides = [1, 1, 1]} : vector<8x8x256xf32> to vector<1x8x128xf32>
    %88 = vector.shape_cast %87 : vector<1x8x128xf32> to vector<8x128xf32>
    %89 = arith.truncf %42 : vector<8x32xf32> to vector<8x32xbf16>
    %cst_33 = arith.constant dense<0.000000e+00> : vector<8x128xf32>
    %90 = tpu.matmul %89, %11, %cst_33 {dimension_numbers = #tpu.dot_dimension_numbers<[1], [0], [0], [1], [0, 0, 1, 1], [], []>} : vector<8x32xbf16>, vector<32x128xbf16>, vector<8x128xf32> -> vector<8x128xf32>
    %91 = arith.addf %88, %90 : vector<8x128xf32>
    %92 = vector.extract_strided_slice %10 {offsets = [6, 0, 128], sizes = [1, 8, 128], strides = [1, 1, 1]} : vector<8x8x256xf32> to vector<1x8x128xf32>
    %93 = vector.shape_cast %92 : vector<1x8x128xf32> to vector<8x128xf32>
    %94 = arith.truncf %69 : vector<8x32xf32> to vector<8x32xbf16>
    %cst_34 = arith.constant dense<0.000000e+00> : vector<8x128xf32>
    %95 = tpu.matmul %94, %12, %cst_34 {dimension_numbers = #tpu.dot_dimension_numbers<[1], [0], [0], [1], [0, 0, 1, 1], [], []>} : vector<8x32xbf16>, vector<32x128xbf16>, vector<8x128xf32> -> vector<8x128xf32>
    %96 = arith.addf %93, %95 : vector<8x128xf32>
    %97 = vector.extract_strided_slice %91 {offsets = [0, 0], sizes = [8, 96], strides = [1, 1]} : vector<8x128xf32> to vector<8x96xf32>
    %98 = arith.negf %97 : vector<8x96xf32>
    %99 = math.exp %98 : vector<8x96xf32>
    %cst_35 = arith.constant 1.000000e+00 : f32
    %100 = vector.broadcast %cst_35 : f32 to vector<8x96xf32>
    %101 = arith.addf %100, %99 : vector<8x96xf32>
    %102 = arith.divf %100, %101 : vector<8x96xf32>
    %103 = vector.extract_strided_slice %91 {offsets = [0, 96], sizes = [8, 32], strides = [1, 1]} : vector<8x128xf32> to vector<8x32xf32>
    %104 = math.tanh %103 : vector<8x32xf32>
    %105 = vector.extract_strided_slice %102 {offsets = [0, 32], sizes = [8, 32], strides = [1, 1]} : vector<8x96xf32> to vector<8x32xf32>
    %106 = arith.mulf %105, %39 : vector<8x32xf32>
    %107 = vector.extract_strided_slice %102 {offsets = [0, 0], sizes = [8, 32], strides = [1, 1]} : vector<8x96xf32> to vector<8x32xf32>
    %108 = arith.mulf %107, %104 : vector<8x32xf32>
    %109 = arith.addf %106, %108 : vector<8x32xf32>
    %110 = vector.extract_strided_slice %102 {offsets = [0, 64], sizes = [8, 32], strides = [1, 1]} : vector<8x96xf32> to vector<8x32xf32>
    %111 = math.tanh %109 : vector<8x32xf32>
    %112 = arith.mulf %110, %111 : vector<8x32xf32>
    %113 = vector.extract_strided_slice %96 {offsets = [0, 0], sizes = [8, 96], strides = [1, 1]} : vector<8x128xf32> to vector<8x96xf32>
    %114 = arith.negf %113 : vector<8x96xf32>
    %115 = math.exp %114 : vector<8x96xf32>
    %cst_36 = arith.constant 1.000000e+00 : f32
    %116 = vector.broadcast %cst_36 : f32 to vector<8x96xf32>
    %117 = arith.addf %116, %115 : vector<8x96xf32>
    %118 = arith.divf %116, %117 : vector<8x96xf32>
    %119 = vector.extract_strided_slice %96 {offsets = [0, 96], sizes = [8, 32], strides = [1, 1]} : vector<8x128xf32> to vector<8x32xf32>
    %120 = math.tanh %119 : vector<8x32xf32>
    %121 = vector.extract_strided_slice %118 {offsets = [0, 32], sizes = [8, 32], strides = [1, 1]} : vector<8x96xf32> to vector<8x32xf32>
    %122 = arith.mulf %121, %72 : vector<8x32xf32>
    %123 = vector.extract_strided_slice %118 {offsets = [0, 0], sizes = [8, 32], strides = [1, 1]} : vector<8x96xf32> to vector<8x32xf32>
    %124 = arith.mulf %123, %120 : vector<8x32xf32>
    %125 = arith.addf %122, %124 : vector<8x32xf32>
    %126 = vector.extract_strided_slice %118 {offsets = [0, 64], sizes = [8, 32], strides = [1, 1]} : vector<8x96xf32> to vector<8x32xf32>
    %127 = math.tanh %125 : vector<8x32xf32>
    %128 = arith.mulf %126, %127 : vector<8x32xf32>
    %129 = vector.extract_strided_slice %0 {offsets = [1, 0, 0], sizes = [1, 8, 1], strides = [1, 1, 1]} : vector<8x8x1xf32> to vector<1x8x1xf32>
    %130 = vector.shape_cast %129 : vector<1x8x1xf32> to vector<8x1xf32>
    %cst_37 = arith.constant 0.000000e+00 : f32
    %131 = vector.broadcast %cst_37 : f32 to vector<8x1xf32>
    %132 = arith.cmpf ogt, %130, %131 : vector<8x1xf32>
    %133 = vector.extract_strided_slice %0 {offsets = [6, 0, 0], sizes = [1, 8, 1], strides = [1, 1, 1]} : vector<8x8x1xf32> to vector<1x8x1xf32>
    %134 = vector.shape_cast %133 : vector<1x8x1xf32> to vector<8x1xf32>
    %cst_38 = arith.constant 0.000000e+00 : f32
    %135 = vector.broadcast %cst_38 : f32 to vector<8x1xf32>
    %136 = arith.cmpf ogt, %134, %135 : vector<8x1xf32>
    %137 = vector.shape_cast %136 : vector<8x1xi1> to vector<8x1xi1>
    %138 = vector.broadcast %137 : vector<8x1xi1> to vector<8x32xi1>
    %139 = arith.select %138, %128, %69 : vector<8x32xi1>, vector<8x32xf32>
    %140 = vector.shape_cast %136 : vector<8x1xi1> to vector<8x1xi1>
    %141 = vector.broadcast %140 : vector<8x1xi1> to vector<8x32xi1>
    %142 = arith.select %141, %125, %72 : vector<8x32xi1>, vector<8x32xf32>
    %cst_39 = arith.constant 0.000000e+00 : f32
    %143 = vector.shape_cast %132 : vector<8x1xi1> to vector<8x1xi1>
    %144 = vector.broadcast %143 : vector<8x1xi1> to vector<8x32xi1>
    %145 = vector.broadcast %cst_39 : f32 to vector<8x32xf32>
    %146 = arith.select %144, %112, %145 : vector<8x32xi1>, vector<8x32xf32>
    %c1 = arith.constant 1 : index
    %c0_40 = arith.constant 0 : index
    %c0_41 = arith.constant 0 : index
    %147 = vector.load %arg20[%c1, %c0_40, %c0_41] : memref<8x8x32xf32, #tpu.memory_space<vmem>>, vector<1x8x32xf32>
    %148 = vector.shape_cast %147 : vector<1x8x32xf32> to vector<8x32xf32>
    %149 = vector.shape_cast %146 : vector<8x32xf32> to vector<1x8x32xf32>
    tpu.vector_store %arg20[%c1, %c0_40, %c0_41], %149 {strides = array<i32>} : memref<8x8x32xf32, #tpu.memory_space<vmem>>, vector<1x8x32xf32>,
    %cst_42 = arith.constant 0.000000e+00 : f32
    %150 = vector.shape_cast %136 : vector<8x1xi1> to vector<8x1xi1>
    %151 = vector.broadcast %150 : vector<8x1xi1> to vector<8x32xi1>
    %152 = vector.broadcast %cst_42 : f32 to vector<8x32xf32>
    %153 = arith.select %151, %128, %152 : vector<8x32xi1>, vector<8x32xf32>
    %c6 = arith.constant 6 : index
    %c0_43 = arith.constant 0 : index
    %c0_44 = arith.constant 0 : index
    %154 = vector.load %arg21[%c6, %c0_43, %c0_44] : memref<8x8x32xf32, #tpu.memory_space<vmem>>, vector<1x8x32xf32>
    %155 = vector.shape_cast %154 : vector<1x8x32xf32> to vector<8x32xf32>
    %156 = vector.shape_cast %153 : vector<8x32xf32> to vector<1x8x32xf32>
    tpu.vector_store %arg21[%c6, %c0_43, %c0_44], %156 {strides = array<i32>} : memref<8x8x32xf32, #tpu.memory_space<vmem>>, vector<1x8x32xf32>,
    %157 = vector.extract_strided_slice %10 {offsets = [2, 0, 0], sizes = [1, 8, 128], strides = [1, 1, 1]} : vector<8x8x256xf32> to vector<1x8x128xf32>
    %158 = vector.shape_cast %157 : vector<1x8x128xf32> to vector<8x128xf32>
    %159 = arith.truncf %112 : vector<8x32xf32> to vector<8x32xbf16>
    %cst_45 = arith.constant dense<0.000000e+00> : vector<8x128xf32>
    %160 = tpu.matmul %159, %11, %cst_45 {dimension_numbers = #tpu.dot_dimension_numbers<[1], [0], [0], [1], [0, 0, 1, 1], [], []>} : vector<8x32xbf16>, vector<32x128xbf16>, vector<8x128xf32> -> vector<8x128xf32>
    %161 = arith.addf %158, %160 : vector<8x128xf32>
    %162 = vector.extract_strided_slice %10 {offsets = [5, 0, 128], sizes = [1, 8, 128], strides = [1, 1, 1]} : vector<8x8x256xf32> to vector<1x8x128xf32>
    %163 = vector.shape_cast %162 : vector<1x8x128xf32> to vector<8x128xf32>
    %164 = arith.truncf %139 : vector<8x32xf32> to vector<8x32xbf16>
    %cst_46 = arith.constant dense<0.000000e+00> : vector<8x128xf32>
    %165 = tpu.matmul %164, %12, %cst_46 {dimension_numbers = #tpu.dot_dimension_numbers<[1], [0], [0], [1], [0, 0, 1, 1], [], []>} : vector<8x32xbf16>, vector<32x128xbf16>, vector<8x128xf32> -> vector<8x128xf32>
    %166 = arith.addf %163, %165 : vector<8x128xf32>
    %167 = vector.extract_strided_slice %161 {offsets = [0, 0], sizes = [8, 96], strides = [1, 1]} : vector<8x128xf32> to vector<8x96xf32>
    %168 = arith.negf %167 : vector<8x96xf32>
    %169 = math.exp %168 : vector<8x96xf32>
    %cst_47 = arith.constant 1.000000e+00 : f32
    %170 = vector.broadcast %cst_47 : f32 to vector<8x96xf32>
    %171 = arith.addf %170, %169 : vector<8x96xf32>
    %172 = arith.divf %170, %171 : vector<8x96xf32>
    %173 = vector.extract_strided_slice %161 {offsets = [0, 96], sizes = [8, 32], strides = [1, 1]} : vector<8x128xf32> to vector<8x32xf32>
    %174 = math.tanh %173 : vector<8x32xf32>
    %175 = vector.extract_strided_slice %172 {offsets = [0, 32], sizes = [8, 32], strides = [1, 1]} : vector<8x96xf32> to vector<8x32xf32>
    %176 = arith.mulf %175, %109 : vector<8x32xf32>
    %177 = vector.extract_strided_slice %172 {offsets = [0, 0], sizes = [8, 32], strides = [1, 1]} : vector<8x96xf32> to vector<8x32xf32>
    %178 = arith.mulf %177, %174 : vector<8x32xf32>
    %179 = arith.addf %176, %178 : vector<8x32xf32>
    %180 = vector.extract_strided_slice %172 {offsets = [0, 64], sizes = [8, 32], strides = [1, 1]} : vector<8x96xf32> to vector<8x32xf32>
    %181 = math.tanh %179 : vector<8x32xf32>
    %182 = arith.mulf %180, %181 : vector<8x32xf32>
    %183 = vector.extract_strided_slice %166 {offsets = [0, 0], sizes = [8, 96], strides = [1, 1]} : vector<8x128xf32> to vector<8x96xf32>
    %184 = arith.negf %183 : vector<8x96xf32>
    %185 = math.exp %184 : vector<8x96xf32>
    %cst_48 = arith.constant 1.000000e+00 : f32
    %186 = vector.broadcast %cst_48 : f32 to vector<8x96xf32>
    %187 = arith.addf %186, %185 : vector<8x96xf32>
    %188 = arith.divf %186, %187 : vector<8x96xf32>
    %189 = vector.extract_strided_slice %166 {offsets = [0, 96], sizes = [8, 32], strides = [1, 1]} : vector<8x128xf32> to vector<8x32xf32>
    %190 = math.tanh %189 : vector<8x32xf32>
    %191 = vector.extract_strided_slice %188 {offsets = [0, 32], sizes = [8, 32], strides = [1, 1]} : vector<8x96xf32> to vector<8x32xf32>
    %192 = arith.mulf %191, %142 : vector<8x32xf32>
    %193 = vector.extract_strided_slice %188 {offsets = [0, 0], sizes = [8, 32], strides = [1, 1]} : vector<8x96xf32> to vector<8x32xf32>
    %194 = arith.mulf %193, %190 : vector<8x32xf32>
    %195 = arith.addf %192, %194 : vector<8x32xf32>
    %196 = vector.extract_strided_slice %188 {offsets = [0, 64], sizes = [8, 32], strides = [1, 1]} : vector<8x96xf32> to vector<8x32xf32>
    %197 = math.tanh %195 : vector<8x32xf32>
    %198 = arith.mulf %196, %197 : vector<8x32xf32>
    %199 = vector.extract_strided_slice %0 {offsets = [2, 0, 0], sizes = [1, 8, 1], strides = [1, 1, 1]} : vector<8x8x1xf32> to vector<1x8x1xf32>
    %200 = vector.shape_cast %199 : vector<1x8x1xf32> to vector<8x1xf32>
    %cst_49 = arith.constant 0.000000e+00 : f32
    %201 = vector.broadcast %cst_49 : f32 to vector<8x1xf32>
    %202 = arith.cmpf ogt, %200, %201 : vector<8x1xf32>
    %203 = vector.extract_strided_slice %0 {offsets = [5, 0, 0], sizes = [1, 8, 1], strides = [1, 1, 1]} : vector<8x8x1xf32> to vector<1x8x1xf32>
    %204 = vector.shape_cast %203 : vector<1x8x1xf32> to vector<8x1xf32>
    %cst_50 = arith.constant 0.000000e+00 : f32
    %205 = vector.broadcast %cst_50 : f32 to vector<8x1xf32>
    %206 = arith.cmpf ogt, %204, %205 : vector<8x1xf32>
    %207 = vector.shape_cast %206 : vector<8x1xi1> to vector<8x1xi1>
    %208 = vector.broadcast %207 : vector<8x1xi1> to vector<8x32xi1>
    %209 = arith.select %208, %198, %139 : vector<8x32xi1>, vector<8x32xf32>
    %210 = vector.shape_cast %206 : vector<8x1xi1> to vector<8x1xi1>
    %211 = vector.broadcast %210 : vector<8x1xi1> to vector<8x32xi1>
    %212 = arith.select %211, %195, %142 : vector<8x32xi1>, vector<8x32xf32>
    %cst_51 = arith.constant 0.000000e+00 : f32
    %213 = vector.shape_cast %202 : vector<8x1xi1> to vector<8x1xi1>
    %214 = vector.broadcast %213 : vector<8x1xi1> to vector<8x32xi1>
    %215 = vector.broadcast %cst_51 : f32 to vector<8x32xf32>
    %216 = arith.select %214, %182, %215 : vector<8x32xi1>, vector<8x32xf32>
    %c2 = arith.constant 2 : index
    %c0_52 = arith.constant 0 : index
    %c0_53 = arith.constant 0 : index
    %217 = vector.load %arg20[%c2, %c0_52, %c0_53] : memref<8x8x32xf32, #tpu.memory_space<vmem>>, vector<1x8x32xf32>
    %218 = vector.shape_cast %217 : vector<1x8x32xf32> to vector<8x32xf32>
    %219 = vector.shape_cast %216 : vector<8x32xf32> to vector<1x8x32xf32>
    tpu.vector_store %arg20[%c2, %c0_52, %c0_53], %219 {strides = array<i32>} : memref<8x8x32xf32, #tpu.memory_space<vmem>>, vector<1x8x32xf32>,
    %cst_54 = arith.constant 0.000000e+00 : f32
    %220 = vector.shape_cast %206 : vector<8x1xi1> to vector<8x1xi1>
    %221 = vector.broadcast %220 : vector<8x1xi1> to vector<8x32xi1>
    %222 = vector.broadcast %cst_54 : f32 to vector<8x32xf32>
    %223 = arith.select %221, %198, %222 : vector<8x32xi1>, vector<8x32xf32>
    %c5 = arith.constant 5 : index
    %c0_55 = arith.constant 0 : index
    %c0_56 = arith.constant 0 : index
    %224 = vector.load %arg21[%c5, %c0_55, %c0_56] : memref<8x8x32xf32, #tpu.memory_space<vmem>>, vector<1x8x32xf32>
    %225 = vector.shape_cast %224 : vector<1x8x32xf32> to vector<8x32xf32>
    %226 = vector.shape_cast %223 : vector<8x32xf32> to vector<1x8x32xf32>
    tpu.vector_store %arg21[%c5, %c0_55, %c0_56], %226 {strides = array<i32>} : memref<8x8x32xf32, #tpu.memory_space<vmem>>, vector<1x8x32xf32>,
    %227 = vector.extract_strided_slice %10 {offsets = [3, 0, 0], sizes = [1, 8, 128], strides = [1, 1, 1]} : vector<8x8x256xf32> to vector<1x8x128xf32>
    %228 = vector.shape_cast %227 : vector<1x8x128xf32> to vector<8x128xf32>
    %229 = arith.truncf %182 : vector<8x32xf32> to vector<8x32xbf16>
    %cst_57 = arith.constant dense<0.000000e+00> : vector<8x128xf32>
    %230 = tpu.matmul %229, %11, %cst_57 {dimension_numbers = #tpu.dot_dimension_numbers<[1], [0], [0], [1], [0, 0, 1, 1], [], []>} : vector<8x32xbf16>, vector<32x128xbf16>, vector<8x128xf32> -> vector<8x128xf32>
    %231 = arith.addf %228, %230 : vector<8x128xf32>
    %232 = vector.extract_strided_slice %10 {offsets = [4, 0, 128], sizes = [1, 8, 128], strides = [1, 1, 1]} : vector<8x8x256xf32> to vector<1x8x128xf32>
    %233 = vector.shape_cast %232 : vector<1x8x128xf32> to vector<8x128xf32>
    %234 = arith.truncf %209 : vector<8x32xf32> to vector<8x32xbf16>
    %cst_58 = arith.constant dense<0.000000e+00> : vector<8x128xf32>
    %235 = tpu.matmul %234, %12, %cst_58 {dimension_numbers = #tpu.dot_dimension_numbers<[1], [0], [0], [1], [0, 0, 1, 1], [], []>} : vector<8x32xbf16>, vector<32x128xbf16>, vector<8x128xf32> -> vector<8x128xf32>
    %236 = arith.addf %233, %235 : vector<8x128xf32>
    %237 = vector.extract_strided_slice %231 {offsets = [0, 0], sizes = [8, 96], strides = [1, 1]} : vector<8x128xf32> to vector<8x96xf32>
    %238 = arith.negf %237 : vector<8x96xf32>
    %239 = math.exp %238 : vector<8x96xf32>
    %cst_59 = arith.constant 1.000000e+00 : f32
    %240 = vector.broadcast %cst_59 : f32 to vector<8x96xf32>
    %241 = arith.addf %240, %239 : vector<8x96xf32>
    %242 = arith.divf %240, %241 : vector<8x96xf32>
    %243 = vector.extract_strided_slice %231 {offsets = [0, 96], sizes = [8, 32], strides = [1, 1]} : vector<8x128xf32> to vector<8x32xf32>
    %244 = math.tanh %243 : vector<8x32xf32>
    %245 = vector.extract_strided_slice %242 {offsets = [0, 32], sizes = [8, 32], strides = [1, 1]} : vector<8x96xf32> to vector<8x32xf32>
    %246 = arith.mulf %245, %179 : vector<8x32xf32>
    %247 = vector.extract_strided_slice %242 {offsets = [0, 0], sizes = [8, 32], strides = [1, 1]} : vector<8x96xf32> to vector<8x32xf32>
    %248 = arith.mulf %247, %244 : vector<8x32xf32>
    %249 = arith.addf %246, %248 : vector<8x32xf32>
    %250 = vector.extract_strided_slice %242 {offsets = [0, 64], sizes = [8, 32], strides = [1, 1]} : vector<8x96xf32> to vector<8x32xf32>
    %251 = math.tanh %249 : vector<8x32xf32>
    %252 = arith.mulf %250, %251 : vector<8x32xf32>
    %253 = vector.extract_strided_slice %236 {offsets = [0, 0], sizes = [8, 96], strides = [1, 1]} : vector<8x128xf32> to vector<8x96xf32>
    %254 = arith.negf %253 : vector<8x96xf32>
    %255 = math.exp %254 : vector<8x96xf32>
    %cst_60 = arith.constant 1.000000e+00 : f32
    %256 = vector.broadcast %cst_60 : f32 to vector<8x96xf32>
    %257 = arith.addf %256, %255 : vector<8x96xf32>
    %258 = arith.divf %256, %257 : vector<8x96xf32>
    %259 = vector.extract_strided_slice %236 {offsets = [0, 96], sizes = [8, 32], strides = [1, 1]} : vector<8x128xf32> to vector<8x32xf32>
    %260 = math.tanh %259 : vector<8x32xf32>
    %261 = vector.extract_strided_slice %258 {offsets = [0, 32], sizes = [8, 32], strides = [1, 1]} : vector<8x96xf32> to vector<8x32xf32>
    %262 = arith.mulf %261, %212 : vector<8x32xf32>
    %263 = vector.extract_strided_slice %258 {offsets = [0, 0], sizes = [8, 32], strides = [1, 1]} : vector<8x96xf32> to vector<8x32xf32>
    %264 = arith.mulf %263, %260 : vector<8x32xf32>
    %265 = arith.addf %262, %264 : vector<8x32xf32>
    %266 = vector.extract_strided_slice %258 {offsets = [0, 64], sizes = [8, 32], strides = [1, 1]} : vector<8x96xf32> to vector<8x32xf32>
    %267 = math.tanh %265 : vector<8x32xf32>
    %268 = arith.mulf %266, %267 : vector<8x32xf32>
    %269 = vector.extract_strided_slice %0 {offsets = [3, 0, 0], sizes = [1, 8, 1], strides = [1, 1, 1]} : vector<8x8x1xf32> to vector<1x8x1xf32>
    %270 = vector.shape_cast %269 : vector<1x8x1xf32> to vector<8x1xf32>
    %cst_61 = arith.constant 0.000000e+00 : f32
    %271 = vector.broadcast %cst_61 : f32 to vector<8x1xf32>
    %272 = arith.cmpf ogt, %270, %271 : vector<8x1xf32>
    %273 = vector.extract_strided_slice %0 {offsets = [4, 0, 0], sizes = [1, 8, 1], strides = [1, 1, 1]} : vector<8x8x1xf32> to vector<1x8x1xf32>
    %274 = vector.shape_cast %273 : vector<1x8x1xf32> to vector<8x1xf32>
    %cst_62 = arith.constant 0.000000e+00 : f32
    %275 = vector.broadcast %cst_62 : f32 to vector<8x1xf32>
    %276 = arith.cmpf ogt, %274, %275 : vector<8x1xf32>
    %277 = vector.shape_cast %276 : vector<8x1xi1> to vector<8x1xi1>
    %278 = vector.broadcast %277 : vector<8x1xi1> to vector<8x32xi1>
    %279 = arith.select %278, %268, %209 : vector<8x32xi1>, vector<8x32xf32>
    %280 = vector.shape_cast %276 : vector<8x1xi1> to vector<8x1xi1>
    %281 = vector.broadcast %280 : vector<8x1xi1> to vector<8x32xi1>
    %282 = arith.select %281, %265, %212 : vector<8x32xi1>, vector<8x32xf32>
    %cst_63 = arith.constant 0.000000e+00 : f32
    %283 = vector.shape_cast %272 : vector<8x1xi1> to vector<8x1xi1>
    %284 = vector.broadcast %283 : vector<8x1xi1> to vector<8x32xi1>
    %285 = vector.broadcast %cst_63 : f32 to vector<8x32xf32>
    %286 = arith.select %284, %252, %285 : vector<8x32xi1>, vector<8x32xf32>
    %c3 = arith.constant 3 : index
    %c0_64 = arith.constant 0 : index
    %c0_65 = arith.constant 0 : index
    %287 = vector.load %arg20[%c3, %c0_64, %c0_65] : memref<8x8x32xf32, #tpu.memory_space<vmem>>, vector<1x8x32xf32>
    %288 = vector.shape_cast %287 : vector<1x8x32xf32> to vector<8x32xf32>
    %289 = vector.shape_cast %286 : vector<8x32xf32> to vector<1x8x32xf32>
    tpu.vector_store %arg20[%c3, %c0_64, %c0_65], %289 {strides = array<i32>} : memref<8x8x32xf32, #tpu.memory_space<vmem>>, vector<1x8x32xf32>,
    %cst_66 = arith.constant 0.000000e+00 : f32
    %290 = vector.shape_cast %276 : vector<8x1xi1> to vector<8x1xi1>
    %291 = vector.broadcast %290 : vector<8x1xi1> to vector<8x32xi1>
    %292 = vector.broadcast %cst_66 : f32 to vector<8x32xf32>
    %293 = arith.select %291, %268, %292 : vector<8x32xi1>, vector<8x32xf32>
    %c4 = arith.constant 4 : index
    %c0_67 = arith.constant 0 : index
    %c0_68 = arith.constant 0 : index
    %294 = vector.load %arg21[%c4, %c0_67, %c0_68] : memref<8x8x32xf32, #tpu.memory_space<vmem>>, vector<1x8x32xf32>
    %295 = vector.shape_cast %294 : vector<1x8x32xf32> to vector<8x32xf32>
    %296 = vector.shape_cast %293 : vector<8x32xf32> to vector<1x8x32xf32>
    tpu.vector_store %arg21[%c4, %c0_67, %c0_68], %296 {strides = array<i32>} : memref<8x8x32xf32, #tpu.memory_space<vmem>>, vector<1x8x32xf32>,
    %297 = vector.extract_strided_slice %10 {offsets = [4, 0, 0], sizes = [1, 8, 128], strides = [1, 1, 1]} : vector<8x8x256xf32> to vector<1x8x128xf32>
    %298 = vector.shape_cast %297 : vector<1x8x128xf32> to vector<8x128xf32>
    %299 = arith.truncf %252 : vector<8x32xf32> to vector<8x32xbf16>
    %cst_69 = arith.constant dense<0.000000e+00> : vector<8x128xf32>
    %300 = tpu.matmul %299, %11, %cst_69 {dimension_numbers = #tpu.dot_dimension_numbers<[1], [0], [0], [1], [0, 0, 1, 1], [], []>} : vector<8x32xbf16>, vector<32x128xbf16>, vector<8x128xf32> -> vector<8x128xf32>
    %301 = arith.addf %298, %300 : vector<8x128xf32>
    %302 = vector.extract_strided_slice %10 {offsets = [3, 0, 128], sizes = [1, 8, 128], strides = [1, 1, 1]} : vector<8x8x256xf32> to vector<1x8x128xf32>
    %303 = vector.shape_cast %302 : vector<1x8x128xf32> to vector<8x128xf32>
    %304 = arith.truncf %279 : vector<8x32xf32> to vector<8x32xbf16>
    %cst_70 = arith.constant dense<0.000000e+00> : vector<8x128xf32>
    %305 = tpu.matmul %304, %12, %cst_70 {dimension_numbers = #tpu.dot_dimension_numbers<[1], [0], [0], [1], [0, 0, 1, 1], [], []>} : vector<8x32xbf16>, vector<32x128xbf16>, vector<8x128xf32> -> vector<8x128xf32>
    %306 = arith.addf %303, %305 : vector<8x128xf32>
    %307 = vector.extract_strided_slice %301 {offsets = [0, 0], sizes = [8, 96], strides = [1, 1]} : vector<8x128xf32> to vector<8x96xf32>
    %308 = arith.negf %307 : vector<8x96xf32>
    %309 = math.exp %308 : vector<8x96xf32>
    %cst_71 = arith.constant 1.000000e+00 : f32
    %310 = vector.broadcast %cst_71 : f32 to vector<8x96xf32>
    %311 = arith.addf %310, %309 : vector<8x96xf32>
    %312 = arith.divf %310, %311 : vector<8x96xf32>
    %313 = vector.extract_strided_slice %301 {offsets = [0, 96], sizes = [8, 32], strides = [1, 1]} : vector<8x128xf32> to vector<8x32xf32>
    %314 = math.tanh %313 : vector<8x32xf32>
    %315 = vector.extract_strided_slice %312 {offsets = [0, 32], sizes = [8, 32], strides = [1, 1]} : vector<8x96xf32> to vector<8x32xf32>
    %316 = arith.mulf %315, %249 : vector<8x32xf32>
    %317 = vector.extract_strided_slice %312 {offsets = [0, 0], sizes = [8, 32], strides = [1, 1]} : vector<8x96xf32> to vector<8x32xf32>
    %318 = arith.mulf %317, %314 : vector<8x32xf32>
    %319 = arith.addf %316, %318 : vector<8x32xf32>
    %320 = vector.extract_strided_slice %312 {offsets = [0, 64], sizes = [8, 32], strides = [1, 1]} : vector<8x96xf32> to vector<8x32xf32>
    %321 = math.tanh %319 : vector<8x32xf32>
    %322 = arith.mulf %320, %321 : vector<8x32xf32>
    %323 = vector.extract_strided_slice %306 {offsets = [0, 0], sizes = [8, 96], strides = [1, 1]} : vector<8x128xf32> to vector<8x96xf32>
    %324 = arith.negf %323 : vector<8x96xf32>
    %325 = math.exp %324 : vector<8x96xf32>
    %cst_72 = arith.constant 1.000000e+00 : f32
    %326 = vector.broadcast %cst_72 : f32 to vector<8x96xf32>
    %327 = arith.addf %326, %325 : vector<8x96xf32>
    %328 = arith.divf %326, %327 : vector<8x96xf32>
    %329 = vector.extract_strided_slice %306 {offsets = [0, 96], sizes = [8, 32], strides = [1, 1]} : vector<8x128xf32> to vector<8x32xf32>
    %330 = math.tanh %329 : vector<8x32xf32>
    %331 = vector.extract_strided_slice %328 {offsets = [0, 32], sizes = [8, 32], strides = [1, 1]} : vector<8x96xf32> to vector<8x32xf32>
    %332 = arith.mulf %331, %282 : vector<8x32xf32>
    %333 = vector.extract_strided_slice %328 {offsets = [0, 0], sizes = [8, 32], strides = [1, 1]} : vector<8x96xf32> to vector<8x32xf32>
    %334 = arith.mulf %333, %330 : vector<8x32xf32>
    %335 = arith.addf %332, %334 : vector<8x32xf32>
    %336 = vector.extract_strided_slice %328 {offsets = [0, 64], sizes = [8, 32], strides = [1, 1]} : vector<8x96xf32> to vector<8x32xf32>
    %337 = math.tanh %335 : vector<8x32xf32>
    %338 = arith.mulf %336, %337 : vector<8x32xf32>
    %339 = vector.extract_strided_slice %0 {offsets = [4, 0, 0], sizes = [1, 8, 1], strides = [1, 1, 1]} : vector<8x8x1xf32> to vector<1x8x1xf32>
    %340 = vector.shape_cast %339 : vector<1x8x1xf32> to vector<8x1xf32>
    %cst_73 = arith.constant 0.000000e+00 : f32
    %341 = vector.broadcast %cst_73 : f32 to vector<8x1xf32>
    %342 = arith.cmpf ogt, %340, %341 : vector<8x1xf32>
    %343 = vector.extract_strided_slice %0 {offsets = [3, 0, 0], sizes = [1, 8, 1], strides = [1, 1, 1]} : vector<8x8x1xf32> to vector<1x8x1xf32>
    %344 = vector.shape_cast %343 : vector<1x8x1xf32> to vector<8x1xf32>
    %cst_74 = arith.constant 0.000000e+00 : f32
    %345 = vector.broadcast %cst_74 : f32 to vector<8x1xf32>
    %346 = arith.cmpf ogt, %344, %345 : vector<8x1xf32>
    %347 = vector.shape_cast %346 : vector<8x1xi1> to vector<8x1xi1>
    %348 = vector.broadcast %347 : vector<8x1xi1> to vector<8x32xi1>
    %349 = arith.select %348, %338, %279 : vector<8x32xi1>, vector<8x32xf32>
    %350 = vector.shape_cast %346 : vector<8x1xi1> to vector<8x1xi1>
    %351 = vector.broadcast %350 : vector<8x1xi1> to vector<8x32xi1>
    %352 = arith.select %351, %335, %282 : vector<8x32xi1>, vector<8x32xf32>
    %cst_75 = arith.constant 0.000000e+00 : f32
    %353 = vector.shape_cast %342 : vector<8x1xi1> to vector<8x1xi1>
    %354 = vector.broadcast %353 : vector<8x1xi1> to vector<8x32xi1>
    %355 = vector.broadcast %cst_75 : f32 to vector<8x32xf32>
    %356 = arith.select %354, %322, %355 : vector<8x32xi1>, vector<8x32xf32>
    %c4_76 = arith.constant 4 : index
    %c0_77 = arith.constant 0 : index
    %c0_78 = arith.constant 0 : index
    %357 = vector.load %arg20[%c4_76, %c0_77, %c0_78] : memref<8x8x32xf32, #tpu.memory_space<vmem>>, vector<1x8x32xf32>
    %358 = vector.shape_cast %357 : vector<1x8x32xf32> to vector<8x32xf32>
    %359 = vector.shape_cast %356 : vector<8x32xf32> to vector<1x8x32xf32>
    tpu.vector_store %arg20[%c4_76, %c0_77, %c0_78], %359 {strides = array<i32>} : memref<8x8x32xf32, #tpu.memory_space<vmem>>, vector<1x8x32xf32>,
    %cst_79 = arith.constant 0.000000e+00 : f32
    %360 = vector.shape_cast %346 : vector<8x1xi1> to vector<8x1xi1>
    %361 = vector.broadcast %360 : vector<8x1xi1> to vector<8x32xi1>
    %362 = vector.broadcast %cst_79 : f32 to vector<8x32xf32>
    %363 = arith.select %361, %338, %362 : vector<8x32xi1>, vector<8x32xf32>
    %c3_80 = arith.constant 3 : index
    %c0_81 = arith.constant 0 : index
    %c0_82 = arith.constant 0 : index
    %364 = vector.load %arg21[%c3_80, %c0_81, %c0_82] : memref<8x8x32xf32, #tpu.memory_space<vmem>>, vector<1x8x32xf32>
    %365 = vector.shape_cast %364 : vector<1x8x32xf32> to vector<8x32xf32>
    %366 = vector.shape_cast %363 : vector<8x32xf32> to vector<1x8x32xf32>
    tpu.vector_store %arg21[%c3_80, %c0_81, %c0_82], %366 {strides = array<i32>} : memref<8x8x32xf32, #tpu.memory_space<vmem>>, vector<1x8x32xf32>,
    %367 = vector.extract_strided_slice %10 {offsets = [5, 0, 0], sizes = [1, 8, 128], strides = [1, 1, 1]} : vector<8x8x256xf32> to vector<1x8x128xf32>
    %368 = vector.shape_cast %367 : vector<1x8x128xf32> to vector<8x128xf32>
    %369 = arith.truncf %322 : vector<8x32xf32> to vector<8x32xbf16>
    %cst_83 = arith.constant dense<0.000000e+00> : vector<8x128xf32>
    %370 = tpu.matmul %369, %11, %cst_83 {dimension_numbers = #tpu.dot_dimension_numbers<[1], [0], [0], [1], [0, 0, 1, 1], [], []>} : vector<8x32xbf16>, vector<32x128xbf16>, vector<8x128xf32> -> vector<8x128xf32>
    %371 = arith.addf %368, %370 : vector<8x128xf32>
    %372 = vector.extract_strided_slice %10 {offsets = [2, 0, 128], sizes = [1, 8, 128], strides = [1, 1, 1]} : vector<8x8x256xf32> to vector<1x8x128xf32>
    %373 = vector.shape_cast %372 : vector<1x8x128xf32> to vector<8x128xf32>
    %374 = arith.truncf %349 : vector<8x32xf32> to vector<8x32xbf16>
    %cst_84 = arith.constant dense<0.000000e+00> : vector<8x128xf32>
    %375 = tpu.matmul %374, %12, %cst_84 {dimension_numbers = #tpu.dot_dimension_numbers<[1], [0], [0], [1], [0, 0, 1, 1], [], []>} : vector<8x32xbf16>, vector<32x128xbf16>, vector<8x128xf32> -> vector<8x128xf32>
    %376 = arith.addf %373, %375 : vector<8x128xf32>
    %377 = vector.extract_strided_slice %371 {offsets = [0, 0], sizes = [8, 96], strides = [1, 1]} : vector<8x128xf32> to vector<8x96xf32>
    %378 = arith.negf %377 : vector<8x96xf32>
    %379 = math.exp %378 : vector<8x96xf32>
    %cst_85 = arith.constant 1.000000e+00 : f32
    %380 = vector.broadcast %cst_85 : f32 to vector<8x96xf32>
    %381 = arith.addf %380, %379 : vector<8x96xf32>
    %382 = arith.divf %380, %381 : vector<8x96xf32>
    %383 = vector.extract_strided_slice %371 {offsets = [0, 96], sizes = [8, 32], strides = [1, 1]} : vector<8x128xf32> to vector<8x32xf32>
    %384 = math.tanh %383 : vector<8x32xf32>
    %385 = vector.extract_strided_slice %382 {offsets = [0, 32], sizes = [8, 32], strides = [1, 1]} : vector<8x96xf32> to vector<8x32xf32>
    %386 = arith.mulf %385, %319 : vector<8x32xf32>
    %387 = vector.extract_strided_slice %382 {offsets = [0, 0], sizes = [8, 32], strides = [1, 1]} : vector<8x96xf32> to vector<8x32xf32>
    %388 = arith.mulf %387, %384 : vector<8x32xf32>
    %389 = arith.addf %386, %388 : vector<8x32xf32>
    %390 = vector.extract_strided_slice %382 {offsets = [0, 64], sizes = [8, 32], strides = [1, 1]} : vector<8x96xf32> to vector<8x32xf32>
    %391 = math.tanh %389 : vector<8x32xf32>
    %392 = arith.mulf %390, %391 : vector<8x32xf32>
    %393 = vector.extract_strided_slice %376 {offsets = [0, 0], sizes = [8, 96], strides = [1, 1]} : vector<8x128xf32> to vector<8x96xf32>
    %394 = arith.negf %393 : vector<8x96xf32>
    %395 = math.exp %394 : vector<8x96xf32>
    %cst_86 = arith.constant 1.000000e+00 : f32
    %396 = vector.broadcast %cst_86 : f32 to vector<8x96xf32>
    %397 = arith.addf %396, %395 : vector<8x96xf32>
    %398 = arith.divf %396, %397 : vector<8x96xf32>
    %399 = vector.extract_strided_slice %376 {offsets = [0, 96], sizes = [8, 32], strides = [1, 1]} : vector<8x128xf32> to vector<8x32xf32>
    %400 = math.tanh %399 : vector<8x32xf32>
    %401 = vector.extract_strided_slice %398 {offsets = [0, 32], sizes = [8, 32], strides = [1, 1]} : vector<8x96xf32> to vector<8x32xf32>
    %402 = arith.mulf %401, %352 : vector<8x32xf32>
    %403 = vector.extract_strided_slice %398 {offsets = [0, 0], sizes = [8, 32], strides = [1, 1]} : vector<8x96xf32> to vector<8x32xf32>
    %404 = arith.mulf %403, %400 : vector<8x32xf32>
    %405 = arith.addf %402, %404 : vector<8x32xf32>
    %406 = vector.extract_strided_slice %398 {offsets = [0, 64], sizes = [8, 32], strides = [1, 1]} : vector<8x96xf32> to vector<8x32xf32>
    %407 = math.tanh %405 : vector<8x32xf32>
    %408 = arith.mulf %406, %407 : vector<8x32xf32>
    %409 = vector.extract_strided_slice %0 {offsets = [5, 0, 0], sizes = [1, 8, 1], strides = [1, 1, 1]} : vector<8x8x1xf32> to vector<1x8x1xf32>
    %410 = vector.shape_cast %409 : vector<1x8x1xf32> to vector<8x1xf32>
    %cst_87 = arith.constant 0.000000e+00 : f32
    %411 = vector.broadcast %cst_87 : f32 to vector<8x1xf32>
    %412 = arith.cmpf ogt, %410, %411 : vector<8x1xf32>
    %413 = vector.extract_strided_slice %0 {offsets = [2, 0, 0], sizes = [1, 8, 1], strides = [1, 1, 1]} : vector<8x8x1xf32> to vector<1x8x1xf32>
    %414 = vector.shape_cast %413 : vector<1x8x1xf32> to vector<8x1xf32>
    %cst_88 = arith.constant 0.000000e+00 : f32
    %415 = vector.broadcast %cst_88 : f32 to vector<8x1xf32>
    %416 = arith.cmpf ogt, %414, %415 : vector<8x1xf32>
    %417 = vector.shape_cast %416 : vector<8x1xi1> to vector<8x1xi1>
    %418 = vector.broadcast %417 : vector<8x1xi1> to vector<8x32xi1>
    %419 = arith.select %418, %408, %349 : vector<8x32xi1>, vector<8x32xf32>
    %420 = vector.shape_cast %416 : vector<8x1xi1> to vector<8x1xi1>
    %421 = vector.broadcast %420 : vector<8x1xi1> to vector<8x32xi1>
    %422 = arith.select %421, %405, %352 : vector<8x32xi1>, vector<8x32xf32>
    %cst_89 = arith.constant 0.000000e+00 : f32
    %423 = vector.shape_cast %412 : vector<8x1xi1> to vector<8x1xi1>
    %424 = vector.broadcast %423 : vector<8x1xi1> to vector<8x32xi1>
    %425 = vector.broadcast %cst_89 : f32 to vector<8x32xf32>
    %426 = arith.select %424, %392, %425 : vector<8x32xi1>, vector<8x32xf32>
    %c5_90 = arith.constant 5 : index
    %c0_91 = arith.constant 0 : index
    %c0_92 = arith.constant 0 : index
    %427 = vector.load %arg20[%c5_90, %c0_91, %c0_92] : memref<8x8x32xf32, #tpu.memory_space<vmem>>, vector<1x8x32xf32>
    %428 = vector.shape_cast %427 : vector<1x8x32xf32> to vector<8x32xf32>
    %429 = vector.shape_cast %426 : vector<8x32xf32> to vector<1x8x32xf32>
    tpu.vector_store %arg20[%c5_90, %c0_91, %c0_92], %429 {strides = array<i32>} : memref<8x8x32xf32, #tpu.memory_space<vmem>>, vector<1x8x32xf32>,
    %cst_93 = arith.constant 0.000000e+00 : f32
    %430 = vector.shape_cast %416 : vector<8x1xi1> to vector<8x1xi1>
    %431 = vector.broadcast %430 : vector<8x1xi1> to vector<8x32xi1>
    %432 = vector.broadcast %cst_93 : f32 to vector<8x32xf32>
    %433 = arith.select %431, %408, %432 : vector<8x32xi1>, vector<8x32xf32>
    %c2_94 = arith.constant 2 : index
    %c0_95 = arith.constant 0 : index
    %c0_96 = arith.constant 0 : index
    %434 = vector.load %arg21[%c2_94, %c0_95, %c0_96] : memref<8x8x32xf32, #tpu.memory_space<vmem>>, vector<1x8x32xf32>
    %435 = vector.shape_cast %434 : vector<1x8x32xf32> to vector<8x32xf32>
    %436 = vector.shape_cast %433 : vector<8x32xf32> to vector<1x8x32xf32>
    tpu.vector_store %arg21[%c2_94, %c0_95, %c0_96], %436 {strides = array<i32>} : memref<8x8x32xf32, #tpu.memory_space<vmem>>, vector<1x8x32xf32>,
    %437 = vector.extract_strided_slice %10 {offsets = [6, 0, 0], sizes = [1, 8, 128], strides = [1, 1, 1]} : vector<8x8x256xf32> to vector<1x8x128xf32>
    %438 = vector.shape_cast %437 : vector<1x8x128xf32> to vector<8x128xf32>
    %439 = arith.truncf %392 : vector<8x32xf32> to vector<8x32xbf16>
    %cst_97 = arith.constant dense<0.000000e+00> : vector<8x128xf32>
    %440 = tpu.matmul %439, %11, %cst_97 {dimension_numbers = #tpu.dot_dimension_numbers<[1], [0], [0], [1], [0, 0, 1, 1], [], []>} : vector<8x32xbf16>, vector<32x128xbf16>, vector<8x128xf32> -> vector<8x128xf32>
    %441 = arith.addf %438, %440 : vector<8x128xf32>
    %442 = vector.extract_strided_slice %10 {offsets = [1, 0, 128], sizes = [1, 8, 128], strides = [1, 1, 1]} : vector<8x8x256xf32> to vector<1x8x128xf32>
    %443 = vector.shape_cast %442 : vector<1x8x128xf32> to vector<8x128xf32>
    %444 = arith.truncf %419 : vector<8x32xf32> to vector<8x32xbf16>
    %cst_98 = arith.constant dense<0.000000e+00> : vector<8x128xf32>
    %445 = tpu.matmul %444, %12, %cst_98 {dimension_numbers = #tpu.dot_dimension_numbers<[1], [0], [0], [1], [0, 0, 1, 1], [], []>} : vector<8x32xbf16>, vector<32x128xbf16>, vector<8x128xf32> -> vector<8x128xf32>
    %446 = arith.addf %443, %445 : vector<8x128xf32>
    %447 = vector.extract_strided_slice %441 {offsets = [0, 0], sizes = [8, 96], strides = [1, 1]} : vector<8x128xf32> to vector<8x96xf32>
    %448 = arith.negf %447 : vector<8x96xf32>
    %449 = math.exp %448 : vector<8x96xf32>
    %cst_99 = arith.constant 1.000000e+00 : f32
    %450 = vector.broadcast %cst_99 : f32 to vector<8x96xf32>
    %451 = arith.addf %450, %449 : vector<8x96xf32>
    %452 = arith.divf %450, %451 : vector<8x96xf32>
    %453 = vector.extract_strided_slice %441 {offsets = [0, 96], sizes = [8, 32], strides = [1, 1]} : vector<8x128xf32> to vector<8x32xf32>
    %454 = math.tanh %453 : vector<8x32xf32>
    %455 = vector.extract_strided_slice %452 {offsets = [0, 32], sizes = [8, 32], strides = [1, 1]} : vector<8x96xf32> to vector<8x32xf32>
    %456 = arith.mulf %455, %389 : vector<8x32xf32>
    %457 = vector.extract_strided_slice %452 {offsets = [0, 0], sizes = [8, 32], strides = [1, 1]} : vector<8x96xf32> to vector<8x32xf32>
    %458 = arith.mulf %457, %454 : vector<8x32xf32>
    %459 = arith.addf %456, %458 : vector<8x32xf32>
    %460 = vector.extract_strided_slice %452 {offsets = [0, 64], sizes = [8, 32], strides = [1, 1]} : vector<8x96xf32> to vector<8x32xf32>
    %461 = math.tanh %459 : vector<8x32xf32>
    %462 = arith.mulf %460, %461 : vector<8x32xf32>
    %463 = vector.extract_strided_slice %446 {offsets = [0, 0], sizes = [8, 96], strides = [1, 1]} : vector<8x128xf32> to vector<8x96xf32>
    %464 = arith.negf %463 : vector<8x96xf32>
    %465 = math.exp %464 : vector<8x96xf32>
    %cst_100 = arith.constant 1.000000e+00 : f32
    %466 = vector.broadcast %cst_100 : f32 to vector<8x96xf32>
    %467 = arith.addf %466, %465 : vector<8x96xf32>
    %468 = arith.divf %466, %467 : vector<8x96xf32>
    %469 = vector.extract_strided_slice %446 {offsets = [0, 96], sizes = [8, 32], strides = [1, 1]} : vector<8x128xf32> to vector<8x32xf32>
    %470 = math.tanh %469 : vector<8x32xf32>
    %471 = vector.extract_strided_slice %468 {offsets = [0, 32], sizes = [8, 32], strides = [1, 1]} : vector<8x96xf32> to vector<8x32xf32>
    %472 = arith.mulf %471, %422 : vector<8x32xf32>
    %473 = vector.extract_strided_slice %468 {offsets = [0, 0], sizes = [8, 32], strides = [1, 1]} : vector<8x96xf32> to vector<8x32xf32>
    %474 = arith.mulf %473, %470 : vector<8x32xf32>
    %475 = arith.addf %472, %474 : vector<8x32xf32>
    %476 = vector.extract_strided_slice %468 {offsets = [0, 64], sizes = [8, 32], strides = [1, 1]} : vector<8x96xf32> to vector<8x32xf32>
    %477 = math.tanh %475 : vector<8x32xf32>
    %478 = arith.mulf %476, %477 : vector<8x32xf32>
    %479 = vector.extract_strided_slice %0 {offsets = [6, 0, 0], sizes = [1, 8, 1], strides = [1, 1, 1]} : vector<8x8x1xf32> to vector<1x8x1xf32>
    %480 = vector.shape_cast %479 : vector<1x8x1xf32> to vector<8x1xf32>
    %cst_101 = arith.constant 0.000000e+00 : f32
    %481 = vector.broadcast %cst_101 : f32 to vector<8x1xf32>
    %482 = arith.cmpf ogt, %480, %481 : vector<8x1xf32>
    %483 = vector.extract_strided_slice %0 {offsets = [1, 0, 0], sizes = [1, 8, 1], strides = [1, 1, 1]} : vector<8x8x1xf32> to vector<1x8x1xf32>
    %484 = vector.shape_cast %483 : vector<1x8x1xf32> to vector<8x1xf32>
    %cst_102 = arith.constant 0.000000e+00 : f32
    %485 = vector.broadcast %cst_102 : f32 to vector<8x1xf32>
    %486 = arith.cmpf ogt, %484, %485 : vector<8x1xf32>
    %487 = vector.shape_cast %486 : vector<8x1xi1> to vector<8x1xi1>
    %488 = vector.broadcast %487 : vector<8x1xi1> to vector<8x32xi1>
    %489 = arith.select %488, %478, %419 : vector<8x32xi1>, vector<8x32xf32>
    %490 = vector.shape_cast %486 : vector<8x1xi1> to vector<8x1xi1>
    %491 = vector.broadcast %490 : vector<8x1xi1> to vector<8x32xi1>
    %492 = arith.select %491, %475, %422 : vector<8x32xi1>, vector<8x32xf32>
    %cst_103 = arith.constant 0.000000e+00 : f32
    %493 = vector.shape_cast %482 : vector<8x1xi1> to vector<8x1xi1>
    %494 = vector.broadcast %493 : vector<8x1xi1> to vector<8x32xi1>
    %495 = vector.broadcast %cst_103 : f32 to vector<8x32xf32>
    %496 = arith.select %494, %462, %495 : vector<8x32xi1>, vector<8x32xf32>
    %c6_104 = arith.constant 6 : index
    %c0_105 = arith.constant 0 : index
    %c0_106 = arith.constant 0 : index
    %497 = vector.load %arg20[%c6_104, %c0_105, %c0_106] : memref<8x8x32xf32, #tpu.memory_space<vmem>>, vector<1x8x32xf32>
    %498 = vector.shape_cast %497 : vector<1x8x32xf32> to vector<8x32xf32>
    %499 = vector.shape_cast %496 : vector<8x32xf32> to vector<1x8x32xf32>
    tpu.vector_store %arg20[%c6_104, %c0_105, %c0_106], %499 {strides = array<i32>} : memref<8x8x32xf32, #tpu.memory_space<vmem>>, vector<1x8x32xf32>,
    %cst_107 = arith.constant 0.000000e+00 : f32
    %500 = vector.shape_cast %486 : vector<8x1xi1> to vector<8x1xi1>
    %501 = vector.broadcast %500 : vector<8x1xi1> to vector<8x32xi1>
    %502 = vector.broadcast %cst_107 : f32 to vector<8x32xf32>
    %503 = arith.select %501, %478, %502 : vector<8x32xi1>, vector<8x32xf32>
    %c1_108 = arith.constant 1 : index
    %c0_109 = arith.constant 0 : index
    %c0_110 = arith.constant 0 : index
    %504 = vector.load %arg21[%c1_108, %c0_109, %c0_110] : memref<8x8x32xf32, #tpu.memory_space<vmem>>, vector<1x8x32xf32>
    %505 = vector.shape_cast %504 : vector<1x8x32xf32> to vector<8x32xf32>
    %506 = vector.shape_cast %503 : vector<8x32xf32> to vector<1x8x32xf32>
    tpu.vector_store %arg21[%c1_108, %c0_109, %c0_110], %506 {strides = array<i32>} : memref<8x8x32xf32, #tpu.memory_space<vmem>>, vector<1x8x32xf32>,
    %507 = vector.extract_strided_slice %10 {offsets = [7, 0, 0], sizes = [1, 8, 128], strides = [1, 1, 1]} : vector<8x8x256xf32> to vector<1x8x128xf32>
    %508 = vector.shape_cast %507 : vector<1x8x128xf32> to vector<8x128xf32>
    %509 = arith.truncf %462 : vector<8x32xf32> to vector<8x32xbf16>
    %cst_111 = arith.constant dense<0.000000e+00> : vector<8x128xf32>
    %510 = tpu.matmul %509, %11, %cst_111 {dimension_numbers = #tpu.dot_dimension_numbers<[1], [0], [0], [1], [0, 0, 1, 1], [], []>} : vector<8x32xbf16>, vector<32x128xbf16>, vector<8x128xf32> -> vector<8x128xf32>
    %511 = arith.addf %508, %510 : vector<8x128xf32>
    %512 = vector.extract_strided_slice %10 {offsets = [0, 0, 128], sizes = [1, 8, 128], strides = [1, 1, 1]} : vector<8x8x256xf32> to vector<1x8x128xf32>
    %513 = vector.shape_cast %512 : vector<1x8x128xf32> to vector<8x128xf32>
    %514 = arith.truncf %489 : vector<8x32xf32> to vector<8x32xbf16>
    %cst_112 = arith.constant dense<0.000000e+00> : vector<8x128xf32>
    %515 = tpu.matmul %514, %12, %cst_112 {dimension_numbers = #tpu.dot_dimension_numbers<[1], [0], [0], [1], [0, 0, 1, 1], [], []>} : vector<8x32xbf16>, vector<32x128xbf16>, vector<8x128xf32> -> vector<8x128xf32>
    %516 = arith.addf %513, %515 : vector<8x128xf32>
    %517 = vector.extract_strided_slice %511 {offsets = [0, 0], sizes = [8, 96], strides = [1, 1]} : vector<8x128xf32> to vector<8x96xf32>
    %518 = arith.negf %517 : vector<8x96xf32>
    %519 = math.exp %518 : vector<8x96xf32>
    %cst_113 = arith.constant 1.000000e+00 : f32
    %520 = vector.broadcast %cst_113 : f32 to vector<8x96xf32>
    %521 = arith.addf %520, %519 : vector<8x96xf32>
    %522 = arith.divf %520, %521 : vector<8x96xf32>
    %523 = vector.extract_strided_slice %511 {offsets = [0, 96], sizes = [8, 32], strides = [1, 1]} : vector<8x128xf32> to vector<8x32xf32>
    %524 = math.tanh %523 : vector<8x32xf32>
    %525 = vector.extract_strided_slice %522 {offsets = [0, 32], sizes = [8, 32], strides = [1, 1]} : vector<8x96xf32> to vector<8x32xf32>
    %526 = arith.mulf %525, %459 : vector<8x32xf32>
    %527 = vector.extract_strided_slice %522 {offsets = [0, 0], sizes = [8, 32], strides = [1, 1]} : vector<8x96xf32> to vector<8x32xf32>
    %528 = arith.mulf %527, %524 : vector<8x32xf32>
    %529 = arith.addf %526, %528 : vector<8x32xf32>
    %530 = vector.extract_strided_slice %522 {offsets = [0, 64], sizes = [8, 32], strides = [1, 1]} : vector<8x96xf32> to vector<8x32xf32>
    %531 = math.tanh %529 : vector<8x32xf32>
    %532 = arith.mulf %530, %531 : vector<8x32xf32>
    %533 = vector.extract_strided_slice %516 {offsets = [0, 0], sizes = [8, 96], strides = [1, 1]} : vector<8x128xf32> to vector<8x96xf32>
    %534 = arith.negf %533 : vector<8x96xf32>
    %535 = math.exp %534 : vector<8x96xf32>
    %cst_114 = arith.constant 1.000000e+00 : f32
    %536 = vector.broadcast %cst_114 : f32 to vector<8x96xf32>
    %537 = arith.addf %536, %535 : vector<8x96xf32>
    %538 = arith.divf %536, %537 : vector<8x96xf32>
    %539 = vector.extract_strided_slice %516 {offsets = [0, 96], sizes = [8, 32], strides = [1, 1]} : vector<8x128xf32> to vector<8x32xf32>
    %540 = math.tanh %539 : vector<8x32xf32>
    %541 = vector.extract_strided_slice %538 {offsets = [0, 32], sizes = [8, 32], strides = [1, 1]} : vector<8x96xf32> to vector<8x32xf32>
    %542 = arith.mulf %541, %492 : vector<8x32xf32>
    %543 = vector.extract_strided_slice %538 {offsets = [0, 0], sizes = [8, 32], strides = [1, 1]} : vector<8x96xf32> to vector<8x32xf32>
    %544 = arith.mulf %543, %540 : vector<8x32xf32>
    %545 = arith.addf %542, %544 : vector<8x32xf32>
    %546 = vector.extract_strided_slice %538 {offsets = [0, 64], sizes = [8, 32], strides = [1, 1]} : vector<8x96xf32> to vector<8x32xf32>
    %547 = math.tanh %545 : vector<8x32xf32>
    %548 = arith.mulf %546, %547 : vector<8x32xf32>
    %549 = vector.extract_strided_slice %0 {offsets = [7, 0, 0], sizes = [1, 8, 1], strides = [1, 1, 1]} : vector<8x8x1xf32> to vector<1x8x1xf32>
    %550 = vector.shape_cast %549 : vector<1x8x1xf32> to vector<8x1xf32>
    %cst_115 = arith.constant 0.000000e+00 : f32
    %551 = vector.broadcast %cst_115 : f32 to vector<8x1xf32>
    %552 = arith.cmpf ogt, %550, %551 : vector<8x1xf32>
    %553 = vector.extract_strided_slice %0 {offsets = [0, 0, 0], sizes = [1, 8, 1], strides = [1, 1, 1]} : vector<8x8x1xf32> to vector<1x8x1xf32>
    %554 = vector.shape_cast %553 : vector<1x8x1xf32> to vector<8x1xf32>
    %cst_116 = arith.constant 0.000000e+00 : f32
    %555 = vector.broadcast %cst_116 : f32 to vector<8x1xf32>
    %556 = arith.cmpf ogt, %554, %555 : vector<8x1xf32>
    %cst_117 = arith.constant 0.000000e+00 : f32
    %557 = vector.shape_cast %552 : vector<8x1xi1> to vector<8x1xi1>
    %558 = vector.broadcast %557 : vector<8x1xi1> to vector<8x32xi1>
    %559 = vector.broadcast %cst_117 : f32 to vector<8x32xf32>
    %560 = arith.select %558, %532, %559 : vector<8x32xi1>, vector<8x32xf32>
    %c7_118 = arith.constant 7 : index
    %c0_119 = arith.constant 0 : index
    %c0_120 = arith.constant 0 : index
    %561 = vector.load %arg20[%c7_118, %c0_119, %c0_120] : memref<8x8x32xf32, #tpu.memory_space<vmem>>, vector<1x8x32xf32>
    %562 = vector.shape_cast %561 : vector<1x8x32xf32> to vector<8x32xf32>
    %563 = vector.shape_cast %560 : vector<8x32xf32> to vector<1x8x32xf32>
    tpu.vector_store %arg20[%c7_118, %c0_119, %c0_120], %563 {strides = array<i32>} : memref<8x8x32xf32, #tpu.memory_space<vmem>>, vector<1x8x32xf32>,
    %cst_121 = arith.constant 0.000000e+00 : f32
    %564 = vector.shape_cast %556 : vector<8x1xi1> to vector<8x1xi1>
    %565 = vector.broadcast %564 : vector<8x1xi1> to vector<8x32xi1>
    %566 = vector.broadcast %cst_121 : f32 to vector<8x32xf32>
    %567 = arith.select %565, %548, %566 : vector<8x32xi1>, vector<8x32xf32>
    %c0_122 = arith.constant 0 : index
    %c0_123 = arith.constant 0 : index
    %c0_124 = arith.constant 0 : index
    %568 = vector.load %arg21[%c0_122, %c0_123, %c0_124] : memref<8x8x32xf32, #tpu.memory_space<vmem>>, vector<1x8x32xf32>
    %569 = vector.shape_cast %568 : vector<1x8x32xf32> to vector<8x32xf32>
    %570 = vector.shape_cast %567 : vector<8x32xf32> to vector<1x8x32xf32>
    tpu.vector_store %arg21[%c0_122, %c0_123, %c0_124], %570 {strides = array<i32>} : memref<8x8x32xf32, #tpu.memory_space<vmem>>, vector<1x8x32xf32>,
    %c0_125 = arith.constant 0 : index
    %c0_126 = arith.constant 0 : index
    %c0_127 = arith.constant 0 : index
    %571 = vector.load %arg20[%c0_125, %c0_126, %c0_127] : memref<8x8x32xf32, #tpu.memory_space<vmem>>, vector<8x8x32xf32>
    %572 = vector.shape_cast %571 : vector<8x8x32xf32> to vector<64x32xf32>
    %c0_128 = arith.constant 0 : index
    %c0_129 = arith.constant 0 : index
    %c0_130 = arith.constant 0 : index
    %573 = vector.load %arg21[%c0_128, %c0_129, %c0_130] : memref<8x8x32xf32, #tpu.memory_space<vmem>>, vector<8x8x32xf32>
    %574 = vector.shape_cast %573 : vector<8x8x32xf32> to vector<64x32xf32>
    %575 = tpu.concatenate %572, %574 in 1 : vector<64x32xf32>, vector<64x32xf32> -> vector<64x64xf32>
    %576 = vector.shape_cast %0 : vector<8x8x1xf32> to vector<64x1xf32>
    %577 = arith.truncf %575 : vector<64x64xf32> to vector<64x64xbf16>
    %c0_131 = arith.constant 0 : index
    %c0_132 = arith.constant 0 : index
    %578 = vector.load %arg9[%c0_131, %c0_132] : memref<64x64xbf16, #tpu.memory_space<vmem>>, vector<64x64xbf16>
    %cst_133 = arith.constant dense<0.000000e+00> : vector<64x64xf32>
    %579 = tpu.matmul %577, %578, %cst_133 {dimension_numbers = #tpu.dot_dimension_numbers<[1], [0], [0], [1], [0, 0, 1, 1], [], []>} : vector<64x64xbf16>, vector<64x64xbf16>, vector<64x64xf32> -> vector<64x64xf32>
    %c0_134 = arith.constant 0 : index
    %c0_135 = arith.constant 0 : index
    %580 = vector.load %arg10[%c0_134, %c0_135] : memref<1x64xf32, #tpu.memory_space<vmem>>, vector<1x64xf32>
    %581 = vector.broadcast %580 : vector<1x64xf32> to vector<64x64xf32>
    %582 = arith.addf %579, %581 : vector<64x64xf32>
    %583 = vector.broadcast %576 : vector<64x1xf32> to vector<64x64xf32>
    %584 = arith.mulf %582, %583 : vector<64x64xf32>
    %585 = math.tanh %584 : vector<64x64xf32>
    %c0_136 = arith.constant 0 : index
    %c0_137 = arith.constant 0 : index
    %586 = vector.load %arg11[%c0_136, %c0_137] : memref<1x64xf32, #tpu.memory_space<vmem>>, vector<1x64xf32>
    %587 = vector.broadcast %586 : vector<1x64xf32> to vector<64x64xf32>
    %588 = arith.mulf %585, %587 : vector<64x64xf32>
    %cst_138 = arith.constant dense<0.000000e+00> : vector<64xf32>
    %589 = vector.multi_reduction <add>, %588, %cst_138 [1] : vector<64x64xf32> to vector<64xf32>
    %590 = vector.shape_cast %589 : vector<64xf32> to vector<64x1xf32>
    %c0_139 = arith.constant 0 : index
    %c0_140 = arith.constant 0 : index
    %591 = vector.load %arg12[%c0_139, %c0_140] : memref<1x1xf32, #tpu.memory_space<vmem>>, vector<1x1xf32>
    %592 = vector.broadcast %591 : vector<1x1xf32> to vector<64x1xf32>
    %593 = arith.addf %590, %592 : vector<64x1xf32>
    %594 = arith.mulf %593, %576 : vector<64x1xf32>
    %595 = math.tanh %594 : vector<64x1xf32>
    %c0_141 = arith.constant 0 : index
    %c0_142 = arith.constant 0 : index
    %596 = vector.load %arg13[%c0_141, %c0_142] : memref<1x1xf32, #tpu.memory_space<vmem>>, vector<1x1xf32>
    %597 = vector.broadcast %596 : vector<1x1xf32> to vector<64x1xf32>
    %598 = arith.mulf %595, %597 : vector<64x1xf32>
    %c0_143 = arith.constant 0 : index
    %c0_144 = arith.constant 0 : index
    %599 = vector.load %arg14[%c0_143, %c0_144] : memref<1x1xf32, #tpu.memory_space<vmem>>, vector<1x1xf32>
    %600 = vector.broadcast %599 : vector<1x1xf32> to vector<64x1xf32>
    %601 = arith.addf %598, %600 : vector<64x1xf32>
    %602 = arith.mulf %601, %576 : vector<64x1xf32>
    %603 = arith.negf %602 : vector<64x1xf32>
    %604 = math.exp %603 : vector<64x1xf32>
    %cst_145 = arith.constant 1.000000e+00 : f32
    %605 = vector.broadcast %cst_145 : f32 to vector<64x1xf32>
    %606 = arith.addf %605, %604 : vector<64x1xf32>
    %607 = arith.divf %605, %606 : vector<64x1xf32>
    %608 = vector.shape_cast %607 : vector<64x1xf32> to vector<8x8x1xf32>
    %cst_146 = arith.constant dense<0.000000e+00> : vector<8x1xf32>
    %609 = vector.multi_reduction <add>, %608, %cst_146 [0] : vector<8x8x1xf32> to vector<8x1xf32>
    %610 = vector.shape_cast %609 : vector<8x1xf32> to vector<1x8x1xf32>
    %cst_147 = arith.constant 9.99999968E-21 : f32
    %611 = vector.broadcast %cst_147 : f32 to vector<1x8x1xf32>
    %612 = arith.maximumf %610, %611 : vector<1x8x1xf32>
    %613 = vector.broadcast %612 : vector<1x8x1xf32> to vector<8x8x1xf32>
    %614 = arith.divf %608, %613 : vector<8x8x1xf32>
    %615 = vector.shape_cast %614 : vector<8x8x1xf32> to vector<64x1xf32>
    %616 = vector.shape_cast %615 : vector<64x1xf32> to vector<1x64x1xf32>
    %c0_148 = arith.constant 0 : index
    %c0_149 = arith.constant 0 : index
    %c0_150 = arith.constant 0 : index
    %617 = vector.load %arg19[%c0_148, %c0_149, %c0_150] : memref<1x64x1xf32, #tpu.memory_space<vmem>>, vector<1x64x1xf32>
    tpu.vector_store %arg19[%c0_148, %c0_149, %c0_150], %616 {strides = array<i32>} : memref<1x64x1xf32, #tpu.memory_space<vmem>>, vector<1x64x1xf32>,
    %618 = vector.broadcast %615 : vector<64x1xf32> to vector<64x64xf32>
    %619 = arith.mulf %585, %618 : vector<64x64xf32>
    %c0_151 = arith.constant 0 : index
    %c0_152 = arith.constant 0 : index
    %c0_153 = arith.constant 0 : index
    %620 = vector.load %arg4[%c0_151, %c0_152, %c0_153] : memref<1x32x64xf32, #tpu.memory_space<vmem>>, vector<1x32x64xf32>
    %621 = vector.shape_cast %620 : vector<1x32x64xf32> to vector<32x64xf32>
    %cst_154 = arith.constant dense<0.000000e+00> : vector<32x64xf32>
    %622 = tpu.matmul %621, %619, %cst_154 {dimension_numbers = #tpu.dot_dimension_numbers<[1], [0], [0], [1], [0, 0, 1, 1], [], []>} : vector<32x64xf32>, vector<64x64xf32>, vector<32x64xf32> -> vector<32x64xf32>
    %c0_155 = arith.constant 0 : index
    %c0_156 = arith.constant 0 : index
    %623 = vector.load %arg15[%c0_155, %c0_156] : memref<1x64xf32, #tpu.memory_space<vmem>>, vector<1x64xf32>
    %624 = vector.broadcast %623 : vector<1x64xf32> to vector<32x64xf32>
    %625 = arith.mulf %622, %624 : vector<32x64xf32>
    %cst_157 = arith.constant dense<0.000000e+00> : vector<32xf32>
    %626 = vector.multi_reduction <add>, %625, %cst_157 [1] : vector<32x64xf32> to vector<32xf32>
    %627 = vector.shape_cast %626 : vector<32xf32> to vector<32x1xf32>
    %628 = math.tanh %627 : vector<32x1xf32>
    %629 = vector.shape_cast %1 : vector<4x8x1xf32> to vector<32x1xf32>
    %630 = arith.mulf %628, %629 : vector<32x1xf32>
    %631 = vector.shape_cast %630 : vector<32x1xf32> to vector<4x8x1xf32>
    %cst_158 = arith.constant dense<0xFF800000> : vector<8x1xf32>
    %632 = vector.multi_reduction <maximumf>, %631, %cst_158 [0] : vector<4x8x1xf32> to vector<8x1xf32>
    %633 = vector.shape_cast %632 : vector<8x1xf32> to vector<1x8x1xf32>
    %634 = vector.broadcast %633 : vector<1x8x1xf32> to vector<4x8x1xf32>
    %635 = arith.subf %631, %634 : vector<4x8x1xf32>
    %636 = math.exp %635 : vector<4x8x1xf32>
    %cst_159 = arith.constant dense<0.000000e+00> : vector<8x1xf32>
    %637 = vector.multi_reduction <add>, %636, %cst_159 [0] : vector<4x8x1xf32> to vector<8x1xf32>
    %638 = vector.shape_cast %637 : vector<8x1xf32> to vector<1x8x1xf32>
    %639 = vector.broadcast %638 : vector<1x8x1xf32> to vector<4x8x1xf32>
    %640 = arith.divf %636, %639 : vector<4x8x1xf32>
    %641 = vector.shape_cast %622 : vector<32x64xf32> to vector<4x8x64xf32>
    %642 = vector.broadcast %640 : vector<4x8x1xf32> to vector<4x8x64xf32>
    %643 = arith.mulf %641, %642 : vector<4x8x64xf32>
    %cst_160 = arith.constant dense<0.000000e+00> : vector<8x64xf32>
    %644 = vector.multi_reduction <add>, %643, %cst_160 [0] : vector<4x8x64xf32> to vector<8x64xf32>
    %c0_161 = arith.constant 0 : index
    %c0_162 = arith.constant 0 : index
    %645 = vector.load %arg16[%c0_161, %c0_162] : memref<64x4xf32, #tpu.memory_space<vmem>>, vector<64x4xf32>
    %cst_163 = arith.constant dense<0.000000e+00> : vector<8x4xf32>
    %646 = tpu.matmul %644, %645, %cst_163 {dimension_numbers = #tpu.dot_dimension_numbers<[1], [0], [0], [1], [0, 0, 1, 1], [], []>} : vector<8x64xf32>, vector<64x4xf32>, vector<8x4xf32> -> vector<8x4xf32>
    %c0_164 = arith.constant 0 : index
    %c0_165 = arith.constant 0 : index
    %647 = vector.load %arg17[%c0_164, %c0_165] : memref<1x4xf32, #tpu.memory_space<vmem>>, vector<1x4xf32>
    %648 = vector.broadcast %647 : vector<1x4xf32> to vector<8x4xf32>
    %649 = arith.addf %646, %648 : vector<8x4xf32>
    %c0_166 = arith.constant 0 : index
    %c0_167 = arith.constant 0 : index
    %650 = vector.load %arg18[%c0_166, %c0_167] : memref<8x4xf32, #tpu.memory_space<vmem>>, vector<8x4xf32>
    tpu.vector_store %arg18[%c0_166, %c0_167], %649 {strides = array<i32>} : memref<8x4xf32, #tpu.memory_space<vmem>>, vector<8x4xf32>,
    return
  }
  func.func @transform_0(%arg0: i32) -> (i32, i32, i32) {
    %c0_i32 = arith.constant 0 : i32
    %c0_i32_0 = arith.constant 0 : i32
    %c0_i32_1 = arith.constant 0 : i32
    return %c0_i32, %arg0, %c0_i32_0 : i32, i32, i32
  }
  func.func @transform_1(%arg0: i32) -> (i32, i32, i32) {
    %c0_i32 = arith.constant 0 : i32
    %c0_i32_0 = arith.constant 0 : i32
    %c0_i32_1 = arith.constant 0 : i32
    return %c0_i32, %arg0, %c0_i32_0 : i32, i32, i32
  }
  func.func @transform_2(%arg0: i32) -> (i32, i32, i32) {
    %c0_i32 = arith.constant 0 : i32
    %c0_i32_0 = arith.constant 0 : i32
    %c0_i32_1 = arith.constant 0 : i32
    return %c0_i32, %arg0, %c0_i32_0 : i32, i32, i32
  }
  func.func @transform_3(%arg0: i32) -> (i32, i32, i32) {
    %c0_i32 = arith.constant 0 : i32
    %c0_i32_0 = arith.constant 0 : i32
    %c0_i32_1 = arith.constant 0 : i32
    return %arg0, %c0_i32, %c0_i32_0 : i32, i32, i32
  }
  func.func @transform_4(%arg0: i32) -> (i32, i32) {
    %c0_i32 = arith.constant 0 : i32
    %c0_i32_0 = arith.constant 0 : i32
    %c0_i32_1 = arith.constant 0 : i32
    return %c0_i32, %c0_i32_0 : i32, i32
  }
  func.func @transform_5(%arg0: i32) -> (i32, i32) {
    %c0_i32 = arith.constant 0 : i32
    %c0_i32_0 = arith.constant 0 : i32
    %c0_i32_1 = arith.constant 0 : i32
    return %c0_i32, %c0_i32_0 : i32, i32
  }
  func.func @transform_6(%arg0: i32) -> (i32, i32) {
    %c0_i32 = arith.constant 0 : i32
    %c0_i32_0 = arith.constant 0 : i32
    %c0_i32_1 = arith.constant 0 : i32
    return %c0_i32, %c0_i32_0 : i32, i32
  }
  func.func @transform_7(%arg0: i32) -> (i32, i32) {
    %c0_i32 = arith.constant 0 : i32
    %c0_i32_0 = arith.constant 0 : i32
    %c0_i32_1 = arith.constant 0 : i32
    return %c0_i32, %c0_i32_0 : i32, i32
  }
  func.func @transform_8(%arg0: i32) -> (i32, i32) {
    %c0_i32 = arith.constant 0 : i32
    %c0_i32_0 = arith.constant 0 : i32
    %c0_i32_1 = arith.constant 0 : i32
    return %c0_i32, %c0_i32_0 : i32, i32
  }
  func.func @transform_9(%arg0: i32) -> (i32, i32) {
    %c0_i32 = arith.constant 0 : i32
    %c0_i32_0 = arith.constant 0 : i32
    %c0_i32_1 = arith.constant 0 : i32
    return %c0_i32, %c0_i32_0 : i32, i32
  }
  func.func @transform_10(%arg0: i32) -> (i32, i32) {
    %c0_i32 = arith.constant 0 : i32
    %c0_i32_0 = arith.constant 0 : i32
    %c0_i32_1 = arith.constant 0 : i32
    return %c0_i32, %c0_i32_0 : i32, i32
  }
  func.func @transform_11(%arg0: i32) -> (i32, i32) {
    %c0_i32 = arith.constant 0 : i32
    %c0_i32_0 = arith.constant 0 : i32
    %c0_i32_1 = arith.constant 0 : i32
    return %c0_i32, %c0_i32_0 : i32, i32
  }
  func.func @transform_12(%arg0: i32) -> (i32, i32) {
    %c0_i32 = arith.constant 0 : i32
    %c0_i32_0 = arith.constant 0 : i32
    %c0_i32_1 = arith.constant 0 : i32
    return %c0_i32, %c0_i32_0 : i32, i32
  }
  func.func @transform_13(%arg0: i32) -> (i32, i32) {
    %c0_i32 = arith.constant 0 : i32
    %c0_i32_0 = arith.constant 0 : i32
    %c0_i32_1 = arith.constant 0 : i32
    return %c0_i32, %c0_i32_0 : i32, i32
  }
  func.func @transform_14(%arg0: i32) -> (i32, i32) {
    %c0_i32 = arith.constant 0 : i32
    %c0_i32_0 = arith.constant 0 : i32
    %c0_i32_1 = arith.constant 0 : i32
    return %c0_i32, %c0_i32_0 : i32, i32
  }
  func.func @transform_15(%arg0: i32) -> (i32, i32) {
    %c0_i32 = arith.constant 0 : i32
    %c0_i32_0 = arith.constant 0 : i32
    %c0_i32_1 = arith.constant 0 : i32
    return %c0_i32, %c0_i32_0 : i32, i32
  }
  func.func @transform_16(%arg0: i32) -> (i32, i32) {
    %c0_i32 = arith.constant 0 : i32
    %c0_i32_0 = arith.constant 0 : i32
    %c0_i32_1 = arith.constant 0 : i32
    return %c0_i32, %c0_i32_0 : i32, i32
  }
  func.func @transform_17(%arg0: i32) -> (i32, i32) {
    %c0_i32 = arith.constant 0 : i32
    %c0_i32_0 = arith.constant 0 : i32
    return %arg0, %c0_i32 : i32, i32
  }
  func.func @transform_18(%arg0: i32) -> (i32, i32, i32) {
    %c0_i32 = arith.constant 0 : i32
    %c0_i32_0 = arith.constant 0 : i32
    %c0_i32_1 = arith.constant 0 : i32
    return %arg0, %c0_i32, %c0_i32_0 : i32, i32, i32
  }
}

</mosaic_0001>

<llo_original>
// kernel: tpu_custom_call.1
$region0: #{tpu_custom_call.1}
  #allocation0 [shape = 'u32[]', space=smem, size = 0x4, offset = 0x4, fixed_abs, tag = 'smem constant byte address 0x4 - core index']
  #allocation1 [shape = 'u32[144,128]{1,0:T(1,128)}', space=vmem, size = 0x12000, scoped, tag = 'internal scratch']
  #allocation2 [shape = 'f32[8,8,32]{2,1,0:T(8,128)}', space=vmem, size = 0x8000, scoped, tag = 'scratch operand']
  #allocation3 [shape = 'f32[8,8,32]{2,1,0:T(8,128)}', space=vmem, size = 0x8000, scoped, tag = 'scratch operand']
  #allocation4 [shape = 'f32[1,1]{1,0:T(1,128)S(1)}', space=vmem, size = 0x200, scoped, tag = 'scoped memory for tpu_custom_call.1']
  #allocation5 [shape = 'f32[1,1]{1,0:T(1,128)S(1)}', space=vmem, size = 0x200, scoped, tag = 'scoped memory for tpu_custom_call.1']
  #allocation6 [shape = 'f32[1,1]{1,0:T(1,128)S(1)}', space=vmem, size = 0x200, scoped, tag = 'scoped memory for tpu_custom_call.1']
  %s0 = inlined_call_operand.vmem [shape: f32[8,8,1], index: 0, kind: input, shape index: {}]
  %s1 = inlined_call_operand.vmem [shape: f32[4,8,1], index: 1, kind: input, shape index: {}]
  %s2 = inlined_call_operand.vmem [shape: f32[8,8,16], index: 2, kind: input, shape index: {}]
  %s3 = inlined_call_operand.vmem [shape: f32[1,32,64], index: 3, kind: input, shape index: {}]
  %s4 = inlined_call_operand.vmem [shape: bf16[16,256], index: 4, kind: input, shape index: {}]
  %s5 = inlined_call_operand.vmem [shape: bf16[32,128], index: 5, kind: input, shape index: {}]
  %s6 = inlined_call_operand.vmem [shape: bf16[32,128], index: 6, kind: input, shape index: {}]
  %s7 = inlined_call_operand.vmem [shape: f32[1,256], index: 7, kind: input, shape index: {}]
  %s8 = inlined_call_operand.vmem [shape: bf16[64,64], index: 8, kind: input, shape index: {}]
  %s9 = inlined_call_operand.vmem [shape: f32[1,64], index: 9, kind: input, shape index: {}]
  %s10 = inlined_call_operand.vmem [shape: f32[1,64], index: 10, kind: input, shape index: {}]
  %s11 = inlined_call_operand.<no memory space> [shape: f32[1,1], index: 11, kind: input, shape index: {}]
  %s12 = inlined_call_operand.<no memory space> [shape: f32[1,1], index: 12, kind: input, shape index: {}]
  %s13 = inlined_call_operand.<no memory space> [shape: f32[1,1], index: 13, kind: input, shape index: {}]
  %s14 = inlined_call_operand.vmem [shape: f32[1,64], index: 14, kind: input, shape index: {}]
  %s15 = inlined_call_operand.vmem [shape: f32[64,4], index: 15, kind: input, shape index: {}]
  %s16 = inlined_call_operand.vmem [shape: f32[1,4], index: 16, kind: input, shape index: {}]
  %s17 = inlined_call_operand.vmem [shape: f32[8,4], index: 17, kind: output, shape index: {0}]
  %s18 = inlined_call_operand.vmem [shape: f32[1,64,1], index: 18, kind: output, shape index: {1}]
  %19 = xla_tuple %s17, %s18
  %s20 = sld [smem:[#allocation0]]
  $region86: #{tpu_custom_call.1} parent=0
    _
  %s22 = ssub.s32 1, %s20
  %s23 = scalar_select 0, %s22, %s20
  %v24 = vstv %s11
  %25 = vst [vmem:[#allocation4] sm:$0x1] %v24
  %v26 = vstv %s12
  %27 = vst [vmem:[#allocation5] sm:$0x1] %v26
  %v28 = vstv %s13
  %29 = vst [vmem:[#allocation6] sm:$0x1] %v28
  // Predicated region
  $region2: #{tpu_custom_call.1} parent=0 // pred_check
    _
  $region3: #{tpu_custom_call.1} parent=0 // pred_check_branch
    %31 = sbr.rel (0) target = $region5
  $region4: #{tpu_custom_call.1} parent=0 // pred_region
    _
  $region5: #{tpu_custom_call.1} parent=0 // pred_fallthru
    _
  // Predicated region
  $region6: #{tpu_custom_call.1} parent=0 // pred_check
    _
  $region7: #{tpu_custom_call.1} parent=0 // pred_check_branch
    %33 = sbr.rel (0) target = $region9
  $region8: #{tpu_custom_call.1} parent=0 // pred_region
    _
  $region9: #{tpu_custom_call.1} parent=0 // pred_fallthru
    _
  // Predicated region
  $region10: #{tpu_custom_call.1} parent=0 // pred_check
    _
  $region11: #{tpu_custom_call.1} parent=0 // pred_check_branch
    %35 = sbr.rel (0) target = $region13
  $region12: #{tpu_custom_call.1} parent=0 // pred_region
    _
  $region13: #{tpu_custom_call.1} parent=0 // pred_fallthru
    _
  // Predicated region
  $region14: #{tpu_custom_call.1} parent=0 // pred_check
    _
  $region15: #{tpu_custom_call.1} parent=0 // pred_check_branch
    %37 = sbr.rel (0) target = $region17
  $region16: #{tpu_custom_call.1} parent=0 // pred_region
    _
  $region17: #{tpu_custom_call.1} parent=0 // pred_fallthru
    _
  // Predicated region
  $region18: #{tpu_custom_call.1} parent=0 // pred_check
    _
  $region19: #{tpu_custom_call.1} parent=0 // pred_check_branch
    %39 = sbr.rel (0) target = $region21
  $region20: #{tpu_custom_call.1} parent=0 // pred_region
    _
  $region21: #{tpu_custom_call.1} parent=0 // pred_fallthru
    _
  // Predicated region
  $region22: #{tpu_custom_call.1} parent=0 // pred_check
    _
  $region23: #{tpu_custom_call.1} parent=0 // pred_check_branch
    %41 = sbr.rel (0) target = $region25
  $region24: #{tpu_custom_call.1} parent=0 // pred_region
    _
  $region25: #{tpu_custom_call.1} parent=0 // pred_fallthru
    _
  // Predicated region
  $region26: #{tpu_custom_call.1} parent=0 // pred_check
    _
  $region27: #{tpu_custom_call.1} parent=0 // pred_check_branch
    %43 = sbr.rel (0) target = $region29
  $region28: #{tpu_custom_call.1} parent=0 // pred_region
    _
  $region29: #{tpu_custom_call.1} parent=0 // pred_fallthru
    _
  // Predicated region
  $region30: #{tpu_custom_call.1} parent=0 // pred_check
    _
  $region31: #{tpu_custom_call.1} parent=0 // pred_check_branch
    %45 = sbr.rel (0) target = $region33
  $region32: #{tpu_custom_call.1} parent=0 // pred_region
    _
  $region33: #{tpu_custom_call.1} parent=0 // pred_fallthru
    _
  // Predicated region
  $region34: #{tpu_custom_call.1} parent=0 // pred_check
    _
  $region35: #{tpu_custom_call.1} parent=0 // pred_check_branch
    %47 = sbr.rel (0) target = $region37
  $region36: #{tpu_custom_call.1} parent=0 // pred_region
    _
  $region37: #{tpu_custom_call.1} parent=0 // pred_fallthru
    _
  // Predicated region
  $region38: #{tpu_custom_call.1} parent=0 // pred_check
    _
  $region39: #{tpu_custom_call.1} parent=0 // pred_check_branch
    %49 = sbr.rel (0) target = $region41
  $region40: #{tpu_custom_call.1} parent=0 // pred_region
    _
  $region41: #{tpu_custom_call.1} parent=0 // pred_fallthru
    _
  // Predicated region
  $region42: #{tpu_custom_call.1} parent=0 // pred_check
    _
  $region43: #{tpu_custom_call.1} parent=0 // pred_check_branch
    %51 = sbr.rel (0) target = $region45
  $region44: #{tpu_custom_call.1} parent=0 // pred_region
    _
  $region45: #{tpu_custom_call.1} parent=0 // pred_fallthru
    _
  // Predicated region
  $region46: #{tpu_custom_call.1} parent=0 // pred_check
    _
  $region47: #{tpu_custom_call.1} parent=0 // pred_check_branch
    %53 = sbr.rel (0) target = $region49
  $region48: #{tpu_custom_call.1} parent=0 // pred_region
    _
  $region49: #{tpu_custom_call.1} parent=0 // pred_fallthru
    _
  // Predicated region
  $region50: #{tpu_custom_call.1} parent=0 // pred_check
    _
  $region51: #{tpu_custom_call.1} parent=0 // pred_check_branch
    %55 = sbr.rel (0) target = $region53
  $region52: #{tpu_custom_call.1} parent=0 // pred_region
    _
  $region53: #{tpu_custom_call.1} parent=0 // pred_fallthru
    _
  // Predicated region
  $region54: #{tpu_custom_call.1} parent=0 // pred_check
    _
  $region55: #{tpu_custom_call.1} parent=0 // pred_check_branch
    %57 = sbr.rel (0) target = $region57
  $region56: #{tpu_custom_call.1} parent=0 // pred_region
    _
  $region57: #{tpu_custom_call.1} parent=0 // pred_fallthru
    _
  // Predicated region
  $region58: #{tpu_custom_call.1} parent=0 // pred_check
    _
  $region59: #{tpu_custom_call.1} parent=0 // pred_check_branch
    %59 = sbr.rel (0) target = $region61
  $region60: #{tpu_custom_call.1} parent=0 // pred_region
    _
  $region61: #{tpu_custom_call.1} parent=0 // pred_fallthru
    _
  // Predicated region
  $region62: #{tpu_custom_call.1} parent=0 // pred_check
    _
  $region63: #{tpu_custom_call.1} parent=0 // pred_check_branch
    %61 = sbr.rel (0) target = $region65
  $region64: #{tpu_custom_call.1} parent=0 // pred_region
    _
  $region65: #{tpu_custom_call.1} parent=0 // pred_fallthru
    _
  // Predicated region
  $region66: #{tpu_custom_call.1} parent=0 // pred_check
    _
  $region67: #{tpu_custom_call.1} parent=0 // pred_check_branch
    %63 = sbr.rel (0) target = $region69
  $region68: #{tpu_custom_call.1} parent=0 // pred_region
    _
  $region69: #{tpu_custom_call.1} parent=0 // pred_fallthru
    _
  %v65 = vld [vmem:[%s0] sm:$0xff]
  %v66 = vld [vmem:[%s0 + $0x8] sm:$0xff]
  %v67 = vld [vmem:[%s0 + $0x10] sm:$0xff]
  %v68 = vld [vmem:[%s0 + $0x18] sm:$0xff]
  %v69 = vld [vmem:[%s0 + $0x20] sm:$0xff]
  %v70 = vld [vmem:[%s0 + $0x28] sm:$0xff]
  %v71 = vld [vmem:[%s0 + $0x30] sm:$0xff]
  %v72 = vld [vmem:[%s0 + $0x38] sm:$0xff]
  %v73 = vld [vmem:[%s1] sm:$0xff]
  %v74 = vld [vmem:[%s1 + $0x8] sm:$0xff]
  %v75 = vld [vmem:[%s1 + $0x10] sm:$0xff]
  %v76 = vld [vmem:[%s1 + $0x18] sm:$0xff]
  %v77 = vld [vmem:[%s2] sm:$0xff]
  %v78 = vld [vmem:[%s2 + $0x8] sm:$0xff]
  %v79 = vld [vmem:[%s2 + $0x10] sm:$0xff]
  %v80 = vld [vmem:[%s2 + $0x18] sm:$0xff]
  %v81 = vld [vmem:[%s2 + $0x20] sm:$0xff]
  %v82 = vld [vmem:[%s2 + $0x28] sm:$0xff]
  %v83 = vld [vmem:[%s2 + $0x30] sm:$0xff]
  %v84 = vld [vmem:[%s2 + $0x38] sm:$0xff]
  %v85 = vpack.c.bf16 %v78, %v77
  %v86 = vpack.c.bf16 %v80, %v79
  %v87 = vpack.c.bf16 %v82, %v81
  %v88 = vpack.c.bf16 %v84, %v83
  %v89 = vld [vmem:[%s4] sm:$0xff]
  %v90 = vld [vmem:[%s4 + $0x8] sm:$0xff]
  %v91 = vld [vmem:[%s7] sm:$0x3]
  %v93 = vlaneseq
  %v94 = vshrl.u32 %v93, 7
  %v95 = vsub.s32 0, %v94
  %v96 = vrot.slane %v91, %v95
  %v97 = vlaneseq
  %v98 = vshrl.u32 %v97, 7
  %v99 = vsub.s32 1, %v98
  %v100 = vrot.slane %v91, %v99
  %v105 = vunpack.c.l.b16 %v89
  %v106 = vunpack.c.h.b16 %v89
  %v107 = vunpack.c.l.b16 %v90
  %v108 = vunpack.c.h.b16 %v90
  %v109 = vpack.c.b16 %v107, %v105
  %v110 = vpack.c.b16 %v108, %v106
  %vm113 = vcmask 130048
  %v115 = vsel %vm113, %v85, 0
  %v118 = vsel %vm113, %v86, 0
  %v121 = vsel %vm113, %v87, 0
  %v124 = vsel %vm113, %v88, 0
  %126 = vmatprep.subr.bf16.mxu0 0
  %127 = vmatpush1.bf16.msra.mxu0 0
  %128 = vmatprep.subr.bf16.mxu0 0
  %129 = vmatpush1.bf16.msra.mxu0 0
  %130 = vmatprep.subr.bf16.mxu0 0
  %131 = vmatpush1.bf16.msra.mxu0 0
  %132 = vmatprep.subr.bf16.mxu0 0
  %133 = vmatpush1.bf16.msra.mxu0 0
  %134 = vmatprep.subr.bf16.mxu0 0
  %135 = vmatpush1.bf16.msra.mxu0 0
  %136 = vmatprep.subr.bf16.mxu0 0
  %137 = vmatpush1.bf16.msra.mxu0 0
  %138 = vmatprep.subr.bf16.mxu0 0
  %139 = vmatpush1.bf16.msra.mxu0 0
  %140 = vmatprep.subr.bf16.mxu0 %v110
  %141 = vmatpush1.bf16.msra.mxu0 %v109
  %142 = vmatprep.subr.bf16.mxu0 0
  %143 = vmatpush2.bf16.msra.mxu0 0
  %144 = vmatprep.subr.bf16.mxu0 0
  %145 = vmatpush2.bf16.msra.mxu0 0
  %146 = vmatprep.subr.bf16.mxu0 0
  %147 = vmatpush2.bf16.msra.mxu0 0
  %148 = vmatprep.subr.bf16.mxu0 0
  %149 = vmatpush2.bf16.msra.mxu0 0
  %150 = vmatprep.subr.bf16.mxu0 0
  %151 = vmatpush2.bf16.msra.mxu0 0
  %152 = vmatprep.subr.bf16.mxu0 0
  %153 = vmatpush2.bf16.msra.mxu0 0
  %154 = vmatprep.subr.bf16.mxu0 0
  %155 = vmatpush2.bf16.msra.mxu0 0
  %156 = vmatprep.subr.bf16.mxu0 0
  %157 = vmatpush2.bf16.msra.mxu0 0
  %158 = vmatprep.mubr.bf16.mxu0 0
  %159 = vmatmul.mubr.bf16.gmra.mxu0 %v115
  %v160 = vpop.f32.mrf.mxu0
  %v161 = vadd.f32 %v96, %v160
  %v162 = vpop.f32.mrf.mxu0
  %v163 = vadd.f32 %v100, %v162
  %v164 = vpop.f32.mrf.mxu0
  %v165 = vadd.f32 %v96, %v164
  %v166 = vpop.f32.mrf.mxu0
  %v167 = vadd.f32 %v100, %v166
  %168 = vmatprep.mubr.bf16.mxu0 0
  %169 = vmatmul.mubr.bf16.gmra.mxu0 %v118
  %v170 = vpop.f32.mrf.mxu0
  %v171 = vadd.f32 %v96, %v170
  %v172 = vpop.f32.mrf.mxu0
  %v173 = vadd.f32 %v100, %v172
  %v174 = vpop.f32.mrf.mxu0
  %v175 = vadd.f32 %v96, %v174
  %v176 = vpop.f32.mrf.mxu0
  %v177 = vadd.f32 %v100, %v176
  %178 = vmatprep.mubr.bf16.mxu0 0
  %179 = vmatmul.mubr.bf16.gmra.mxu0 %v121
  %v180 = vpop.f32.mrf.mxu0
  %v181 = vadd.f32 %v96, %v180
  %v182 = vpop.f32.mrf.mxu0
  %v183 = vadd.f32 %v100, %v182
  %v184 = vpop.f32.mrf.mxu0
  %v185 = vadd.f32 %v96, %v184
  %v186 = vpop.f32.mrf.mxu0
  %v187 = vadd.f32 %v100, %v186
  %188 = vmatprep.mubr.bf16.mxu0 0
  %189 = vmatmul.mubr.bf16.gmra.mxu0 %v124
  %v190 = vpop.f32.mrf.mxu0
  %v191 = vadd.f32 %v96, %v190
  %v192 = vpop.f32.mrf.mxu0
  %v193 = vadd.f32 %v100, %v192
  %v194 = vpop.f32.mrf.mxu0
  %v195 = vadd.f32 %v96, %v194
  %v196 = vpop.f32.mrf.mxu0
  %v197 = vadd.f32 %v100, %v196
  %198 = vdwg.mxu0
  %v199 = vld [vmem:[%s5] sm:$0xf]
  %v200 = vld [vmem:[%s5 + $0x4] sm:$0xf]
  %v201 = vld [vmem:[%s5 + $0x8] sm:$0xf]
  %v202 = vld [vmem:[%s5 + $0xc] sm:$0xf]
  %v203 = vld [vmem:[%s6] sm:$0xf]
  %v204 = vld [vmem:[%s6 + $0x4] sm:$0xf]
  %v205 = vld [vmem:[%s6 + $0x8] sm:$0xf]
  %v206 = vld [vmem:[%s6 + $0xc] sm:$0xf]
  %v211 = vunpack.c.l.b16 %v199
  %v212 = vunpack.c.l.b16 %v200
  %v213 = vunpack.c.l.b16 %v201
  %v214 = vunpack.c.l.b16 %v202
  %v215 = vpack.c.b16 %v212, %v211
  %v216 = vpack.c.b16 %v214, %v213
  %vm219 = vcmask 261120
  %v221 = vsel %vm219, 0, 0
  %223 = vmatprep.subr.bf16.mxu0 0
  %224 = vmatpush1.bf16.msra.mxu0 0
  %225 = vmatprep.subr.bf16.mxu0 0
  %226 = vmatpush1.bf16.msra.mxu0 0
  %227 = vmatprep.subr.bf16.mxu0 0
  %228 = vmatpush1.bf16.msra.mxu0 0
  %229 = vmatprep.subr.bf16.mxu0 0
  %230 = vmatpush1.bf16.msra.mxu0 0
  %231 = vmatprep.subr.bf16.mxu0 0
  %232 = vmatpush1.bf16.msra.mxu0 0
  %233 = vmatprep.subr.bf16.mxu0 0
  %234 = vmatpush1.bf16.msra.mxu0 0
  %235 = vmatprep.subr.bf16.mxu0 0
  %236 = vmatpush1.bf16.msra.mxu0 %v216
  %237 = vmatprep.subr.bf16.mxu0 0
  %238 = vmatpush1.bf16.msra.mxu0 %v215
  %239 = vmatprep.subr.bf16.mxu0 0
  %240 = vmatpush2.bf16.msra.mxu0 0
  %241 = vmatprep.subr.bf16.mxu0 0
  %242 = vmatpush2.bf16.msra.mxu0 0
  %243 = vmatprep.subr.bf16.mxu0 0
  %244 = vmatpush2.bf16.msra.mxu0 0
  %245 = vmatprep.subr.bf16.mxu0 0
  %246 = vmatpush2.bf16.msra.mxu0 0
  %247 = vmatprep.subr.bf16.mxu0 0
  %248 = vmatpush2.bf16.msra.mxu0 0
  %249 = vmatprep.subr.bf16.mxu0 0
  %250 = vmatpush2.bf16.msra.mxu0 0
  %251 = vmatprep.subr.bf16.mxu0 0
  %252 = vmatpush2.bf16.msra.mxu0 0
  %253 = vmatprep.subr.bf16.mxu0 0
  %254 = vmatpush2.bf16.msra.mxu0 0
  %255 = vmatprep.mubr.bf16.mxu0 0
  %256 = vmatmul.mubr.bf16.gmra.mxu0 %v221
  %v257 = vpop.f32.mrf.mxu0
  %v258 = vadd.f32 0.0, %v257
  %v259 = vpop.f32.mrf.mxu0
  %v260 = vpop.f32.mrf.mxu0
  %v261 = vpop.f32.mrf.mxu0
  %262 = vdwg.mxu0
  %v263 = vadd.f32 %v161, %v258
  %v268 = vunpack.c.l.b16 %v203
  %v269 = vunpack.c.l.b16 %v204
  %v270 = vunpack.c.l.b16 %v205
  %v271 = vunpack.c.l.b16 %v206
  %v272 = vpack.c.b16 %v269, %v268
  %v273 = vpack.c.b16 %v271, %v270
  %276 = vmatprep.subr.bf16.mxu0 0
  %277 = vmatpush1.bf16.msra.mxu0 0
  %278 = vmatprep.subr.bf16.mxu0 0
  %279 = vmatpush1.bf16.msra.mxu0 0
  %280 = vmatprep.subr.bf16.mxu0 0
  %281 = vmatpush1.bf16.msra.mxu0 0
  %282 = vmatprep.subr.bf16.mxu0 0
  %283 = vmatpush1.bf16.msra.mxu0 0
  %284 = vmatprep.subr.bf16.mxu0 0
  %285 = vmatpush1.bf16.msra.mxu0 0
  %286 = vmatprep.subr.bf16.mxu0 0
  %287 = vmatpush1.bf16.msra.mxu0 0
  %288 = vmatprep.subr.bf16.mxu0 0
  %289 = vmatpush1.bf16.msra.mxu0 %v273
  %290 = vmatprep.subr.bf16.mxu0 0
  %291 = vmatpush1.bf16.msra.mxu0 %v272
  %292 = vmatprep.subr.bf16.mxu0 0
  %293 = vmatpush2.bf16.msra.mxu0 0
  %294 = vmatprep.subr.bf16.mxu0 0
  %295 = vmatpush2.bf16.msra.mxu0 0
  %296 = vmatprep.subr.bf16.mxu0 0
  %297 = vmatpush2.bf16.msra.mxu0 0
  %298 = vmatprep.subr.bf16.mxu0 0
  %299 = vmatpush2.bf16.msra.mxu0 0
  %300 = vmatprep.subr.bf16.mxu0 0
  %301 = vmatpush2.bf16.msra.mxu0 0
  %302 = vmatprep.subr.bf16.mxu0 0
  %303 = vmatpush2.bf16.msra.mxu0 0
  %304 = vmatprep.subr.bf16.mxu0 0
  %305 = vmatpush2.bf16.msra.mxu0 0
  %306 = vmatprep.subr.bf16.mxu0 0
  %307 = vmatpush2.bf16.msra.mxu0 0
  %308 = vmatprep.mubr.bf16.mxu0 0
  %309 = vmatmul.mubr.bf16.gmra.mxu0 %v221
  %v310 = vpop.f32.mrf.mxu0
  %v311 = vadd.f32 0.0, %v310
  %v312 = vpop.f32.mrf.mxu0
  %v313 = vpop.f32.mrf.mxu0
  %v314 = vpop.f32.mrf.mxu0
  %315 = vdwg.mxu0
  %v316 = vadd.f32 %v197, %v311
  %v317 = vxor.u32 %v263, 2147483648
  %v318 = vmul.f32 %v317, 1.442695
  %v319 = vpow.pop %v318
  %v320 = vadd.f32 %v319, 1.0
  %v321 = vrcp.pop %v320
  %v322 = vmul.f32 1.0, %v321
  %v323 = vtanh.pop %v263
  %v324 = vmul.f32 %v322, 0.0
  %326 = vrot.lane.b32.xlu0 %v323, 32
  %v327 = vpop.permute.xlu0 %326
  %v329 = vmul.f32 %v322, %v327
  %331 = vrot.lane.b32.xlu0 %v329, 32
  %v332 = vpop.permute.xlu0 %331
  %v334 = vadd.f32 %v324, %v332
  %v335 = vtanh.pop %v334
  %337 = vrot.lane.b32.xlu0 %v335, 32
  %v338 = vpop.permute.xlu0 %337
  %v340 = vmul.f32 %v322, %v338
  %v341 = vxor.u32 %v316, 2147483648
  %v342 = vmul.f32 %v341, 1.442695
  %v343 = vpow.pop %v342
  %v344 = vadd.f32 %v343, 1.0
  %v345 = vrcp.pop %v344
  %v346 = vmul.f32 1.0, %v345
  %v347 = vtanh.pop %v316
  %v348 = vmul.f32 %v346, 0.0
  %350 = vrot.lane.b32.xlu0 %v347, 32
  %v351 = vpop.permute.xlu0 %350
  %v353 = vmul.f32 %v346, %v351
  %355 = vrot.lane.b32.xlu0 %v353, 32
  %v356 = vpop.permute.xlu0 %355
  %v358 = vadd.f32 %v348, %v356
  %v359 = vtanh.pop %v358
  %361 = vrot.lane.b32.xlu0 %v359, 32
  %v362 = vpop.permute.xlu0 %361
  %v364 = vmul.f32 %v346, %v362
  %vm365 = vcmp.gt.f32.partialorder %v65, 0.0
  %vm366 = vcmp.gt.f32.partialorder %v72, 0.0
  %v367 = vsel %vm366, 1, 0
  %368 = vset.pattern.permute.xlu0 0
  %369 = vperm.xlu0 %368, %v367
  %v370 = vpop.permute.xlu0 %369
  %vm371 = vcmp.eq.s32.totalorder %v370, 1
  %v372 = vsel %vm371, %v364, 0.0
  %v373 = vsel %vm371, %v358, 0.0
  %v374 = vsel %vm365, 1, 0
  %375 = vset.pattern.permute.xlu0 0
  %376 = vperm.xlu0 %375, %v374
  %v377 = vpop.permute.xlu0 %376
  %vm378 = vcmp.eq.s32.totalorder %v377, 1
  %v379 = vsel %vm378, %v340, 0.0
  %381 = vrot.lane.b32.xlu0 %v379, 64
  %v382 = vpop.permute.xlu0 %381
  %384 = vst.msk [vmem:[#allocation2] sm:$0xff] %vm219, %v382
  %386 = vrot.lane.b32.xlu0 %v372, 64
  %v387 = vpop.permute.xlu0 %386
  %s389 = scalar_lea.vmem [#allocation3], 56
  %390 = vst.msk [vmem:[%s389] sm:$0xff] %vm219, %v387
  %v391 = vpack.c.bf16 %v340, %v340
  %393 = vrot.lane.b32.xlu0 %v391, 64
  %v394 = vpop.permute.xlu0 %393
  %v396 = vsel %vm219, %v394, 0
  %398 = vmatprep.subr.bf16.mxu0 0
  %399 = vmatpush1.bf16.msra.mxu0 0
  %400 = vmatprep.subr.bf16.mxu0 0
  %401 = vmatpush1.bf16.msra.mxu0 0
  %402 = vmatprep.subr.bf16.mxu0 0
  %403 = vmatpush1.bf16.msra.mxu0 0
  %404 = vmatprep.subr.bf16.mxu0 0
  %405 = vmatpush1.bf16.msra.mxu0 0
  %406 = vmatprep.subr.bf16.mxu0 0
  %407 = vmatpush1.bf16.msra.mxu0 0
  %408 = vmatprep.subr.bf16.mxu0 0
  %409 = vmatpush1.bf16.msra.mxu0 0
  %410 = vmatprep.subr.bf16.mxu0 0
  %411 = vmatpush1.bf16.msra.mxu0 %v216
  %412 = vmatprep.subr.bf16.mxu0 0
  %413 = vmatpush1.bf16.msra.mxu0 %v215
  %414 = vmatprep.subr.bf16.mxu0 0
  %415 = vmatpush2.bf16.msra.mxu0 0
  %416 = vmatprep.subr.bf16.mxu0 0
  %417 = vmatpush2.bf16.msra.mxu0 0
  %418 = vmatprep.subr.bf16.mxu0 0
  %419 = vmatpush2.bf16.msra.mxu0 0
  %420 = vmatprep.subr.bf16.mxu0 0
  %421 = vmatpush2.bf16.msra.mxu0 0
  %422 = vmatprep.subr.bf16.mxu0 0
  %423 = vmatpush2.bf16.msra.mxu0 0
  %424 = vmatprep.subr.bf16.mxu0 0
  %425 = vmatpush2.bf16.msra.mxu0 0
  %426 = vmatprep.subr.bf16.mxu0 0
  %427 = vmatpush2.bf16.msra.mxu0 0
  %428 = vmatprep.subr.bf16.mxu0 0
  %429 = vmatpush2.bf16.msra.mxu0 0
  %430 = vmatprep.mubr.bf16.mxu0 0
  %431 = vmatmul.mubr.bf16.gmra.mxu0 %v396
  %v432 = vpop.f32.mrf.mxu0
  %v433 = vadd.f32 0.0, %v432
  %v434 = vpop.f32.mrf.mxu0
  %v435 = vpop.f32.mrf.mxu0
  %v436 = vpop.f32.mrf.mxu0
  %437 = vdwg.mxu0
  %v438 = vadd.f32 %v165, %v433
  %v439 = vpack.c.bf16 %v372, %v372
  %441 = vrot.lane.b32.xlu0 %v439, 64
  %v442 = vpop.permute.xlu0 %441
  %v444 = vsel %vm219, %v442, 0
  %446 = vmatprep.subr.bf16.mxu0 0
  %447 = vmatpush1.bf16.msra.mxu0 0
  %448 = vmatprep.subr.bf16.mxu0 0
  %449 = vmatpush1.bf16.msra.mxu0 0
  %450 = vmatprep.subr.bf16.mxu0 0
  %451 = vmatpush1.bf16.msra.mxu0 0
  %452 = vmatprep.subr.bf16.mxu0 0
  %453 = vmatpush1.bf16.msra.mxu0 0
  %454 = vmatprep.subr.bf16.mxu0 0
  %455 = vmatpush1.bf16.msra.mxu0 0
  %456 = vmatprep.subr.bf16.mxu0 0
  %457 = vmatpush1.bf16.msra.mxu0 0
  %458 = vmatprep.subr.bf16.mxu0 0
  %459 = vmatpush1.bf16.msra.mxu0 %v273
  %460 = vmatprep.subr.bf16.mxu0 0
  %461 = vmatpush1.bf16.msra.mxu0 %v272
  %462 = vmatprep.subr.bf16.mxu0 0
  %463 = vmatpush2.bf16.msra.mxu0 0
  %464 = vmatprep.subr.bf16.mxu0 0
  %465 = vmatpush2.bf16.msra.mxu0 0
  %466 = vmatprep.subr.bf16.mxu0 0
  %467 = vmatpush2.bf16.msra.mxu0 0
  %468 = vmatprep.subr.bf16.mxu0 0
  %469 = vmatpush2.bf16.msra.mxu0 0
  %470 = vmatprep.subr.bf16.mxu0 0
  %471 = vmatpush2.bf16.msra.mxu0 0
  %472 = vmatprep.subr.bf16.mxu0 0
  %473 = vmatpush2.bf16.msra.mxu0 0
  %474 = vmatprep.subr.bf16.mxu0 0
  %475 = vmatpush2.bf16.msra.mxu0 0
  %476 = vmatprep.subr.bf16.mxu0 0
  %477 = vmatpush2.bf16.msra.mxu0 0
  %478 = vmatprep.mubr.bf16.mxu0 0
  %479 = vmatmul.mubr.bf16.gmra.mxu0 %v444
  %v480 = vpop.f32.mrf.mxu0
  %v481 = vadd.f32 0.0, %v480
  %v482 = vpop.f32.mrf.mxu0
  %v483 = vpop.f32.mrf.mxu0
  %v484 = vpop.f32.mrf.mxu0
  %485 = vdwg.mxu0
  %v486 = vadd.f32 %v193, %v481
  %v487 = vxor.u32 %v438, 2147483648
  %v488 = vmul.f32 %v487, 1.442695
  %v489 = vpow.pop %v488
  %v490 = vadd.f32 %v489, 1.0
  %v491 = vrcp.pop %v490
  %v492 = vmul.f32 1.0, %v491
  %v493 = vtanh.pop %v438
  %v494 = vmul.f32 %v492, %v334
  %496 = vrot.lane.b32.xlu0 %v493, 32
  %v497 = vpop.permute.xlu0 %496
  %v499 = vmul.f32 %v492, %v497
  %501 = vrot.lane.b32.xlu0 %v499, 32
  %v502 = vpop.permute.xlu0 %501
  %v504 = vadd.f32 %v494, %v502
  %v505 = vtanh.pop %v504
  %507 = vrot.lane.b32.xlu0 %v505, 32
  %v508 = vpop.permute.xlu0 %507
  %v510 = vmul.f32 %v492, %v508
  %v511 = vxor.u32 %v486, 2147483648
  %v512 = vmul.f32 %v511, 1.442695
  %v513 = vpow.pop %v512
  %v514 = vadd.f32 %v513, 1.0
  %v515 = vrcp.pop %v514
  %v516 = vmul.f32 1.0, %v515
  %v517 = vtanh.pop %v486
  %v518 = vmul.f32 %v516, %v373
  %520 = vrot.lane.b32.xlu0 %v517, 32
  %v521 = vpop.permute.xlu0 %520
  %v523 = vmul.f32 %v516, %v521
  %525 = vrot.lane.b32.xlu0 %v523, 32
  %v526 = vpop.permute.xlu0 %525
  %v528 = vadd.f32 %v518, %v526
  %v529 = vtanh.pop %v528
  %531 = vrot.lane.b32.xlu0 %v529, 32
  %v532 = vpop.permute.xlu0 %531
  %v534 = vmul.f32 %v516, %v532
  %vm535 = vcmp.gt.f32.partialorder %v66, 0.0
  %vm536 = vcmp.gt.f32.partialorder %v71, 0.0
  %v537 = vsel %vm536, 1, 0
  %538 = vset.pattern.permute.xlu0 0
  %539 = vperm.xlu0 %538, %v537
  %v540 = vpop.permute.xlu0 %539
  %vm541 = vcmp.eq.s32.totalorder %v540, 1
  %v542 = vsel %vm541, %v534, %v372
  %v543 = vsel %vm541, %v528, %v373
  %v544 = vsel %vm535, 1, 0
  %545 = vset.pattern.permute.xlu0 0
  %546 = vperm.xlu0 %545, %v544
  %v547 = vpop.permute.xlu0 %546
  %vm548 = vcmp.eq.s32.totalorder %v547, 1
  %v549 = vsel %vm548, %v510, 0.0
  %551 = vrot.lane.b32.xlu0 %v549, 64
  %v552 = vpop.permute.xlu0 %551
  %s554 = scalar_lea.vmem [#allocation2], 8
  %555 = vst.msk [vmem:[%s554] sm:$0xff] %vm219, %v552
  %v556 = vsel %vm541, %v534, 0.0
  %558 = vrot.lane.b32.xlu0 %v556, 64
  %v559 = vpop.permute.xlu0 %558
  %s561 = scalar_lea.vmem [#allocation3], 48
  %562 = vst.msk [vmem:[%s561] sm:$0xff] %vm219, %v559
  %v563 = vpack.c.bf16 %v510, %v510
  %565 = vrot.lane.b32.xlu0 %v563, 64
  %v566 = vpop.permute.xlu0 %565
  %v568 = vsel %vm219, %v566, 0
  %570 = vmatprep.subr.bf16.mxu0 0
  %571 = vmatpush1.bf16.msra.mxu0 0
  %572 = vmatprep.subr.bf16.mxu0 0
  %573 = vmatpush1.bf16.msra.mxu0 0
  %574 = vmatprep.subr.bf16.mxu0 0
  %575 = vmatpush1.bf16.msra.mxu0 0
  %576 = vmatprep.subr.bf16.mxu0 0
  %577 = vmatpush1.bf16.msra.mxu0 0
  %578 = vmatprep.subr.bf16.mxu0 0
  %579 = vmatpush1.bf16.msra.mxu0 0
  %580 = vmatprep.subr.bf16.mxu0 0
  %581 = vmatpush1.bf16.msra.mxu0 0
  %582 = vmatprep.subr.bf16.mxu0 0
  %583 = vmatpush1.bf16.msra.mxu0 %v216
  %584 = vmatprep.subr.bf16.mxu0 0
  %585 = vmatpush1.bf16.msra.mxu0 %v215
  %586 = vmatprep.subr.bf16.mxu0 0
  %587 = vmatpush2.bf16.msra.mxu0 0
  %588 = vmatprep.subr.bf16.mxu0 0
  %589 = vmatpush2.bf16.msra.mxu0 0
  %590 = vmatprep.subr.bf16.mxu0 0
  %591 = vmatpush2.bf16.msra.mxu0 0
  %592 = vmatprep.subr.bf16.mxu0 0
  %593 = vmatpush2.bf16.msra.mxu0 0
  %594 = vmatprep.subr.bf16.mxu0 0
  %595 = vmatpush2.bf16.msra.mxu0 0
  %596 = vmatprep.subr.bf16.mxu0 0
  %597 = vmatpush2.bf16.msra.mxu0 0
  %598 = vmatprep.subr.bf16.mxu0 0
  %599 = vmatpush2.bf16.msra.mxu0 0
  %600 = vmatprep.subr.bf16.mxu0 0
  %601 = vmatpush2.bf16.msra.mxu0 0
  %602 = vmatprep.mubr.bf16.mxu0 0
  %603 = vmatmul.mubr.bf16.gmra.mxu0 %v568
  %v604 = vpop.f32.mrf.mxu0
  %v605 = vadd.f32 0.0, %v604
  %v606 = vpop.f32.mrf.mxu0
  %v607 = vpop.f32.mrf.mxu0
  %v608 = vpop.f32.mrf.mxu0
  %609 = vdwg.mxu0
  %v610 = vadd.f32 %v171, %v605
  %v611 = vpack.c.bf16 %v542, %v542
  %613 = vrot.lane.b32.xlu0 %v611, 64
  %v614 = vpop.permute.xlu0 %613
  %v616 = vsel %vm219, %v614, 0
  %618 = vmatprep.subr.bf16.mxu0 0
  %619 = vmatpush1.bf16.msra.mxu0 0
  %620 = vmatprep.subr.bf16.mxu0 0
  %621 = vmatpush1.bf16.msra.mxu0 0
  %622 = vmatprep.subr.bf16.mxu0 0
  %623 = vmatpush1.bf16.msra.mxu0 0
  %624 = vmatprep.subr.bf16.mxu0 0
  %625 = vmatpush1.bf16.msra.mxu0 0
  %626 = vmatprep.subr.bf16.mxu0 0
  %627 = vmatpush1.bf16.msra.mxu0 0
  %628 = vmatprep.subr.bf16.mxu0 0
  %629 = vmatpush1.bf16.msra.mxu0 0
  %630 = vmatprep.subr.bf16.mxu0 0
  %631 = vmatpush1.bf16.msra.mxu0 %v273
  %632 = vmatprep.subr.bf16.mxu0 0
  %633 = vmatpush1.bf16.msra.mxu0 %v272
  %634 = vmatprep.subr.bf16.mxu0 0
  %635 = vmatpush2.bf16.msra.mxu0 0
  %636 = vmatprep.subr.bf16.mxu0 0
  %637 = vmatpush2.bf16.msra.mxu0 0
  %638 = vmatprep.subr.bf16.mxu0 0
  %639 = vmatpush2.bf16.msra.mxu0 0
  %640 = vmatprep.subr.bf16.mxu0 0
  %641 = vmatpush2.bf16.msra.mxu0 0
  %642 = vmatprep.subr.bf16.mxu0 0
  %643 = vmatpush2.bf16.msra.mxu0 0
  %644 = vmatprep.subr.bf16.mxu0 0
  %645 = vmatpush2.bf16.msra.mxu0 0
  %646 = vmatprep.subr.bf16.mxu0 0
  %647 = vmatpush2.bf16.msra.mxu0 0
  %648 = vmatprep.subr.bf16.mxu0 0
  %649 = vmatpush2.bf16.msra.mxu0 0
  %650 = vmatprep.mubr.bf16.mxu0 0
  %651 = vmatmul.mubr.bf16.gmra.mxu0 %v616
  %v652 = vpop.f32.mrf.mxu0
  %v653 = vadd.f32 0.0, %v652
  %v654 = vpop.f32.mrf.mxu0
  %v655 = vpop.f32.mrf.mxu0
  %v656 = vpop.f32.mrf.mxu0
  %657 = vdwg.mxu0
  %v658 = vadd.f32 %v187, %v653
  %v659 = vxor.u32 %v610, 2147483648
  %v660 = vmul.f32 %v659, 1.442695
  %v661 = vpow.pop %v660
  %v662 = vadd.f32 %v661, 1.0
  %v663 = vrcp.pop %v662
  %v664 = vmul.f32 1.0, %v663
  %v665 = vtanh.pop %v610
  %v666 = vmul.f32 %v664, %v504
  %668 = vrot.lane.b32.xlu0 %v665, 32
  %v669 = vpop.permute.xlu0 %668
  %v671 = vmul.f32 %v664, %v669
  %673 = vrot.lane.b32.xlu0 %v671, 32
  %v674 = vpop.permute.xlu0 %673
  %v676 = vadd.f32 %v666, %v674
  %v677 = vtanh.pop %v676
  %679 = vrot.lane.b32.xlu0 %v677, 32
  %v680 = vpop.permute.xlu0 %679
  %v682 = vmul.f32 %v664, %v680
  %v683 = vxor.u32 %v658, 2147483648
  %v684 = vmul.f32 %v683, 1.442695
  %v685 = vpow.pop %v684
  %v686 = vadd.f32 %v685, 1.0
  %v687 = vrcp.pop %v686
  %v688 = vmul.f32 1.0, %v687
  %v689 = vtanh.pop %v658
  %v690 = vmul.f32 %v688, %v543
  %692 = vrot.lane.b32.xlu0 %v689, 32
  %v693 = vpop.permute.xlu0 %692
  %v695 = vmul.f32 %v688, %v693
  %697 = vrot.lane.b32.xlu0 %v695, 32
  %v698 = vpop.permute.xlu0 %697
  %v700 = vadd.f32 %v690, %v698
  %v701 = vtanh.pop %v700
  %703 = vrot.lane.b32.xlu0 %v701, 32
  %v704 = vpop.permute.xlu0 %703
  %v706 = vmul.f32 %v688, %v704
  %vm707 = vcmp.gt.f32.partialorder %v67, 0.0
  %vm708 = vcmp.gt.f32.partialorder %v70, 0.0
  %v709 = vsel %vm708, 1, 0
  %710 = vset.pattern.permute.xlu0 0
  %711 = vperm.xlu0 %710, %v709
  %v712 = vpop.permute.xlu0 %711
  %vm713 = vcmp.eq.s32.totalorder %v712, 1
  %v714 = vsel %vm713, %v706, %v542
  %v715 = vsel %vm713, %v700, %v543
  %v716 = vsel %vm707, 1, 0
  %717 = vset.pattern.permute.xlu0 0
  %718 = vperm.xlu0 %717, %v716
  %v719 = vpop.permute.xlu0 %718
  %vm720 = vcmp.eq.s32.totalorder %v719, 1
  %v721 = vsel %vm720, %v682, 0.0
  %723 = vrot.lane.b32.xlu0 %v721, 64
  %v724 = vpop.permute.xlu0 %723
  %s726 = scalar_lea.vmem [#allocation2], 16
  %727 = vst.msk [vmem:[%s726] sm:$0xff] %vm219, %v724
  %v728 = vsel %vm713, %v706, 0.0
  %730 = vrot.lane.b32.xlu0 %v728, 64
  %v731 = vpop.permute.xlu0 %730
  %s733 = scalar_lea.vmem [#allocation3], 40
  %734 = vst.msk [vmem:[%s733] sm:$0xff] %vm219, %v731
  %v735 = vpack.c.bf16 %v682, %v682
  %737 = vrot.lane.b32.xlu0 %v735, 64
  %v738 = vpop.permute.xlu0 %737
  %v740 = vsel %vm219, %v738, 0
  %742 = vmatprep.subr.bf16.mxu0 0
  %743 = vmatpush1.bf16.msra.mxu0 0
  %744 = vmatprep.subr.bf16.mxu0 0
  %745 = vmatpush1.bf16.msra.mxu0 0
  %746 = vmatprep.subr.bf16.mxu0 0
  %747 = vmatpush1.bf16.msra.mxu0 0
  %748 = vmatprep.subr.bf16.mxu0 0
  %749 = vmatpush1.bf16.msra.mxu0 0
  %750 = vmatprep.subr.bf16.mxu0 0
  %751 = vmatpush1.bf16.msra.mxu0 0
  %752 = vmatprep.subr.bf16.mxu0 0
  %753 = vmatpush1.bf16.msra.mxu0 0
  %754 = vmatprep.subr.bf16.mxu0 0
  %755 = vmatpush1.bf16.msra.mxu0 %v216
  %756 = vmatprep.subr.bf16.mxu0 0
  %757 = vmatpush1.bf16.msra.mxu0 %v215
  %758 = vmatprep.subr.bf16.mxu0 0
  %759 = vmatpush2.bf16.msra.mxu0 0
  %760 = vmatprep.subr.bf16.mxu0 0
  %761 = vmatpush2.bf16.msra.mxu0 0
  %762 = vmatprep.subr.bf16.mxu0 0
  %763 = vmatpush2.bf16.msra.mxu0 0
  %764 = vmatprep.subr.bf16.mxu0 0
  %765 = vmatpush2.bf16.msra.mxu0 0
  %766 = vmatprep.subr.bf16.mxu0 0
  %767 = vmatpush2.bf16.msra.mxu0 0
  %768 = vmatprep.subr.bf16.mxu0 0
  %769 = vmatpush2.bf16.msra.mxu0 0
  %770 = vmatprep.subr.bf16.mxu0 0
  %771 = vmatpush2.bf16.msra.mxu0 0
  %772 = vmatprep.subr.bf16.mxu0 0
  %773 = vmatpush2.bf16.msra.mxu0 0
  %774 = vmatprep.mubr.bf16.mxu0 0
  %775 = vmatmul.mubr.bf16.gmra.mxu0 %v740
  %v776 = vpop.f32.mrf.mxu0
  %v777 = vadd.f32 0.0, %v776
  %v778 = vpop.f32.mrf.mxu0
  %v779 = vpop.f32.mrf.mxu0
  %v780 = vpop.f32.mrf.mxu0
  %781 = vdwg.mxu0
  %v782 = vadd.f32 %v175, %v777
  %v783 = vpack.c.bf16 %v714, %v714
  %785 = vrot.lane.b32.xlu0 %v783, 64
  %v786 = vpop.permute.xlu0 %785
  %v788 = vsel %vm219, %v786, 0
  %790 = vmatprep.subr.bf16.mxu0 0
  %791 = vmatpush1.bf16.msra.mxu0 0
  %792 = vmatprep.subr.bf16.mxu0 0
  %793 = vmatpush1.bf16.msra.mxu0 0
  %794 = vmatprep.subr.bf16.mxu0 0
  %795 = vmatpush1.bf16.msra.mxu0 0
  %796 = vmatprep.subr.bf16.mxu0 0
  %797 = vmatpush1.bf16.msra.mxu0 0
  %798 = vmatprep.subr.bf16.mxu0 0
  %799 = vmatpush1.bf16.msra.mxu0 0
  %800 = vmatprep.subr.bf16.mxu0 0
  %801 = vmatpush1.bf16.msra.mxu0 0
  %802 = vmatprep.subr.bf16.mxu0 0
  %803 = vmatpush1.bf16.msra.mxu0 %v273
  %804 = vmatprep.subr.bf16.mxu0 0
  %805 = vmatpush1.bf16.msra.mxu0 %v272
  %806 = vmatprep.subr.bf16.mxu0 0
  %807 = vmatpush2.bf16.msra.mxu0 0
  %808 = vmatprep.subr.bf16.mxu0 0
  %809 = vmatpush2.bf16.msra.mxu0 0
  %810 = vmatprep.subr.bf16.mxu0 0
  %811 = vmatpush2.bf16.msra.mxu0 0
  %812 = vmatprep.subr.bf16.mxu0 0
  %813 = vmatpush2.bf16.msra.mxu0 0
  %814 = vmatprep.subr.bf16.mxu0 0
  %815 = vmatpush2.bf16.msra.mxu0 0
  %816 = vmatprep.subr.bf16.mxu0 0
  %817 = vmatpush2.bf16.msra.mxu0 0
  %818 = vmatprep.subr.bf16.mxu0 0
  %819 = vmatpush2.bf16.msra.mxu0 0
  %820 = vmatprep.subr.bf16.mxu0 0
  %821 = vmatpush2.bf16.msra.mxu0 0
  %822 = vmatprep.mubr.bf16.mxu0 0
  %823 = vmatmul.mubr.bf16.gmra.mxu0 %v788
  %v824 = vpop.f32.mrf.mxu0
  %v825 = vadd.f32 0.0, %v824
  %v826 = vpop.f32.mrf.mxu0
  %v827 = vpop.f32.mrf.mxu0
  %v828 = vpop.f32.mrf.mxu0
  %829 = vdwg.mxu0
  %v830 = vadd.f32 %v183, %v825
  %v831 = vxor.u32 %v782, 2147483648
  %v832 = vmul.f32 %v831, 1.442695
  %v833 = vpow.pop %v832
  %v834 = vadd.f32 %v833, 1.0
  %v835 = vrcp.pop %v834
  %v836 = vmul.f32 1.0, %v835
  %v837 = vtanh.pop %v782
  %v838 = vmul.f32 %v836, %v676
  %840 = vrot.lane.b32.xlu0 %v837, 32
  %v841 = vpop.permute.xlu0 %840
  %v843 = vmul.f32 %v836, %v841
  %845 = vrot.lane.b32.xlu0 %v843, 32
  %v846 = vpop.permute.xlu0 %845
  %v848 = vadd.f32 %v838, %v846
  %v849 = vtanh.pop %v848
  %851 = vrot.lane.b32.xlu0 %v849, 32
  %v852 = vpop.permute.xlu0 %851
  %v854 = vmul.f32 %v836, %v852
  %v855 = vxor.u32 %v830, 2147483648
  %v856 = vmul.f32 %v855, 1.442695
  %v857 = vpow.pop %v856
  %v858 = vadd.f32 %v857, 1.0
  %v859 = vrcp.pop %v858
  %v860 = vmul.f32 1.0, %v859
  %v861 = vtanh.pop %v830
  %v862 = vmul.f32 %v860, %v715
  %864 = vrot.lane.b32.xlu0 %v861, 32
  %v865 = vpop.permute.xlu0 %864
  %v867 = vmul.f32 %v860, %v865
  %869 = vrot.lane.b32.xlu0 %v867, 32
  %v870 = vpop.permute.xlu0 %869
  %v872 = vadd.f32 %v862, %v870
  %v873 = vtanh.pop %v872
  %875 = vrot.lane.b32.xlu0 %v873, 32
  %v876 = vpop.permute.xlu0 %875
  %v878 = vmul.f32 %v860, %v876
  %vm879 = vcmp.gt.f32.partialorder %v68, 0.0
  %vm880 = vcmp.gt.f32.partialorder %v69, 0.0
  %v881 = vsel %vm880, 1, 0
  %882 = vset.pattern.permute.xlu0 0
  %883 = vperm.xlu0 %882, %v881
  %v884 = vpop.permute.xlu0 %883
  %vm885 = vcmp.eq.s32.totalorder %v884, 1
  %v886 = vsel %vm885, %v878, %v714
  %v887 = vsel %vm885, %v872, %v715
  %v888 = vsel %vm879, 1, 0
  %889 = vset.pattern.permute.xlu0 0
  %890 = vperm.xlu0 %889, %v888
  %v891 = vpop.permute.xlu0 %890
  %vm892 = vcmp.eq.s32.totalorder %v891, 1
  %v893 = vsel %vm892, %v854, 0.0
  %895 = vrot.lane.b32.xlu0 %v893, 64
  %v896 = vpop.permute.xlu0 %895
  %s898 = scalar_lea.vmem [#allocation2], 24
  %899 = vst.msk [vmem:[%s898] sm:$0xff] %vm219, %v896
  %v900 = vsel %vm885, %v878, 0.0
  %902 = vrot.lane.b32.xlu0 %v900, 64
  %v903 = vpop.permute.xlu0 %902
  %s905 = scalar_lea.vmem [#allocation3], 32
  %906 = vst.msk [vmem:[%s905] sm:$0xff] %vm219, %v903
  %v907 = vpack.c.bf16 %v854, %v854
  %909 = vrot.lane.b32.xlu0 %v907, 64
  %v910 = vpop.permute.xlu0 %909
  %v912 = vsel %vm219, %v910, 0
  %914 = vmatprep.subr.bf16.mxu0 0
  %915 = vmatpush1.bf16.msra.mxu0 0
  %916 = vmatprep.subr.bf16.mxu0 0
  %917 = vmatpush1.bf16.msra.mxu0 0
  %918 = vmatprep.subr.bf16.mxu0 0
  %919 = vmatpush1.bf16.msra.mxu0 0
  %920 = vmatprep.subr.bf16.mxu0 0
  %921 = vmatpush1.bf16.msra.mxu0 0
  %922 = vmatprep.subr.bf16.mxu0 0
  %923 = vmatpush1.bf16.msra.mxu0 0
  %924 = vmatprep.subr.bf16.mxu0 0
  %925 = vmatpush1.bf16.msra.mxu0 0
  %926 = vmatprep.subr.bf16.mxu0 0
  %927 = vmatpush1.bf16.msra.mxu0 %v216
  %928 = vmatprep.subr.bf16.mxu0 0
  %929 = vmatpush1.bf16.msra.mxu0 %v215
  %930 = vmatprep.subr.bf16.mxu0 0
  %931 = vmatpush2.bf16.msra.mxu0 0
  %932 = vmatprep.subr.bf16.mxu0 0
  %933 = vmatpush2.bf16.msra.mxu0 0
  %934 = vmatprep.subr.bf16.mxu0 0
  %935 = vmatpush2.bf16.msra.mxu0 0
  %936 = vmatprep.subr.bf16.mxu0 0
  %937 = vmatpush2.bf16.msra.mxu0 0
  %938 = vmatprep.subr.bf16.mxu0 0
  %939 = vmatpush2.bf16.msra.mxu0 0
  %940 = vmatprep.subr.bf16.mxu0 0
  %941 = vmatpush2.bf16.msra.mxu0 0
  %942 = vmatprep.subr.bf16.mxu0 0
  %943 = vmatpush2.bf16.msra.mxu0 0
  %944 = vmatprep.subr.bf16.mxu0 0
  %945 = vmatpush2.bf16.msra.mxu0 0
  %946 = vmatprep.mubr.bf16.mxu0 0
  %947 = vmatmul.mubr.bf16.gmra.mxu0 %v912
  %v948 = vpop.f32.mrf.mxu0
  %v949 = vadd.f32 0.0, %v948
  %v950 = vpop.f32.mrf.mxu0
  %v951 = vpop.f32.mrf.mxu0
  %v952 = vpop.f32.mrf.mxu0
  %953 = vdwg.mxu0
  %v954 = vadd.f32 %v181, %v949
  %v955 = vpack.c.bf16 %v886, %v886
  %957 = vrot.lane.b32.xlu0 %v955, 64
  %v958 = vpop.permute.xlu0 %957
  %v960 = vsel %vm219, %v958, 0
  %962 = vmatprep.subr.bf16.mxu0 0
  %963 = vmatpush1.bf16.msra.mxu0 0
  %964 = vmatprep.subr.bf16.mxu0 0
  %965 = vmatpush1.bf16.msra.mxu0 0
  %966 = vmatprep.subr.bf16.mxu0 0
  %967 = vmatpush1.bf16.msra.mxu0 0
  %968 = vmatprep.subr.bf16.mxu0 0
  %969 = vmatpush1.bf16.msra.mxu0 0
  %970 = vmatprep.subr.bf16.mxu0 0
  %971 = vmatpush1.bf16.msra.mxu0 0
  %972 = vmatprep.subr.bf16.mxu0 0
  %973 = vmatpush1.bf16.msra.mxu0 0
  %974 = vmatprep.subr.bf16.mxu0 0
  %975 = vmatpush1.bf16.msra.mxu0 %v273
  %976 = vmatprep.subr.bf16.mxu0 0
  %977 = vmatpush1.bf16.msra.mxu0 %v272
  %978 = vmatprep.subr.bf16.mxu0 0
  %979 = vmatpush2.bf16.msra.mxu0 0
  %980 = vmatprep.subr.bf16.mxu0 0
  %981 = vmatpush2.bf16.msra.mxu0 0
  %982 = vmatprep.subr.bf16.mxu0 0
  %983 = vmatpush2.bf16.msra.mxu0 0
  %984 = vmatprep.subr.bf16.mxu0 0
  %985 = vmatpush2.bf16.msra.mxu0 0
  %986 = vmatprep.subr.bf16.mxu0 0
  %987 = vmatpush2.bf16.msra.mxu0 0
  %988 = vmatprep.subr.bf16.mxu0 0
  %989 = vmatpush2.bf16.msra.mxu0 0
  %990 = vmatprep.subr.bf16.mxu0 0
  %991 = vmatpush2.bf16.msra.mxu0 0
  %992 = vmatprep.subr.bf16.mxu0 0
  %993 = vmatpush2.bf16.msra.mxu0 0
  %994 = vmatprep.mubr.bf16.mxu0 0
  %995 = vmatmul.mubr.bf16.gmra.mxu0 %v960
  %v996 = vpop.f32.mrf.mxu0
  %v997 = vadd.f32 0.0, %v996
  %v998 = vpop.f32.mrf.mxu0
  %v999 = vpop.f32.mrf.mxu0
  %v1000 = vpop.f32.mrf.mxu0
  %1001 = vdwg.mxu0
  %v1002 = vadd.f32 %v177, %v997
  %v1003 = vxor.u32 %v954, 2147483648
  %v1004 = vmul.f32 %v1003, 1.442695
  %v1005 = vpow.pop %v1004
  %v1006 = vadd.f32 %v1005, 1.0
  %v1007 = vrcp.pop %v1006
  %v1008 = vmul.f32 1.0, %v1007
  %v1009 = vtanh.pop %v954
  %v1010 = vmul.f32 %v1008, %v848
  %1012 = vrot.lane.b32.xlu0 %v1009, 32
  %v1013 = vpop.permute.xlu0 %1012
  %v1015 = vmul.f32 %v1008, %v1013
  %1017 = vrot.lane.b32.xlu0 %v1015, 32
  %v1018 = vpop.permute.xlu0 %1017
  %v1020 = vadd.f32 %v1010, %v1018
  %v1021 = vtanh.pop %v1020
  %1023 = vrot.lane.b32.xlu0 %v1021, 32
  %v1024 = vpop.permute.xlu0 %1023
  %v1026 = vmul.f32 %v1008, %v1024
  %v1027 = vxor.u32 %v1002, 2147483648
  %v1028 = vmul.f32 %v1027, 1.442695
  %v1029 = vpow.pop %v1028
  %v1030 = vadd.f32 %v1029, 1.0
  %v1031 = vrcp.pop %v1030
  %v1032 = vmul.f32 1.0, %v1031
  %v1033 = vtanh.pop %v1002
  %v1034 = vmul.f32 %v1032, %v887
  %1036 = vrot.lane.b32.xlu0 %v1033, 32
  %v1037 = vpop.permute.xlu0 %1036
  %v1039 = vmul.f32 %v1032, %v1037
  %1041 = vrot.lane.b32.xlu0 %v1039, 32
  %v1042 = vpop.permute.xlu0 %1041
  %v1044 = vadd.f32 %v1034, %v1042
  %v1045 = vtanh.pop %v1044
  %1047 = vrot.lane.b32.xlu0 %v1045, 32
  %v1048 = vpop.permute.xlu0 %1047
  %v1050 = vmul.f32 %v1032, %v1048
  %v1051 = vsel %vm892, %v1050, %v886
  %v1052 = vsel %vm892, %v1044, %v887
  %v1053 = vsel %vm885, %v1026, 0.0
  %1055 = vrot.lane.b32.xlu0 %v1053, 64
  %v1056 = vpop.permute.xlu0 %1055
  %s1058 = scalar_lea.vmem [#allocation2], 32
  %1059 = vst.msk [vmem:[%s1058] sm:$0xff] %vm219, %v1056
  %v1060 = vsel %vm892, %v1050, 0.0
  %1062 = vrot.lane.b32.xlu0 %v1060, 64
  %v1063 = vpop.permute.xlu0 %1062
  %s1065 = scalar_lea.vmem [#allocation3], 24
  %1066 = vst.msk [vmem:[%s1065] sm:$0xff] %vm219, %v1063
  %v1067 = vpack.c.bf16 %v1026, %v1026
  %1069 = vrot.lane.b32.xlu0 %v1067, 64
  %v1070 = vpop.permute.xlu0 %1069
  %v1072 = vsel %vm219, %v1070, 0
  %1074 = vmatprep.subr.bf16.mxu0 0
  %1075 = vmatpush1.bf16.msra.mxu0 0
  %1076 = vmatprep.subr.bf16.mxu0 0
  %1077 = vmatpush1.bf16.msra.mxu0 0
  %1078 = vmatprep.subr.bf16.mxu0 0
  %1079 = vmatpush1.bf16.msra.mxu0 0
  %1080 = vmatprep.subr.bf16.mxu0 0
  %1081 = vmatpush1.bf16.msra.mxu0 0
  %1082 = vmatprep.subr.bf16.mxu0 0
  %1083 = vmatpush1.bf16.msra.mxu0 0
  %1084 = vmatprep.subr.bf16.mxu0 0
  %1085 = vmatpush1.bf16.msra.mxu0 0
  %1086 = vmatprep.subr.bf16.mxu0 0
  %1087 = vmatpush1.bf16.msra.mxu0 %v216
  %1088 = vmatprep.subr.bf16.mxu0 0
  %1089 = vmatpush1.bf16.msra.mxu0 %v215
  %1090 = vmatprep.subr.bf16.mxu0 0
  %1091 = vmatpush2.bf16.msra.mxu0 0
  %1092 = vmatprep.subr.bf16.mxu0 0
  %1093 = vmatpush2.bf16.msra.mxu0 0
  %1094 = vmatprep.subr.bf16.mxu0 0
  %1095 = vmatpush2.bf16.msra.mxu0 0
  %1096 = vmatprep.subr.bf16.mxu0 0
  %1097 = vmatpush2.bf16.msra.mxu0 0
  %1098 = vmatprep.subr.bf16.mxu0 0
  %1099 = vmatpush2.bf16.msra.mxu0 0
  %1100 = vmatprep.subr.bf16.mxu0 0
  %1101 = vmatpush2.bf16.msra.mxu0 0
  %1102 = vmatprep.subr.bf16.mxu0 0
  %1103 = vmatpush2.bf16.msra.mxu0 0
  %1104 = vmatprep.subr.bf16.mxu0 0
  %1105 = vmatpush2.bf16.msra.mxu0 0
  %1106 = vmatprep.mubr.bf16.mxu0 0
  %1107 = vmatmul.mubr.bf16.gmra.mxu0 %v1072
  %v1108 = vpop.f32.mrf.mxu0
  %v1109 = vadd.f32 0.0, %v1108
  %v1110 = vpop.f32.mrf.mxu0
  %v1111 = vpop.f32.mrf.mxu0
  %v1112 = vpop.f32.mrf.mxu0
  %1113 = vdwg.mxu0
  %v1114 = vadd.f32 %v185, %v1109
  %v1115 = vpack.c.bf16 %v1051, %v1051
  %1117 = vrot.lane.b32.xlu0 %v1115, 64
  %v1118 = vpop.permute.xlu0 %1117
  %v1120 = vsel %vm219, %v1118, 0
  %1122 = vmatprep.subr.bf16.mxu0 0
  %1123 = vmatpush1.bf16.msra.mxu0 0
  %1124 = vmatprep.subr.bf16.mxu0 0
  %1125 = vmatpush1.bf16.msra.mxu0 0
  %1126 = vmatprep.subr.bf16.mxu0 0
  %1127 = vmatpush1.bf16.msra.mxu0 0
  %1128 = vmatprep.subr.bf16.mxu0 0
  %1129 = vmatpush1.bf16.msra.mxu0 0
  %1130 = vmatprep.subr.bf16.mxu0 0
  %1131 = vmatpush1.bf16.msra.mxu0 0
  %1132 = vmatprep.subr.bf16.mxu0 0
  %1133 = vmatpush1.bf16.msra.mxu0 0
  %1134 = vmatprep.subr.bf16.mxu0 0
  %1135 = vmatpush1.bf16.msra.mxu0 %v273
  %1136 = vmatprep.subr.bf16.mxu0 0
  %1137 = vmatpush1.bf16.msra.mxu0 %v272
  %1138 = vmatprep.subr.bf16.mxu0 0
  %1139 = vmatpush2.bf16.msra.mxu0 0
  %1140 = vmatprep.subr.bf16.mxu0 0
  %1141 = vmatpush2.bf16.msra.mxu0 0
  %1142 = vmatprep.subr.bf16.mxu0 0
  %1143 = vmatpush2.bf16.msra.mxu0 0
  %1144 = vmatprep.subr.bf16.mxu0 0
  %1145 = vmatpush2.bf16.msra.mxu0 0
  %1146 = vmatprep.subr.bf16.mxu0 0
  %1147 = vmatpush2.bf16.msra.mxu0 0
  %1148 = vmatprep.subr.bf16.mxu0 0
  %1149 = vmatpush2.bf16.msra.mxu0 0
  %1150 = vmatprep.subr.bf16.mxu0 0
  %1151 = vmatpush2.bf16.msra.mxu0 0
  %1152 = vmatprep.subr.bf16.mxu0 0
  %1153 = vmatpush2.bf16.msra.mxu0 0
  %1154 = vmatprep.mubr.bf16.mxu0 0
  %1155 = vmatmul.mubr.bf16.gmra.mxu0 %v1120
  %v1156 = vpop.f32.mrf.mxu0
  %v1157 = vadd.f32 0.0, %v1156
  %v1158 = vpop.f32.mrf.mxu0
  %v1159 = vpop.f32.mrf.mxu0
  %v1160 = vpop.f32.mrf.mxu0
  %1161 = vdwg.mxu0
  %v1162 = vadd.f32 %v173, %v1157
  %v1163 = vxor.u32 %v1114, 2147483648
  %v1164 = vmul.f32 %v1163, 1.442695
  %v1165 = vpow.pop %v1164
  %v1166 = vadd.f32 %v1165, 1.0
  %v1167 = vrcp.pop %v1166
  %v1168 = vmul.f32 1.0, %v1167
  %v1169 = vtanh.pop %v1114
  %v1170 = vmul.f32 %v1168, %v1020
  %1172 = vrot.lane.b32.xlu0 %v1169, 32
  %v1173 = vpop.permute.xlu0 %1172
  %v1175 = vmul.f32 %v1168, %v1173
  %1177 = vrot.lane.b32.xlu0 %v1175, 32
  %v1178 = vpop.permute.xlu0 %1177
  %v1180 = vadd.f32 %v1170, %v1178
  %v1181 = vtanh.pop %v1180
  %1183 = vrot.lane.b32.xlu0 %v1181, 32
  %v1184 = vpop.permute.xlu0 %1183
  %v1186 = vmul.f32 %v1168, %v1184
  %v1187 = vxor.u32 %v1162, 2147483648
  %v1188 = vmul.f32 %v1187, 1.442695
  %v1189 = vpow.pop %v1188
  %v1190 = vadd.f32 %v1189, 1.0
  %v1191 = vrcp.pop %v1190
  %v1192 = vmul.f32 1.0, %v1191
  %v1193 = vtanh.pop %v1162
  %v1194 = vmul.f32 %v1192, %v1052
  %1196 = vrot.lane.b32.xlu0 %v1193, 32
  %v1197 = vpop.permute.xlu0 %1196
  %v1199 = vmul.f32 %v1192, %v1197
  %1201 = vrot.lane.b32.xlu0 %v1199, 32
  %v1202 = vpop.permute.xlu0 %1201
  %v1204 = vadd.f32 %v1194, %v1202
  %v1205 = vtanh.pop %v1204
  %1207 = vrot.lane.b32.xlu0 %v1205, 32
  %v1208 = vpop.permute.xlu0 %1207
  %v1210 = vmul.f32 %v1192, %v1208
  %v1211 = vsel %vm720, %v1210, %v1051
  %v1212 = vsel %vm720, %v1204, %v1052
  %v1213 = vsel %vm713, %v1186, 0.0
  %1215 = vrot.lane.b32.xlu0 %v1213, 64
  %v1216 = vpop.permute.xlu0 %1215
  %s1218 = scalar_lea.vmem [#allocation2], 40
  %1219 = vst.msk [vmem:[%s1218] sm:$0xff] %vm219, %v1216
  %v1220 = vsel %vm720, %v1210, 0.0
  %1222 = vrot.lane.b32.xlu0 %v1220, 64
  %v1223 = vpop.permute.xlu0 %1222
  %s1225 = scalar_lea.vmem [#allocation3], 16
  %1226 = vst.msk [vmem:[%s1225] sm:$0xff] %vm219, %v1223
  %v1227 = vpack.c.bf16 %v1186, %v1186
  %1229 = vrot.lane.b32.xlu0 %v1227, 64
  %v1230 = vpop.permute.xlu0 %1229
  %v1232 = vsel %vm219, %v1230, 0
  %1234 = vmatprep.subr.bf16.mxu0 0
  %1235 = vmatpush1.bf16.msra.mxu0 0
  %1236 = vmatprep.subr.bf16.mxu0 0
  %1237 = vmatpush1.bf16.msra.mxu0 0
  %1238 = vmatprep.subr.bf16.mxu0 0
  %1239 = vmatpush1.bf16.msra.mxu0 0
  %1240 = vmatprep.subr.bf16.mxu0 0
  %1241 = vmatpush1.bf16.msra.mxu0 0
  %1242 = vmatprep.subr.bf16.mxu0 0
  %1243 = vmatpush1.bf16.msra.mxu0 0
  %1244 = vmatprep.subr.bf16.mxu0 0
  %1245 = vmatpush1.bf16.msra.mxu0 0
  %1246 = vmatprep.subr.bf16.mxu0 0
  %1247 = vmatpush1.bf16.msra.mxu0 %v216
  %1248 = vmatprep.subr.bf16.mxu0 0
  %1249 = vmatpush1.bf16.msra.mxu0 %v215
  %1250 = vmatprep.subr.bf16.mxu0 0
  %1251 = vmatpush2.bf16.msra.mxu0 0
  %1252 = vmatprep.subr.bf16.mxu0 0
  %1253 = vmatpush2.bf16.msra.mxu0 0
  %1254 = vmatprep.subr.bf16.mxu0 0
  %1255 = vmatpush2.bf16.msra.mxu0 0
  %1256 = vmatprep.subr.bf16.mxu0 0
  %1257 = vmatpush2.bf16.msra.mxu0 0
  %1258 = vmatprep.subr.bf16.mxu0 0
  %1259 = vmatpush2.bf16.msra.mxu0 0
  %1260 = vmatprep.subr.bf16.mxu0 0
  %1261 = vmatpush2.bf16.msra.mxu0 0
  %1262 = vmatprep.subr.bf16.mxu0 0
  %1263 = vmatpush2.bf16.msra.mxu0 0
  %1264 = vmatprep.subr.bf16.mxu0 0
  %1265 = vmatpush2.bf16.msra.mxu0 0
  %1266 = vmatprep.mubr.bf16.mxu0 0
  %1267 = vmatmul.mubr.bf16.gmra.mxu0 %v1232
  %v1268 = vpop.f32.mrf.mxu0
  %v1269 = vadd.f32 0.0, %v1268
  %v1270 = vpop.f32.mrf.mxu0
  %v1271 = vpop.f32.mrf.mxu0
  %v1272 = vpop.f32.mrf.mxu0
  %1273 = vdwg.mxu0
  %v1274 = vadd.f32 %v191, %v1269
  %v1275 = vpack.c.bf16 %v1211, %v1211
  %1277 = vrot.lane.b32.xlu0 %v1275, 64
  %v1278 = vpop.permute.xlu0 %1277
  %v1280 = vsel %vm219, %v1278, 0
  %1282 = vmatprep.subr.bf16.mxu0 0
  %1283 = vmatpush1.bf16.msra.mxu0 0
  %1284 = vmatprep.subr.bf16.mxu0 0
  %1285 = vmatpush1.bf16.msra.mxu0 0
  %1286 = vmatprep.subr.bf16.mxu0 0
  %1287 = vmatpush1.bf16.msra.mxu0 0
  %1288 = vmatprep.subr.bf16.mxu0 0
  %1289 = vmatpush1.bf16.msra.mxu0 0
  %1290 = vmatprep.subr.bf16.mxu0 0
  %1291 = vmatpush1.bf16.msra.mxu0 0
  %1292 = vmatprep.subr.bf16.mxu0 0
  %1293 = vmatpush1.bf16.msra.mxu0 0
  %1294 = vmatprep.subr.bf16.mxu0 0
  %1295 = vmatpush1.bf16.msra.mxu0 %v273
  %1296 = vmatprep.subr.bf16.mxu0 0
  %1297 = vmatpush1.bf16.msra.mxu0 %v272
  %1298 = vmatprep.subr.bf16.mxu0 0
  %1299 = vmatpush2.bf16.msra.mxu0 0
  %1300 = vmatprep.subr.bf16.mxu0 0
  %1301 = vmatpush2.bf16.msra.mxu0 0
  %1302 = vmatprep.subr.bf16.mxu0 0
  %1303 = vmatpush2.bf16.msra.mxu0 0
  %1304 = vmatprep.subr.bf16.mxu0 0
  %1305 = vmatpush2.bf16.msra.mxu0 0
  %1306 = vmatprep.subr.bf16.mxu0 0
  %1307 = vmatpush2.bf16.msra.mxu0 0
  %1308 = vmatprep.subr.bf16.mxu0 0
  %1309 = vmatpush2.bf16.msra.mxu0 0
  %1310 = vmatprep.subr.bf16.mxu0 0
  %1311 = vmatpush2.bf16.msra.mxu0 0
  %1312 = vmatprep.subr.bf16.mxu0 0
  %1313 = vmatpush2.bf16.msra.mxu0 0
  %1314 = vmatprep.mubr.bf16.mxu0 0
  %1315 = vmatmul.mubr.bf16.gmra.mxu0 %v1280
  %v1316 = vpop.f32.mrf.mxu0
  %v1317 = vadd.f32 0.0, %v1316
  %v1318 = vpop.f32.mrf.mxu0
  %v1319 = vpop.f32.mrf.mxu0
  %v1320 = vpop.f32.mrf.mxu0
  %1321 = vdwg.mxu0
  %v1322 = vadd.f32 %v167, %v1317
  %v1323 = vxor.u32 %v1274, 2147483648
  %v1324 = vmul.f32 %v1323, 1.442695
  %v1325 = vpow.pop %v1324
  %v1326 = vadd.f32 %v1325, 1.0
  %v1327 = vrcp.pop %v1326
  %v1328 = vmul.f32 1.0, %v1327
  %v1329 = vtanh.pop %v1274
  %v1330 = vmul.f32 %v1328, %v1180
  %1332 = vrot.lane.b32.xlu0 %v1329, 32
  %v1333 = vpop.permute.xlu0 %1332
  %v1335 = vmul.f32 %v1328, %v1333
  %1337 = vrot.lane.b32.xlu0 %v1335, 32
  %v1338 = vpop.permute.xlu0 %1337
  %v1340 = vadd.f32 %v1330, %v1338
  %v1341 = vtanh.pop %v1340
  %1343 = vrot.lane.b32.xlu0 %v1341, 32
  %v1344 = vpop.permute.xlu0 %1343
  %v1346 = vmul.f32 %v1328, %v1344
  %v1347 = vxor.u32 %v1322, 2147483648
  %v1348 = vmul.f32 %v1347, 1.442695
  %v1349 = vpow.pop %v1348
  %v1350 = vadd.f32 %v1349, 1.0
  %v1351 = vrcp.pop %v1350
  %v1352 = vmul.f32 1.0, %v1351
  %v1353 = vtanh.pop %v1322
  %v1354 = vmul.f32 %v1352, %v1212
  %1356 = vrot.lane.b32.xlu0 %v1353, 32
  %v1357 = vpop.permute.xlu0 %1356
  %v1359 = vmul.f32 %v1352, %v1357
  %1361 = vrot.lane.b32.xlu0 %v1359, 32
  %v1362 = vpop.permute.xlu0 %1361
  %v1364 = vadd.f32 %v1354, %v1362
  %v1365 = vtanh.pop %v1364
  %1367 = vrot.lane.b32.xlu0 %v1365, 32
  %v1368 = vpop.permute.xlu0 %1367
  %v1370 = vmul.f32 %v1352, %v1368
  %v1371 = vsel %vm548, %v1370, %v1211
  %v1372 = vsel %vm548, %v1364, %v1212
  %v1373 = vsel %vm541, %v1346, 0.0
  %1375 = vrot.lane.b32.xlu0 %v1373, 64
  %v1376 = vpop.permute.xlu0 %1375
  %s1378 = scalar_lea.vmem [#allocation2], 48
  %1379 = vst.msk [vmem:[%s1378] sm:$0xff] %vm219, %v1376
  %v1380 = vsel %vm548, %v1370, 0.0
  %1382 = vrot.lane.b32.xlu0 %v1380, 64
  %v1383 = vpop.permute.xlu0 %1382
  %s1385 = scalar_lea.vmem [#allocation3], 8
  %1386 = vst.msk [vmem:[%s1385] sm:$0xff] %vm219, %v1383
  %v1387 = vpack.c.bf16 %v1346, %v1346
  %1389 = vrot.lane.b32.xlu0 %v1387, 64
  %v1390 = vpop.permute.xlu0 %1389
  %v1392 = vsel %vm219, %v1390, 0
  %1394 = vmatprep.subr.bf16.mxu0 0
  %1395 = vmatpush1.bf16.msra.mxu0 0
  %1396 = vmatprep.subr.bf16.mxu0 0
  %1397 = vmatpush1.bf16.msra.mxu0 0
  %1398 = vmatprep.subr.bf16.mxu0 0
  %1399 = vmatpush1.bf16.msra.mxu0 0
  %1400 = vmatprep.subr.bf16.mxu0 0
  %1401 = vmatpush1.bf16.msra.mxu0 0
  %1402 = vmatprep.subr.bf16.mxu0 0
  %1403 = vmatpush1.bf16.msra.mxu0 0
  %1404 = vmatprep.subr.bf16.mxu0 0
  %1405 = vmatpush1.bf16.msra.mxu0 0
  %1406 = vmatprep.subr.bf16.mxu0 0
  %1407 = vmatpush1.bf16.msra.mxu0 %v216
  %1408 = vmatprep.subr.bf16.mxu0 0
  %1409 = vmatpush1.bf16.msra.mxu0 %v215
  %1410 = vmatprep.subr.bf16.mxu0 0
  %1411 = vmatpush2.bf16.msra.mxu0 0
  %1412 = vmatprep.subr.bf16.mxu0 0
  %1413 = vmatpush2.bf16.msra.mxu0 0
  %1414 = vmatprep.subr.bf16.mxu0 0
  %1415 = vmatpush2.bf16.msra.mxu0 0
  %1416 = vmatprep.subr.bf16.mxu0 0
  %1417 = vmatpush2.bf16.msra.mxu0 0
  %1418 = vmatprep.subr.bf16.mxu0 0
  %1419 = vmatpush2.bf16.msra.mxu0 0
  %1420 = vmatprep.subr.bf16.mxu0 0
  %1421 = vmatpush2.bf16.msra.mxu0 0
  %1422 = vmatprep.subr.bf16.mxu0 0
  %1423 = vmatpush2.bf16.msra.mxu0 0
  %1424 = vmatprep.subr.bf16.mxu0 0
  %1425 = vmatpush2.bf16.msra.mxu0 0
  %1426 = vmatprep.mubr.bf16.mxu0 0
  %1427 = vmatmul.mubr.bf16.gmra.mxu0 %v1392
  %v1428 = vpop.f32.mrf.mxu0
  %v1429 = vadd.f32 0.0, %v1428
  %v1430 = vpop.f32.mrf.mxu0
  %v1431 = vpop.f32.mrf.mxu0
  %v1432 = vpop.f32.mrf.mxu0
  %1433 = vdwg.mxu0
  %v1434 = vadd.f32 %v195, %v1429
  %v1435 = vpack.c.bf16 %v1371, %v1371
  %1437 = vrot.lane.b32.xlu0 %v1435, 64
  %v1438 = vpop.permute.xlu0 %1437
  %v1440 = vsel %vm219, %v1438, 0
  %1442 = vmatprep.subr.bf16.mxu0 0
  %1443 = vmatpush1.bf16.msra.mxu0 0
  %1444 = vmatprep.subr.bf16.mxu0 0
  %1445 = vmatpush1.bf16.msra.mxu0 0
  %1446 = vmatprep.subr.bf16.mxu0 0
  %1447 = vmatpush1.bf16.msra.mxu0 0
  %1448 = vmatprep.subr.bf16.mxu0 0
  %1449 = vmatpush1.bf16.msra.mxu0 0
  %1450 = vmatprep.subr.bf16.mxu0 0
  %1451 = vmatpush1.bf16.msra.mxu0 0
  %1452 = vmatprep.subr.bf16.mxu0 0
  %1453 = vmatpush1.bf16.msra.mxu0 0
  %1454 = vmatprep.subr.bf16.mxu0 0
  %1455 = vmatpush1.bf16.msra.mxu0 %v273
  %1456 = vmatprep.subr.bf16.mxu0 0
  %1457 = vmatpush1.bf16.msra.mxu0 %v272
  %1458 = vmatprep.subr.bf16.mxu0 0
  %1459 = vmatpush2.bf16.msra.mxu0 0
  %1460 = vmatprep.subr.bf16.mxu0 0
  %1461 = vmatpush2.bf16.msra.mxu0 0
  %1462 = vmatprep.subr.bf16.mxu0 0
  %1463 = vmatpush2.bf16.msra.mxu0 0
  %1464 = vmatprep.subr.bf16.mxu0 0
  %1465 = vmatpush2.bf16.msra.mxu0 0
  %1466 = vmatprep.subr.bf16.mxu0 0
  %1467 = vmatpush2.bf16.msra.mxu0 0
  %1468 = vmatprep.subr.bf16.mxu0 0
  %1469 = vmatpush2.bf16.msra.mxu0 0
  %1470 = vmatprep.subr.bf16.mxu0 0
  %1471 = vmatpush2.bf16.msra.mxu0 0
  %1472 = vmatprep.subr.bf16.mxu0 0
  %1473 = vmatpush2.bf16.msra.mxu0 0
  %1474 = vmatprep.mubr.bf16.mxu0 0
  %1475 = vmatmul.mubr.bf16.gmra.mxu0 %v1440
  %v1476 = vpop.f32.mrf.mxu0
  %v1477 = vadd.f32 0.0, %v1476
  %v1478 = vpop.f32.mrf.mxu0
  %v1479 = vpop.f32.mrf.mxu0
  %v1480 = vpop.f32.mrf.mxu0
  %1481 = vdwg.mxu0
  %v1482 = vadd.f32 %v163, %v1477
  %v1483 = vxor.u32 %v1434, 2147483648
  %v1484 = vmul.f32 %v1483, 1.442695
  %v1485 = vpow.pop %v1484
  %v1486 = vadd.f32 %v1485, 1.0
  %v1487 = vrcp.pop %v1486
  %v1488 = vmul.f32 1.0, %v1487
  %v1489 = vtanh.pop %v1434
  %v1490 = vmul.f32 %v1488, %v1340
  %1492 = vrot.lane.b32.xlu0 %v1489, 32
  %v1493 = vpop.permute.xlu0 %1492
  %v1495 = vmul.f32 %v1488, %v1493
  %1497 = vrot.lane.b32.xlu0 %v1495, 32
  %v1498 = vpop.permute.xlu0 %1497
  %v1500 = vadd.f32 %v1490, %v1498
  %v1501 = vtanh.pop %v1500
  %1503 = vrot.lane.b32.xlu0 %v1501, 32
  %v1504 = vpop.permute.xlu0 %1503
  %v1506 = vmul.f32 %v1488, %v1504
  %v1507 = vxor.u32 %v1482, 2147483648
  %v1508 = vmul.f32 %v1507, 1.442695
  %v1509 = vpow.pop %v1508
  %v1510 = vadd.f32 %v1509, 1.0
  %v1511 = vrcp.pop %v1510
  %v1512 = vmul.f32 1.0, %v1511
  %v1513 = vtanh.pop %v1482
  %v1514 = vmul.f32 %v1512, %v1372
  %1516 = vrot.lane.b32.xlu0 %v1513, 32
  %v1517 = vpop.permute.xlu0 %1516
  %v1519 = vmul.f32 %v1512, %v1517
  %1521 = vrot.lane.b32.xlu0 %v1519, 32
  %v1522 = vpop.permute.xlu0 %1521
  %v1524 = vadd.f32 %v1514, %v1522
  %v1525 = vtanh.pop %v1524
  %1527 = vrot.lane.b32.xlu0 %v1525, 32
  %v1528 = vpop.permute.xlu0 %1527
  %v1530 = vmul.f32 %v1512, %v1528
  %v1531 = vsel %vm371, %v1506, 0.0
  %1533 = vrot.lane.b32.xlu0 %v1531, 64
  %v1534 = vpop.permute.xlu0 %1533
  %s1536 = scalar_lea.vmem [#allocation2], 56
  %1537 = vst.msk [vmem:[%s1536] sm:$0xff] %vm219, %v1534
  %v1538 = vsel %vm378, %v1530, 0.0
  %1540 = vrot.lane.b32.xlu0 %v1538, 64
  %v1541 = vpop.permute.xlu0 %1540
  %1543 = vst.msk [vmem:[#allocation3] sm:$0xff] %vm219, %v1541
  %v1544 = vld [vmem:[#allocation2] sm:$0xff]
  %v1545 = vld [vmem:[#allocation2 + $0x8] sm:$0xff]
  %v1546 = vld [vmem:[#allocation2 + $0x10] sm:$0xff]
  %v1547 = vld [vmem:[#allocation2 + $0x18] sm:$0xff]
  %v1548 = vld [vmem:[#allocation2 + $0x20] sm:$0xff]
  %v1549 = vld [vmem:[#allocation2 + $0x28] sm:$0xff]
  %v1550 = vld [vmem:[#allocation2 + $0x30] sm:$0xff]
  %v1551 = vld [vmem:[#allocation2 + $0x38] sm:$0xff]
  %v1552 = vld [vmem:[#allocation3] sm:$0xff]
  %v1553 = vld [vmem:[#allocation3 + $0x8] sm:$0xff]
  %v1554 = vld [vmem:[#allocation3 + $0x10] sm:$0xff]
  %v1555 = vld [vmem:[#allocation3 + $0x18] sm:$0xff]
  %v1556 = vld [vmem:[#allocation3 + $0x20] sm:$0xff]
  %v1557 = vld [vmem:[#allocation3 + $0x28] sm:$0xff]
  %v1558 = vld [vmem:[#allocation3 + $0x30] sm:$0xff]
  %v1559 = vld [vmem:[#allocation3 + $0x38] sm:$0xff]
  %1568 = vrot.lane.b32.xlu0 %v1552, 32
  %v1569 = vpop.permute.xlu0 %1568
  %1570 = vrot.lane.b32.xlu0 %v1553, 32
  %v1571 = vpop.permute.xlu0 %1570
  %1572 = vrot.lane.b32.xlu0 %v1554, 32
  %v1573 = vpop.permute.xlu0 %1572
  %1574 = vrot.lane.b32.xlu0 %v1555, 32
  %v1575 = vpop.permute.xlu0 %1574
  %1576 = vrot.lane.b32.xlu0 %v1556, 32
  %v1577 = vpop.permute.xlu0 %1576
  %1578 = vrot.lane.b32.xlu0 %v1557, 32
  %v1579 = vpop.permute.xlu0 %1578
  %1580 = vrot.lane.b32.xlu0 %v1558, 32
  %v1581 = vpop.permute.xlu0 %1580
  %1582 = vrot.lane.b32.xlu0 %v1559, 32
  %v1583 = vpop.permute.xlu0 %1582
  %v1592 = vsel %vm219, %v1544, %v1569
  %v1593 = vsel %vm219, %v1545, %v1571
  %v1594 = vsel %vm219, %v1546, %v1573
  %v1595 = vsel %vm219, %v1547, %v1575
  %v1596 = vsel %vm219, %v1548, %v1577
  %v1597 = vsel %vm219, %v1549, %v1579
  %v1598 = vsel %vm219, %v1550, %v1581
  %v1599 = vsel %vm219, %v1551, %v1583
  %v1600 = vpack.c.bf16 %v1593, %v1592
  %v1601 = vpack.c.bf16 %v1595, %v1594
  %v1602 = vpack.c.bf16 %v1597, %v1596
  %v1603 = vpack.c.bf16 %v1599, %v1598
  %v1604 = vld [vmem:[%s8] sm:$0xf]
  %v1605 = vld [vmem:[%s8 + $0x4] sm:$0xf]
  %v1606 = vld [vmem:[%s8 + $0x8] sm:$0xf]
  %v1607 = vld [vmem:[%s8 + $0xc] sm:$0xf]
  %v1608 = vld [vmem:[%s8 + $0x10] sm:$0xf]
  %v1609 = vld [vmem:[%s8 + $0x14] sm:$0xf]
  %v1610 = vld [vmem:[%s8 + $0x18] sm:$0xf]
  %v1611 = vld [vmem:[%s8 + $0x1c] sm:$0xf]
  %v1612 = vld [vmem:[%s9] sm:$0x1]
  %v1614 = vlaneseq
  %v1615 = vshrl.u32 %v1614, 7
  %v1616 = vsub.s32 0, %v1615
  %v1617 = vrot.slane %v1612, %v1616
  %v1627 = vunpack.c.l.b16 %v1604
  %v1628 = vunpack.c.l.b16 %v1605
  %v1629 = vunpack.c.l.b16 %v1606
  %v1630 = vunpack.c.l.b16 %v1607
  %v1631 = vunpack.c.l.b16 %v1608
  %v1632 = vunpack.c.l.b16 %v1609
  %v1633 = vunpack.c.l.b16 %v1610
  %v1634 = vunpack.c.l.b16 %v1611
  %v1635 = vpack.c.b16 %v1628, %v1627
  %v1636 = vpack.c.b16 %v1630, %v1629
  %v1637 = vpack.c.b16 %v1632, %v1631
  %v1638 = vpack.c.b16 %v1634, %v1633
  %vm1643 = vcmask 523264
  %v1645 = vsel %vm1643, %v1600, 0
  %v1648 = vsel %vm1643, %v1601, 0
  %v1651 = vsel %vm1643, %v1602, 0
  %v1654 = vsel %vm1643, %v1603, 0
  %1656 = vmatprep.subr.bf16.mxu0 0
  %1657 = vmatpush1.bf16.msra.mxu0 0
  %1658 = vmatprep.subr.bf16.mxu0 0
  %1659 = vmatpush1.bf16.msra.mxu0 0
  %1660 = vmatprep.subr.bf16.mxu0 0
  %1661 = vmatpush1.bf16.msra.mxu0 0
  %1662 = vmatprep.subr.bf16.mxu0 0
  %1663 = vmatpush1.bf16.msra.mxu0 0
  %1664 = vmatprep.subr.bf16.mxu0 0
  %1665 = vmatpush1.bf16.msra.mxu0 %v1638
  %1666 = vmatprep.subr.bf16.mxu0 0
  %1667 = vmatpush1.bf16.msra.mxu0 %v1637
  %1668 = vmatprep.subr.bf16.mxu0 0
  %1669 = vmatpush1.bf16.msra.mxu0 %v1636
  %1670 = vmatprep.subr.bf16.mxu0 0
  %1671 = vmatpush1.bf16.msra.mxu0 %v1635
  %1672 = vmatprep.subr.bf16.mxu0 0
  %1673 = vmatpush2.bf16.msra.mxu0 0
  %1674 = vmatprep.subr.bf16.mxu0 0
  %1675 = vmatpush2.bf16.msra.mxu0 0
  %1676 = vmatprep.subr.bf16.mxu0 0
  %1677 = vmatpush2.bf16.msra.mxu0 0
  %1678 = vmatprep.subr.bf16.mxu0 0
  %1679 = vmatpush2.bf16.msra.mxu0 0
  %1680 = vmatprep.subr.bf16.mxu0 0
  %1681 = vmatpush2.bf16.msra.mxu0 0
  %1682 = vmatprep.subr.bf16.mxu0 0
  %1683 = vmatpush2.bf16.msra.mxu0 0
  %1684 = vmatprep.subr.bf16.mxu0 0
  %1685 = vmatpush2.bf16.msra.mxu0 0
  %1686 = vmatprep.subr.bf16.mxu0 0
  %1687 = vmatpush2.bf16.msra.mxu0 0
  %1688 = vmatprep.mubr.bf16.mxu0 0
  %1689 = vmatmul.mubr.bf16.gmra.mxu0 %v1645
  %v1690 = vpop.f32.mrf.mxu0
  %v1691 = vadd.f32 %v1617, %v1690
  %v1692 = vpop.f32.mrf.mxu0
  %v1693 = vpop.f32.mrf.mxu0
  %v1694 = vadd.f32 %v1617, %v1693
  %v1695 = vpop.f32.mrf.mxu0
  %1696 = vmatprep.mubr.bf16.mxu0 0
  %1697 = vmatmul.mubr.bf16.gmra.mxu0 %v1648
  %v1698 = vpop.f32.mrf.mxu0
  %v1699 = vadd.f32 %v1617, %v1698
  %v1700 = vpop.f32.mrf.mxu0
  %v1701 = vpop.f32.mrf.mxu0
  %v1702 = vadd.f32 %v1617, %v1701
  %v1703 = vpop.f32.mrf.mxu0
  %1704 = vmatprep.mubr.bf16.mxu0 0
  %1705 = vmatmul.mubr.bf16.gmra.mxu0 %v1651
  %v1706 = vpop.f32.mrf.mxu0
  %v1707 = vadd.f32 %v1617, %v1706
  %v1708 = vpop.f32.mrf.mxu0
  %v1709 = vpop.f32.mrf.mxu0
  %v1710 = vadd.f32 %v1617, %v1709
  %v1711 = vpop.f32.mrf.mxu0
  %1712 = vmatprep.mubr.bf16.mxu0 0
  %1713 = vmatmul.mubr.bf16.gmra.mxu0 %v1654
  %v1714 = vpop.f32.mrf.mxu0
  %v1715 = vadd.f32 %v1617, %v1714
  %v1716 = vpop.f32.mrf.mxu0
  %v1717 = vpop.f32.mrf.mxu0
  %v1718 = vadd.f32 %v1617, %v1717
  %v1719 = vpop.f32.mrf.mxu0
  %1720 = vdwg.mxu0
  %1722 = vset.pattern.permute.xlu0 0
  %1723 = vperm.xlu0 %1722, %v65
  %v1724 = vpop.permute.xlu0 %1723
  %1727 = vset.pattern.permute.xlu0 0
  %1728 = vperm.xlu0 %1727, %v66
  %v1729 = vpop.permute.xlu0 %1728
  %1732 = vset.pattern.permute.xlu0 0
  %1733 = vperm.xlu0 %1732, %v67
  %v1734 = vpop.permute.xlu0 %1733
  %1737 = vset.pattern.permute.xlu0 0
  %1738 = vperm.xlu0 %1737, %v68
  %v1739 = vpop.permute.xlu0 %1738
  %1742 = vset.pattern.permute.xlu0 0
  %1743 = vperm.xlu0 %1742, %v69
  %v1744 = vpop.permute.xlu0 %1743
  %1747 = vset.pattern.permute.xlu0 0
  %1748 = vperm.xlu0 %1747, %v70
  %v1749 = vpop.permute.xlu0 %1748
  %1752 = vset.pattern.permute.xlu0 0
  %1753 = vperm.xlu0 %1752, %v71
  %v1754 = vpop.permute.xlu0 %1753
  %1757 = vset.pattern.permute.xlu0 0
  %1758 = vperm.xlu0 %1757, %v72
  %v1759 = vpop.permute.xlu0 %1758
  %v1761 = vmul.f32 %v1691, %v1724
  %v1762 = vmul.f32 %v1694, %v1729
  %v1763 = vmul.f32 %v1699, %v1734
  %v1764 = vmul.f32 %v1702, %v1739
  %v1765 = vmul.f32 %v1707, %v1744
  %v1766 = vmul.f32 %v1710, %v1749
  %v1767 = vmul.f32 %v1715, %v1754
  %v1768 = vmul.f32 %v1718, %v1759
  %v1769 = vtanh.pop %v1761
  %v1770 = vtanh.pop %v1762
  %v1771 = vtanh.pop %v1763
  %v1772 = vtanh.pop %v1764
  %v1773 = vtanh.pop %v1765
  %v1774 = vtanh.pop %v1766
  %v1775 = vtanh.pop %v1767
  %v1776 = vtanh.pop %v1768
  %v1777 = vld [vmem:[%s10] sm:$0x1]
  %v1779 = vlaneseq
  %v1780 = vshrl.u32 %v1779, 7
  %v1781 = vsub.s32 0, %v1780
  %v1782 = vrot.slane %v1777, %v1781
  %v1784 = vmul.f32 %v1769, %v1782
  %v1785 = vmul.f32 %v1770, %v1782
  %v1786 = vmul.f32 %v1771, %v1782
  %v1787 = vmul.f32 %v1772, %v1782
  %v1788 = vmul.f32 %v1773, %v1782
  %v1789 = vmul.f32 %v1774, %v1782
  %v1790 = vmul.f32 %v1775, %v1782
  %v1791 = vmul.f32 %v1776, %v1782
  %v1792 = vsel %vm1643, %v1784, 0.0
  %1793 = vadd.xlane.f32.xlu0 %v1792
  %v1794 = vpop.xlane.xlu0 %1793
  %v1795 = vsel %vm1643, %v1785, 0.0
  %1796 = vadd.xlane.f32.xlu0 %v1795
  %v1797 = vpop.xlane.xlu0 %1796
  %v1798 = vsel %vm1643, %v1786, 0.0
  %1799 = vadd.xlane.f32.xlu0 %v1798
  %v1800 = vpop.xlane.xlu0 %1799
  %v1801 = vsel %vm1643, %v1787, 0.0
  %1802 = vadd.xlane.f32.xlu0 %v1801
  %v1803 = vpop.xlane.xlu0 %1802
  %v1804 = vsel %vm1643, %v1788, 0.0
  %1805 = vadd.xlane.f32.xlu0 %v1804
  %v1806 = vpop.xlane.xlu0 %1805
  %v1807 = vsel %vm1643, %v1789, 0.0
  %1808 = vadd.xlane.f32.xlu0 %v1807
  %v1809 = vpop.xlane.xlu0 %1808
  %v1810 = vsel %vm1643, %v1790, 0.0
  %1811 = vadd.xlane.f32.xlu0 %v1810
  %v1812 = vpop.xlane.xlu0 %1811
  %v1813 = vsel %vm1643, %v1791, 0.0
  %1814 = vadd.xlane.f32.xlu0 %v1813
  %v1815 = vpop.xlane.xlu0 %1814
  %v1816 = vld [vmem:[#allocation4] sm:$0x1]
  %v1818 = vlaneseq
  %v1819 = vshrl.u32 %v1818, 7
  %v1820 = vsub.s32 0, %v1819
  %v1821 = vrot.slane %v1816, %v1820
  %v1823 = vadd.f32 %v1794, %v1821
  %v1824 = vadd.f32 %v1797, %v1821
  %v1825 = vadd.f32 %v1800, %v1821
  %v1826 = vadd.f32 %v1803, %v1821
  %v1827 = vadd.f32 %v1806, %v1821
  %v1828 = vadd.f32 %v1809, %v1821
  %v1829 = vadd.f32 %v1812, %v1821
  %v1830 = vadd.f32 %v1815, %v1821
  %v1831 = vmul.f32 %v1823, %v65
  %v1832 = vmul.f32 %v1824, %v66
  %v1833 = vmul.f32 %v1825, %v67
  %v1834 = vmul.f32 %v1826, %v68
  %v1835 = vmul.f32 %v1827, %v69
  %v1836 = vmul.f32 %v1828, %v70
  %v1837 = vmul.f32 %v1829, %v71
  %v1838 = vmul.f32 %v1830, %v72
  %v1839 = vtanh.pop %v1831
  %v1840 = vtanh.pop %v1832
  %v1841 = vtanh.pop %v1833
  %v1842 = vtanh.pop %v1834
  %v1843 = vtanh.pop %v1835
  %v1844 = vtanh.pop %v1836
  %v1845 = vtanh.pop %v1837
  %v1846 = vtanh.pop %v1838
  %v1847 = vld [vmem:[#allocation5] sm:$0x1]
  %v1849 = vlaneseq
  %v1850 = vshrl.u32 %v1849, 7
  %v1851 = vsub.s32 0, %v1850
  %v1852 = vrot.slane %v1847, %v1851
  %v1854 = vmul.f32 %v1839, %v1852
  %v1855 = vmul.f32 %v1840, %v1852
  %v1856 = vmul.f32 %v1841, %v1852
  %v1857 = vmul.f32 %v1842, %v1852
  %v1858 = vmul.f32 %v1843, %v1852
  %v1859 = vmul.f32 %v1844, %v1852
  %v1860 = vmul.f32 %v1845, %v1852
  %v1861 = vmul.f32 %v1846, %v1852
  %v1862 = vld [vmem:[#allocation6] sm:$0x1]
  %v1864 = vlaneseq
  %v1865 = vshrl.u32 %v1864, 7
  %v1866 = vsub.s32 0, %v1865
  %v1867 = vrot.slane %v1862, %v1866
  %v1869 = vadd.f32 %v1854, %v1867
  %v1870 = vadd.f32 %v1855, %v1867
  %v1871 = vadd.f32 %v1856, %v1867
  %v1872 = vadd.f32 %v1857, %v1867
  %v1873 = vadd.f32 %v1858, %v1867
  %v1874 = vadd.f32 %v1859, %v1867
  %v1875 = vadd.f32 %v1860, %v1867
  %v1876 = vadd.f32 %v1861, %v1867
  %v1877 = vmul.f32 %v1869, %v65
  %v1878 = vmul.f32 %v1870, %v66
  %v1879 = vmul.f32 %v1871, %v67
  %v1880 = vmul.f32 %v1872, %v68
  %v1881 = vmul.f32 %v1873, %v69
  %v1882 = vmul.f32 %v1874, %v70
  %v1883 = vmul.f32 %v1875, %v71
  %v1884 = vmul.f32 %v1876, %v72
  %v1885 = vxor.u32 %v1877, 2147483648
  %v1886 = vxor.u32 %v1878, 2147483648
  %v1887 = vxor.u32 %v1879, 2147483648
  %v1888 = vxor.u32 %v1880, 2147483648
  %v1889 = vxor.u32 %v1881, 2147483648
  %v1890 = vxor.u32 %v1882, 2147483648
  %v1891 = vxor.u32 %v1883, 2147483648
  %v1892 = vxor.u32 %v1884, 2147483648
  %v1893 = vmul.f32 %v1885, 1.442695
  %v1894 = vpow.pop %v1893
  %v1895 = vmul.f32 %v1886, 1.442695
  %v1896 = vpow.pop %v1895
  %v1897 = vmul.f32 %v1887, 1.442695
  %v1898 = vpow.pop %v1897
  %v1899 = vmul.f32 %v1888, 1.442695
  %v1900 = vpow.pop %v1899
  %v1901 = vmul.f32 %v1889, 1.442695
  %v1902 = vpow.pop %v1901
  %v1903 = vmul.f32 %v1890, 1.442695
  %v1904 = vpow.pop %v1903
  %v1905 = vmul.f32 %v1891, 1.442695
  %v1906 = vpow.pop %v1905
  %v1907 = vmul.f32 %v1892, 1.442695
  %v1908 = vpow.pop %v1907
  %v1909 = vadd.f32 %v1894, 1.0
  %v1910 = vadd.f32 %v1896, 1.0
  %v1911 = vadd.f32 %v1898, 1.0
  %v1912 = vadd.f32 %v1900, 1.0
  %v1913 = vadd.f32 %v1902, 1.0
  %v1914 = vadd.f32 %v1904, 1.0
  %v1915 = vadd.f32 %v1906, 1.0
  %v1916 = vadd.f32 %v1908, 1.0
  %v1917 = vrcp.pop %v1909
  %v1918 = vmul.f32 1.0, %v1917
  %v1919 = vrcp.pop %v1910
  %v1920 = vmul.f32 1.0, %v1919
  %v1921 = vrcp.pop %v1911
  %v1922 = vmul.f32 1.0, %v1921
  %v1923 = vrcp.pop %v1912
  %v1924 = vmul.f32 1.0, %v1923
  %v1925 = vrcp.pop %v1913
  %v1926 = vmul.f32 1.0, %v1925
  %v1927 = vrcp.pop %v1914
  %v1928 = vmul.f32 1.0, %v1927
  %v1929 = vrcp.pop %v1915
  %v1930 = vmul.f32 1.0, %v1929
  %v1931 = vrcp.pop %v1916
  %v1932 = vmul.f32 1.0, %v1931
  %vm1933 = vcmask 7168
  %v1934 = vsel %vm1933, %v1918, 0.0
  %v1935 = vsel %vm1933, %v1920, 0.0
  %v1936 = vadd.f32 %v1934, %v1935
  %v1937 = vsel %vm1933, %v1922, 0.0
  %v1938 = vadd.f32 %v1936, %v1937
  %v1939 = vsel %vm1933, %v1924, 0.0
  %v1940 = vadd.f32 %v1938, %v1939
  %v1941 = vsel %vm1933, %v1926, 0.0
  %v1942 = vadd.f32 %v1940, %v1941
  %v1943 = vsel %vm1933, %v1928, 0.0
  %v1944 = vadd.f32 %v1942, %v1943
  %v1945 = vsel %vm1933, %v1930, 0.0
  %v1946 = vadd.f32 %v1944, %v1945
  %v1947 = vsel %vm1933, %v1932, 0.0
  %v1948 = vadd.f32 %v1946, %v1947
  %v1949 = vmax.f32 %v1948, 1e-20
  %v1950 = vrcp.pop %v1949
  %v1951 = vmul.f32 %v1918, %v1950
  %v1952 = vmul.f32 %v1920, %v1950
  %v1953 = vmul.f32 %v1922, %v1950
  %v1954 = vmul.f32 %v1924, %v1950
  %v1955 = vmul.f32 %v1926, %v1950
  %v1956 = vmul.f32 %v1928, %v1950
  %v1957 = vmul.f32 %v1930, %v1950
  %v1958 = vmul.f32 %v1932, %v1950
  %1959 = vst.msk [vmem:[%s18] sm:$0xff] %vm1933, %v1951
  %1960 = vst.msk [vmem:[%s18 + $0x8] sm:$0xff] %vm1933, %v1952
  %1961 = vst.msk [vmem:[%s18 + $0x10] sm:$0xff] %vm1933, %v1953
  %1962 = vst.msk [vmem:[%s18 + $0x18] sm:$0xff] %vm1933, %v1954
  %1963 = vst.msk [vmem:[%s18 + $0x20] sm:$0xff] %vm1933, %v1955
  %1964 = vst.msk [vmem:[%s18 + $0x28] sm:$0xff] %vm1933, %v1956
  %1965 = vst.msk [vmem:[%s18 + $0x30] sm:$0xff] %vm1933, %v1957
  %1966 = vst.msk [vmem:[%s18 + $0x38] sm:$0xff] %vm1933, %v1958
  %1968 = vset.pattern.permute.xlu0 0
  %1969 = vperm.xlu0 %1968, %v1951
  %v1970 = vpop.permute.xlu0 %1969
  %1973 = vset.pattern.permute.xlu0 0
  %1974 = vperm.xlu0 %1973, %v1952
  %v1975 = vpop.permute.xlu0 %1974
  %1978 = vset.pattern.permute.xlu0 0
  %1979 = vperm.xlu0 %1978, %v1953
  %v1980 = vpop.permute.xlu0 %1979
  %1983 = vset.pattern.permute.xlu0 0
  %1984 = vperm.xlu0 %1983, %v1954
  %v1985 = vpop.permute.xlu0 %1984
  %1988 = vset.pattern.permute.xlu0 0
  %1989 = vperm.xlu0 %1988, %v1955
  %v1990 = vpop.permute.xlu0 %1989
  %1993 = vset.pattern.permute.xlu0 0
  %1994 = vperm.xlu0 %1993, %v1956
  %v1995 = vpop.permute.xlu0 %1994
  %1998 = vset.pattern.permute.xlu0 0
  %1999 = vperm.xlu0 %1998, %v1957
  %v2000 = vpop.permute.xlu0 %1999
  %2003 = vset.pattern.permute.xlu0 0
  %2004 = vperm.xlu0 %2003, %v1958
  %v2005 = vpop.permute.xlu0 %2004
  %v2007 = vmul.f32 %v1769, %v1970
  %v2008 = vmul.f32 %v1770, %v1975
  %v2009 = vmul.f32 %v1771, %v1980
  %v2010 = vmul.f32 %v1772, %v1985
  %v2011 = vmul.f32 %v1773, %v1990
  %v2012 = vmul.f32 %v1774, %v1995
  %v2013 = vmul.f32 %v1775, %v2000
  %v2014 = vmul.f32 %v1776, %v2005
  %v2015 = vld [vmem:[%s3] sm:$0xff]
  %v2016 = vld [vmem:[%s3 + $0x8] sm:$0xff]
  %v2017 = vld [vmem:[%s3 + $0x10] sm:$0xff]
  %v2018 = vld [vmem:[%s3 + $0x18] sm:$0xff]
  %v2020 = vsel %vm1643, %v2015, 0
  %v2023 = vsel %vm1643, %v2016, 0
  %v2026 = vsel %vm1643, %v2017, 0
  %v2029 = vsel %vm1643, %v2018, 0
  %2031 = vmatprep.subr.mxu0 0.0
  %2032 = vmatpush1.msra.mxu0 0.0
  %2033 = vmatprep.subr.mxu0 0.0
  %2034 = vmatpush1.msra.mxu0 0.0
  %2035 = vmatprep.subr.mxu0 0.0
  %2036 = vmatpush1.msra.mxu0 0.0
  %2037 = vmatprep.subr.mxu0 0.0
  %2038 = vmatpush1.msra.mxu0 0.0
  %2039 = vmatprep.subr.mxu0 0.0
  %2040 = vmatpush1.msra.mxu0 0.0
  %2041 = vmatprep.subr.mxu0 0.0
  %2042 = vmatpush1.msra.mxu0 0.0
  %2043 = vmatprep.subr.mxu0 0.0
  %2044 = vmatpush1.msra.mxu0 0.0
  %2045 = vmatprep.subr.mxu0 0.0
  %2046 = vmatpush1.msra.mxu0 0.0
  %2047 = vmatprep.subr.mxu0 0.0
  %2048 = vmatpush1.msra.mxu0 %v2014
  %2049 = vmatprep.subr.mxu0 0.0
  %2050 = vmatpush1.msra.mxu0 %v2013
  %2051 = vmatprep.subr.mxu0 0.0
  %2052 = vmatpush1.msra.mxu0 %v2012
  %2053 = vmatprep.subr.mxu0 0.0
  %2054 = vmatpush1.msra.mxu0 %v2011
  %2055 = vmatprep.subr.mxu0 0.0
  %2056 = vmatpush1.msra.mxu0 %v2010
  %2057 = vmatprep.subr.mxu0 0.0
  %2058 = vmatpush1.msra.mxu0 %v2009
  %2059 = vmatprep.subr.mxu0 0.0
  %2060 = vmatpush1.msra.mxu0 %v2008
  %2061 = vmatprep.subr.mxu0 0.0
  %2062 = vmatpush1.msra.mxu0 %v2007
  %2063 = vmatprep.subr.mxu0 0.0
  %2064 = vmatpush2.msra.mxu0 0.0
  %2065 = vmatprep.subr.mxu0 0.0
  %2066 = vmatpush2.msra.mxu0 0.0
  %2067 = vmatprep.subr.mxu0 0.0
  %2068 = vmatpush2.msra.mxu0 0.0
  %2069 = vmatprep.subr.mxu0 0.0
  %2070 = vmatpush2.msra.mxu0 0.0
  %2071 = vmatprep.subr.mxu0 0.0
  %2072 = vmatpush2.msra.mxu0 0.0
  %2073 = vmatprep.subr.mxu0 0.0
  %2074 = vmatpush2.msra.mxu0 0.0
  %2075 = vmatprep.subr.mxu0 0.0
  %2076 = vmatpush2.msra.mxu0 0.0
  %2077 = vmatprep.subr.mxu0 0.0
  %2078 = vmatpush2.msra.mxu0 0.0
  %2079 = vmatprep.subr.mxu0 0.0
  %2080 = vmatpush2.msra.mxu0 0.0
  %2081 = vmatprep.subr.mxu0 0.0
  %2082 = vmatpush2.msra.mxu0 0.0
  %2083 = vmatprep.subr.mxu0 0.0
  %2084 = vmatpush2.msra.mxu0 0.0
  %2085 = vmatprep.subr.mxu0 0.0
  %2086 = vmatpush2.msra.mxu0 0.0
  %2087 = vmatprep.subr.mxu0 0.0
  %2088 = vmatpush2.msra.mxu0 0.0
  %2089 = vmatprep.subr.mxu0 0.0
  %2090 = vmatpush2.msra.mxu0 0.0
  %2091 = vmatprep.subr.mxu0 0.0
  %2092 = vmatpush2.msra.mxu0 0.0
  %2093 = vmatprep.subr.mxu0 0.0
  %2094 = vmatpush2.msra.mxu0 0.0
  %2095 = vmatprep.mubr.f32.mxu0 0.0
  %2096 = vmatmul.mubr.f32.gmra.mxu0 %v2020
  %v2097 = vpop.f32.mrf.mxu0
  %v2098 = vadd.f32 0.0, %v2097
  %v2099 = vpop.f32.mrf.mxu0
  %2100 = vmatprep.mubr.f32.mxu0 0.0
  %2101 = vmatmul.mubr.f32.gmra.mxu0 %v2023
  %v2102 = vpop.f32.mrf.mxu0
  %v2103 = vadd.f32 0.0, %v2102
  %v2104 = vpop.f32.mrf.mxu0
  %2105 = vmatprep.mubr.f32.mxu0 0.0
  %2106 = vmatmul.mubr.f32.gmra.mxu0 %v2026
  %v2107 = vpop.f32.mrf.mxu0
  %v2108 = vadd.f32 0.0, %v2107
  %v2109 = vpop.f32.mrf.mxu0
  %2110 = vmatprep.mubr.f32.mxu0 0.0
  %2111 = vmatmul.mubr.f32.gmra.mxu0 %v2029
  %v2112 = vpop.f32.mrf.mxu0
  %v2113 = vadd.f32 0.0, %v2112
  %v2114 = vpop.f32.mrf.mxu0
  %2115 = vdwg.mxu0
  %v2116 = vld [vmem:[%s14] sm:$0x1]
  %v2118 = vlaneseq
  %v2119 = vshrl.u32 %v2118, 7
  %v2120 = vsub.s32 0, %v2119
  %v2121 = vrot.slane %v2116, %v2120
  %v2123 = vmul.f32 %v2098, %v2121
  %v2124 = vmul.f32 %v2103, %v2121
  %v2125 = vmul.f32 %v2108, %v2121
  %v2126 = vmul.f32 %v2113, %v2121
  %v2127 = vsel %vm1643, %v2123, 0.0
  %2128 = vadd.xlane.f32.xlu0 %v2127
  %v2129 = vpop.xlane.xlu0 %2128
  %v2130 = vsel %vm1643, %v2124, 0.0
  %2131 = vadd.xlane.f32.xlu0 %v2130
  %v2132 = vpop.xlane.xlu0 %2131
  %v2133 = vsel %vm1643, %v2125, 0.0
  %2134 = vadd.xlane.f32.xlu0 %v2133
  %v2135 = vpop.xlane.xlu0 %2134
  %v2136 = vsel %vm1643, %v2126, 0.0
  %2137 = vadd.xlane.f32.xlu0 %v2136
  %v2138 = vpop.xlane.xlu0 %2137
  %v2139 = vtanh.pop %v2129
  %v2140 = vtanh.pop %v2132
  %v2141 = vtanh.pop %v2135
  %v2142 = vtanh.pop %v2138
  %v2143 = vmul.f32 %v2139, %v73
  %v2144 = vmul.f32 %v2140, %v74
  %v2145 = vmul.f32 %v2141, %v75
  %v2146 = vmul.f32 %v2142, %v76
  %v2147 = vsel %vm1933, %v2143, -inf
  %v2148 = vsel %vm1933, %v2144, -inf
  %v2149 = vsel %vm1933, %v2145, -inf
  %v2150 = vsel %vm1933, %v2146, -inf
  %v2151 = vmax.f32 %v2147, %v2148
  %v2152 = vmax.f32 %v2149, %v2150
  %v2153 = vmax.f32 %v2151, %v2152
  %v2154 = vsub.f32 %v2143, %v2153
  %v2155 = vsub.f32 %v2144, %v2153
  %v2156 = vsub.f32 %v2145, %v2153
  %v2157 = vsub.f32 %v2146, %v2153
  %v2158 = vmul.f32 %v2154, 1.442695
  %v2159 = vpow.pop %v2158
  %v2160 = vmul.f32 %v2155, 1.442695
  %v2161 = vpow.pop %v2160
  %v2162 = vmul.f32 %v2156, 1.442695
  %v2163 = vpow.pop %v2162
  %v2164 = vmul.f32 %v2157, 1.442695
  %v2165 = vpow.pop %v2164
  %v2166 = vsel %vm1933, %v2159, 0.0
  %v2167 = vsel %vm1933, %v2161, 0.0
  %v2168 = vadd.f32 %v2166, %v2167
  %v2169 = vsel %vm1933, %v2163, 0.0
  %v2170 = vadd.f32 %v2168, %v2169
  %v2171 = vsel %vm1933, %v2165, 0.0
  %v2172 = vadd.f32 %v2170, %v2171
  %v2173 = vrcp.pop %v2172
  %v2174 = vmul.f32 %v2159, %v2173
  %v2175 = vmul.f32 %v2161, %v2173
  %v2176 = vmul.f32 %v2163, %v2173
  %v2177 = vmul.f32 %v2165, %v2173
  %2179 = vset.pattern.permute.xlu0 0
  %2180 = vperm.xlu0 %2179, %v2174
  %v2181 = vpop.permute.xlu0 %2180
  %2184 = vset.pattern.permute.xlu0 0
  %2185 = vperm.xlu0 %2184, %v2175
  %v2186 = vpop.permute.xlu0 %2185
  %2189 = vset.pattern.permute.xlu0 0
  %2190 = vperm.xlu0 %2189, %v2176
  %v2191 = vpop.permute.xlu0 %2190
  %2194 = vset.pattern.permute.xlu0 0
  %2195 = vperm.xlu0 %2194, %v2177
  %v2196 = vpop.permute.xlu0 %2195
  %v2198 = vmul.f32 %v2098, %v2181
  %v2199 = vmul.f32 %v2103, %v2186
  %v2200 = vmul.f32 %v2108, %v2191
  %v2201 = vmul.f32 %v2113, %v2196
  %v2202 = vsel %vm1643, %v2198, 0.0
  %v2203 = vsel %vm1643, %v2199, 0.0
  %v2204 = vadd.f32 %v2202, %v2203
  %v2205 = vsel %vm1643, %v2200, 0.0
  %v2206 = vadd.f32 %v2204, %v2205
  %v2207 = vsel %vm1643, %v2201, 0.0
  %v2208 = vadd.f32 %v2206, %v2207
  %v2209 = vld [vmem:[%s15] sm:$0xff]
  %v2210 = vld [vmem:[%s15 + $0x8] sm:$0xff]
  %v2211 = vld [vmem:[%s15 + $0x10] sm:$0xff]
  %v2212 = vld [vmem:[%s15 + $0x18] sm:$0xff]
  %v2213 = vld [vmem:[%s15 + $0x20] sm:$0xff]
  %v2214 = vld [vmem:[%s15 + $0x28] sm:$0xff]
  %v2215 = vld [vmem:[%s15 + $0x30] sm:$0xff]
  %v2216 = vld [vmem:[%s15 + $0x38] sm:$0xff]
  %v2217 = vld [vmem:[%s16] sm:$0x1]
  %v2219 = vlaneseq
  %v2220 = vshrl.u32 %v2219, 7
  %v2221 = vsub.s32 0, %v2220
  %v2222 = vrot.slane %v2217, %v2221
  %v2225 = vsel %vm1643, %v2208, 0
  %2227 = vmatprep.subr.mxu0 0.0
  %2228 = vmatpush1.msra.mxu0 0.0
  %2229 = vmatprep.subr.mxu0 0.0
  %2230 = vmatpush1.msra.mxu0 0.0
  %2231 = vmatprep.subr.mxu0 0.0
  %2232 = vmatpush1.msra.mxu0 0.0
  %2233 = vmatprep.subr.mxu0 0.0
  %2234 = vmatpush1.msra.mxu0 0.0
  %2235 = vmatprep.subr.mxu0 0.0
  %2236 = vmatpush1.msra.mxu0 0.0
  %2237 = vmatprep.subr.mxu0 0.0
  %2238 = vmatpush1.msra.mxu0 0.0
  %2239 = vmatprep.subr.mxu0 0.0
  %2240 = vmatpush1.msra.mxu0 0.0
  %2241 = vmatprep.subr.mxu0 0.0
  %2242 = vmatpush1.msra.mxu0 0.0
  %2243 = vmatprep.subr.mxu0 0.0
  %2244 = vmatpush1.msra.mxu0 %v2216
  %2245 = vmatprep.subr.mxu0 0.0
  %2246 = vmatpush1.msra.mxu0 %v2215
  %2247 = vmatprep.subr.mxu0 0.0
  %2248 = vmatpush1.msra.mxu0 %v2214
  %2249 = vmatprep.subr.mxu0 0.0
  %2250 = vmatpush1.msra.mxu0 %v2213
  %2251 = vmatprep.subr.mxu0 0.0
  %2252 = vmatpush1.msra.mxu0 %v2212
  %2253 = vmatprep.subr.mxu0 0.0
  %2254 = vmatpush1.msra.mxu0 %v2211
  %2255 = vmatprep.subr.mxu0 0.0
  %2256 = vmatpush1.msra.mxu0 %v2210
  %2257 = vmatprep.subr.mxu0 0.0
  %2258 = vmatpush1.msra.mxu0 %v2209
  %2259 = vmatprep.subr.mxu0 0.0
  %2260 = vmatpush2.msra.mxu0 0.0
  %2261 = vmatprep.subr.mxu0 0.0
  %2262 = vmatpush2.msra.mxu0 0.0
  %2263 = vmatprep.subr.mxu0 0.0
  %2264 = vmatpush2.msra.mxu0 0.0
  %2265 = vmatprep.subr.mxu0 0.0
  %2266 = vmatpush2.msra.mxu0 0.0
  %2267 = vmatprep.subr.mxu0 0.0
  %2268 = vmatpush2.msra.mxu0 0.0
  %2269 = vmatprep.subr.mxu0 0.0
  %2270 = vmatpush2.msra.mxu0 0.0
  %2271 = vmatprep.subr.mxu0 0.0
  %2272 = vmatpush2.msra.mxu0 0.0
  %2273 = vmatprep.subr.mxu0 0.0
  %2274 = vmatpush2.msra.mxu0 0.0
  %2275 = vmatprep.subr.mxu0 0.0
  %2276 = vmatpush2.msra.mxu0 0.0
  %2277 = vmatprep.subr.mxu0 0.0
  %2278 = vmatpush2.msra.mxu0 0.0
  %2279 = vmatprep.subr.mxu0 0.0
  %2280 = vmatpush2.msra.mxu0 0.0
  %2281 = vmatprep.subr.mxu0 0.0
  %2282 = vmatpush2.msra.mxu0 0.0
  %2283 = vmatprep.subr.mxu0 0.0
  %2284 = vmatpush2.msra.mxu0 0.0
  %2285 = vmatprep.subr.mxu0 0.0
  %2286 = vmatpush2.msra.mxu0 0.0
  %2287 = vmatprep.subr.mxu0 0.0
  %2288 = vmatpush2.msra.mxu0 0.0
  %2289 = vmatprep.subr.mxu0 0.0
  %2290 = vmatpush2.msra.mxu0 0.0
  %2291 = vmatprep.mubr.f32.mxu0 0.0
  %2292 = vmatmul.mubr.f32.gmra.mxu0 %v2225
  %v2293 = vpop.f32.mrf.mxu0
  %v2294 = vadd.f32 %v2222, %v2293
  %v2295 = vpop.f32.mrf.mxu0
  %2296 = vdwg.mxu0
  %vm2297 = vcmask 31744
  %2298 = vst.msk [vmem:[%s17] sm:$0xff] %vm2297, %v2294
  // Predicated region
  $region70: #{tpu_custom_call.1} parent=0 // pred_check
    _
  $region71: #{tpu_custom_call.1} parent=0 // pred_check_branch
    %2300 = sbr.rel (0) target = $region73
  $region72: #{tpu_custom_call.1} parent=0 // pred_region
    _
  $region73: #{tpu_custom_call.1} parent=0 // pred_fallthru
    _
  // Predicated region
  $region74: #{tpu_custom_call.1} parent=0 // pred_check
    _
  $region75: #{tpu_custom_call.1} parent=0 // pred_check_branch
    %2302 = sbr.rel (0) target = $region77
  $region76: #{tpu_custom_call.1} parent=0 // pred_region
    _
  $region77: #{tpu_custom_call.1} parent=0 // pred_fallthru
    _
  // Predicated region
  $region78: #{tpu_custom_call.1} parent=0 // pred_check
    _
  $region79: #{tpu_custom_call.1} parent=0 // pred_check_branch
    %2304 = sbr.rel (0) target = $region81
  $region80: #{tpu_custom_call.1} parent=0 // pred_region
    _
  $region81: #{tpu_custom_call.1} parent=0 // pred_fallthru
    _
  // Predicated region
  $region82: #{tpu_custom_call.1} parent=0 // pred_check
    _
  $region83: #{tpu_custom_call.1} parent=0 // pred_check_branch
    %2306 = sbr.rel (0) target = $region85
  $region84: #{tpu_custom_call.1} parent=0 // pred_region
    _
  $region85: #{tpu_custom_call.1} parent=0 // pred_fallthru
    _

</llo_original>
